<compile_context>
chip_gen: v7x
topology: tpu7x:2x2x1
jax: 0.10.0
libtpu: 0.0.40
codegen_flags: <defaults>
</compile_context>

<pallas_src>
import functools

import jax
import jax.numpy as jnp
import numpy as np
from jax.experimental import pallas as pl
from jax.experimental.pallas import tpu as pltpu


def _round_up(x, m):
    return (x + m - 1) // m * m


# ----------------------------------------------------------------------------
# Pallas kernel: one bidirectional LSTM layer, both directions fused & interleaved.
# ----------------------------------------------------------------------------
def _bidir_lstm_layer_kernel(x_ref, len_ref, wih_ref, whh_f_ref, whh_r_ref, b_ref,
                             y_ref, hN_ref, cN_ref, gx_sc,
                             *, seq_len, batch, hidden):
    T, B, H = seq_len, batch, hidden
    H4 = 4 * H
    D = x_ref.shape[-1]

    # ---- Hoisted, direction-fused input projection:
    #      one (T*B, D) x (D, 8H) bf16 MXU matmul, f32 accumulation, done once.
    x2d = x_ref[...].reshape(T * B, D)
    gx = jnp.dot(x2d, wih_ref[...], preferred_element_type=jnp.float32) + b_ref[...]
    gx_sc[...] = gx.reshape(T, B, 2 * H4)

    lengths = len_ref[...]                       # (B, 1) int32

    def gate_update(gates, h_prev, c_prev, valid):
        # PyTorch gate order: [i, f, g, o]; gate epilogue stays in f32.
        # (For realistic sizes pick H as a multiple of 128 so these slices are vreg-aligned.)
        i_g = jax.nn.sigmoid(gates[:, 0 * H:1 * H])
        f_g = jax.nn.sigmoid(gates[:, 1 * H:2 * H])
        g_g = jnp.tanh(gates[:, 2 * H:3 * H])
        o_g = jax.nn.sigmoid(gates[:, 3 * H:4 * H])
        c_new = f_g * c_prev + i_g * g_g
        h_new = o_g * jnp.tanh(c_new)
        # Packed-sequence semantics: freeze state past each sequence's length.
        return (jnp.where(valid, h_new, h_prev),
                jnp.where(valid, c_new, c_prev),
                h_new)

    def step_fn(s, carry):
        h_f, c_f, h_r, c_r = carry
        t_f = s                                  # forward walks t = 0 .. T-1
        t_r = T - 1 - s                          # reverse walks t = T-1 .. 0

        # Small recurrent matmuls; two independent chains interleave on the MXU.
        # W_hh is read from its VMEM ref every step (not held live across the loop).
        g_f = gx_sc[t_f, :, 0:H4] + jnp.dot(
            h_f.astype(whh_f_ref.dtype), whh_f_ref[...],
            preferred_element_type=jnp.float32)
        g_r = gx_sc[t_r, :, H4:2 * H4] + jnp.dot(
            h_r.astype(whh_r_ref.dtype), whh_r_ref[...],
            preferred_element_type=jnp.float32)

        valid_f = t_f < lengths
        valid_r = t_r < lengths
        h_f_u, c_f_u, h_f_new = gate_update(g_f, h_f, c_f, valid_f)
        h_r_u, c_r_u, h_r_new = gate_update(g_r, h_r, c_r, valid_r)

        # Unconditional per-step stores into the combined (T, B, 2H) slab
        # (fwd -> lanes [0:H], rev -> lanes [H:2H]); padded rows zeroed after the loop.
        y_ref[t_f, :, 0:H] = h_f_new.astype(y_ref.dtype)
        y_ref[t_r, :, H:2 * H] = h_r_new.astype(y_ref.dtype)
        return (h_f_u, c_f_u, h_r_u, c_r_u)

    z = jnp.zeros((B, H), jnp.float32)
    h_f, c_f, h_r, c_r = jax.lax.fori_loop(
        0, T, step_fn, (z, z, z, z), unroll=bool(T <= 16))

    # Final-state writes happen exactly once, after the in-kernel time loop.
    hN_ref[0] = h_f.astype(hN_ref.dtype)
    hN_ref[1] = h_r.astype(hN_ref.dtype)
    cN_ref[0] = c_f.astype(cN_ref.dtype)
    cN_ref[1] = c_r.astype(cN_ref.dtype)

    # Bulk zeroing of padded rows (t >= length[b]) in a single vectorized pass.
    t_iota = jax.lax.broadcasted_iota(jnp.int32, (T, B, 1), 0)
    valid_all = t_iota < lengths[None, :, :]
    y_ref[...] = jnp.where(valid_all, y_ref[...], 0.0)


def bidir_lstm_layer(x_tbd, lengths_b1, wihT, whh_fT, whh_rT, bias,
                     *, seq_len, batch, hidden):
    """One bidirectional LSTM layer.

    x_tbd:  (T, B_pad, D)  bf16, time-major input (batch padded to a multiple of 8).
    wihT:   (D, 8H)        bf16, [W_ih_fwd^T | W_ih_rev^T]
    whh_fT: (H, 4H)        bf16, W_hh_fwd^T
    whh_rT: (H, 4H)        bf16, W_hh_rev^T
    bias:   (1, 8H)        f32, fused b_ih+b_hh, [fwd | rev]
    Returns y:(T, B_pad, 2H) f32, h_n:(2, B_pad, H) f32, c_n:(2, B_pad, H) f32.
    """
    T, B, D = x_tbd.shape
    H = hidden
    H4 = 4 * H
    H8 = 8 * H

    kernel = functools.partial(_bidir_lstm_layer_kernel,
                               seq_len=T, batch=B, hidden=H)

    # Explicit VMEM budget with headroom -> vmem_limit_bytes.
    def _buf(shape, itemsize):
        s = list(shape)
        if len(s) >= 2:
            s[-1] = _round_up(s[-1], 128)
            s[-2] = _round_up(s[-2], 8)
        n = 1
        for v in s:
            n *= v
        return n * itemsize

    est = (2 * _buf((T, B, D), 2)              # x (double-buffered)
           + 2 * _buf((B, 1), 4)               # lengths
           + 2 * _buf((D, H8), 2)              # W_ih^T (fused dirs)
           + 4 * _buf((H, H4), 2)              # W_hh^T fwd + rev
           + 2 * _buf((1, H8), 4)              # bias
           + 2 * _buf((T, B, 2 * H), 4)        # y (double-buffered)
           + 4 * _buf((2, B, H), 4)            # hN, cN
           + _buf((T, B, H8), 4))              # gx scratch
    vmem_limit = int(min(max(2 * est, 4 * 2**20), 64 * 2**20))

    y, h_n, c_n = pl.pallas_call(
        kernel,
        grid=(1,),
        in_specs=[
            pl.BlockSpec((T, B, D), lambda i: (0, 0, 0)),        # x
            pl.BlockSpec((B, 1), lambda i: (0, 0)),              # lengths
            pl.BlockSpec((D, H8), lambda i: (0, 0)),             # W_ih^T fwd|rev fused
            pl.BlockSpec((H, H4), lambda i: (0, 0)),             # W_hh^T fwd
            pl.BlockSpec((H, H4), lambda i: (0, 0)),             # W_hh^T rev
            pl.BlockSpec((1, H8), lambda i: (0, 0)),             # fused bias fwd|rev
        ],
        out_specs=[
            pl.BlockSpec((T, B, 2 * H), lambda i: (0, 0, 0)),    # y in next-layer layout
            pl.BlockSpec((2, B, H), lambda i: (0, 0, 0)),        # final hidden
            pl.BlockSpec((2, B, H), lambda i: (0, 0, 0)),        # final cell
        ],
        out_shape=[
            jax.ShapeDtypeStruct((T, B, 2 * H), jnp.float32),
            jax.ShapeDtypeStruct((2, B, H), jnp.float32),
            jax.ShapeDtypeStruct((2, B, H), jnp.float32),
        ],
        scratch_shapes=[
            pltpu.VMEM((T, B, H8), jnp.float32),                 # hoisted input projection
        ],
        compiler_params=pltpu.CompilerParams(
            dimension_semantics=("arbitrary",),
            vmem_limit_bytes=vmem_limit),
    )(x_tbd, lengths_b1, wihT, whh_fT, whh_rT, bias)
    return y, h_n, c_n


# ----------------------------------------------------------------------------
# One-time parameter preprocessing (hoisted off the forward critical path).
# ----------------------------------------------------------------------------
def prepare_params(params, num_layers):
    prepped = []
    for layer in range(num_layers):
        p_f = params[(layer, 0)]       # forward direction
        p_r = params[(layer, 1)]       # reverse direction
        wihT = jnp.concatenate(
            [jnp.asarray(p_f["w_ih"], jnp.float32).T,
             jnp.asarray(p_r["w_ih"], jnp.float32).T], axis=-1).astype(jnp.bfloat16)  # (D, 8H)
        whh_fT = jnp.asarray(p_f["w_hh"], jnp.float32).T.astype(jnp.bfloat16)          # (H, 4H)
        whh_rT = jnp.asarray(p_r["w_hh"], jnp.float32).T.astype(jnp.bfloat16)          # (H, 4H)
        bias = jnp.concatenate(
            [jnp.asarray(p_f["b_ih"], jnp.float32) + jnp.asarray(p_f["b_hh"], jnp.float32),
             jnp.asarray(p_r["b_ih"], jnp.float32) + jnp.asarray(p_r["b_hh"], jnp.float32)],
            axis=0).reshape(1, -1)                                                       # (1, 8H) f32
        prepped.append({"wihT": wihT, "whh_fT": whh_fT, "whh_rT": whh_rT, "bias": bias})
    return prepped


# ----------------------------------------------------------------------------
# SequenceModel forward: bidirectional, multi-layer stacking (glue in plain JAX).
# ----------------------------------------------------------------------------
def sequence_model_forward(prepped_params, x, lengths):
    """x: (B, T, D_in), lengths: (B,) int32.
    Returns (output:(B,T,2H), (hidden:(2*num_layers,B,H), cell:(2*num_layers,B,H)))."""
    B, T, _ = x.shape
    B_pad = _round_up(B, 8)                 # pad batch to the sublane width

    x_t = jnp.transpose(x, (1, 0, 2)).astype(jnp.bfloat16)          # (T, B, D)
    if B_pad != B:
        x_t = jnp.pad(x_t, ((0, 0), (0, B_pad - B), (0, 0)))
    lengths_p = jnp.zeros((B_pad, 1), jnp.int32).at[:B, 0].set(lengths.astype(jnp.int32))

    hs, cs = [], []
    layer_in = x_t
    y = None
    for lp in prepped_params:
        H = lp["whh_fT"].shape[0]
        y, h_n, c_n = bidir_lstm_layer(layer_in, lengths_p,
                                       lp["wihT"], lp["whh_fT"], lp["whh_rT"], lp["bias"],
                                       seq_len=T, batch=B_pad, hidden=H)
        hs.append(h_n[:, :B])
        cs.append(c_n[:, :B])
        # Next layer consumes the (T, B_pad, 2H) slab directly -- no concat needed.
        layer_in = y.astype(jnp.bfloat16)

    output = jnp.transpose(y[:, :B, :], (1, 0, 2))     # (B, T, 2H) f32
    hidden = jnp.concatenate(hs, axis=0)               # (2*num_layers, B, H)
    cell = jnp.concatenate(cs, axis=0)
    return output, (hidden, cell)


# ----------------------------------------------------------------------------
# Pure-JAX reference (lax.scan, f32) for correctness checking.
# ----------------------------------------------------------------------------
def _ref_lstm_dir(x_tbd, lengths, w_ih, w_hh, b_ih, b_hh, reverse):
    T, B, _ = x_tbd.shape
    H = w_hh.shape[1]

    def step(carry, inp):
        h, c = carry
        x_t, t = inp
        gates = x_t @ w_ih.T + h @ w_hh.T + b_ih + b_hh
        i, f, g, o = jnp.split(gates, 4, axis=-1)
        i = jax.nn.sigmoid(i); f = jax.nn.sigmoid(f)
        g = jnp.tanh(g); o = jax.nn.sigmoid(o)
        c_new = f * c + i * g
        h_new = o * jnp.tanh(c_new)
        valid = (t < lengths)[:, None]
        c_u = jnp.where(valid, c_new, c)
        h_u = jnp.where(valid, h_new, h)
        y = jnp.where(valid, h_new, 0.0)
        return (h_u, c_u), y

    ts = jnp.arange(T)
    xs = (x_tbd[::-1], ts[::-1]) if reverse else (x_tbd, ts)
    (h_n, c_n), ys = jax.lax.scan(step, (jnp.zeros((B, H)), jnp.zeros((B, H))), xs)
    if reverse:
        ys = ys[::-1]
    return ys, h_n, c_n


def _ref_forward(params, x, lengths, *, num_layers):
    B, T, _ = x.shape
    x_tbd = jnp.transpose(x, (1, 0, 2)).astype(jnp.float32)
    hs, cs = [], []
    layer_in = x_tbd
    for layer in range(num_layers):
        outs = []
        for rev in (False, True):
            p = params[(layer, int(rev))]
            y, h_n, c_n = _ref_lstm_dir(layer_in, lengths, p["w_ih"], p["w_hh"],
                                        p["b_ih"], p["b_hh"], rev)
            outs.append(y); hs.append(h_n); cs.append(c_n)
        layer_in = jnp.concatenate(outs, axis=-1)
    return (jnp.transpose(layer_in, (1, 0, 2)),
            (jnp.stack(hs, axis=0), jnp.stack(cs, axis=0)))


def init_params(key, input_dim, hidden_dim, num_layers):
    """Deterministic parameters, shaped like nn.LSTM(bidirectional=True)."""
    params = {}
    k = 1.0 / np.sqrt(hidden_dim)
    for layer in range(num_layers):
        in_dim = input_dim if layer == 0 else 2 * hidden_dim
        for d in range(2):  # 0 = forward, 1 = reverse
            key, k1, k2, k3, k4 = jax.random.split(key, 5)
            params[(layer, d)] = {
                "w_ih": jax.random.uniform(k1, (4 * hidden_dim, in_dim), jnp.float32, -k, k),
                "w_hh": jax.random.uniform(k2, (4 * hidden_dim, hidden_dim), jnp.float32, -k, k),
                "b_ih": jax.random.uniform(k3, (4 * hidden_dim,), jnp.float32, -k, k),
                "b_hh": jax.random.uniform(k4, (4 * hidden_dim,), jnp.float32, -k, k),
            }
    return params


if __name__ == "__main__":
    input_dim, hidden_dim, num_layers = 5, 32, 2
    B, T = 2, 8

    key = jax.random.PRNGKey(0)
    key, kx = jax.random.split(key)
    x = jax.random.normal(kx, (B, T, input_dim), jnp.float32)
    # max(lengths) == T so pad_packed_sequence's output length equals seq_len.
    lengths = jnp.array([T, 5], dtype=jnp.int32)

    params = init_params(key, input_dim, hidden_dim, num_layers)
    prepped = prepare_params(params, num_layers)          # one-time param prep (bf16 weights)

    out, (hidden, cell) = sequence_model_forward(prepped, x, lengths)
    jax.block_until_ready(out)
    jax.block_until_ready(hidden)
    jax.block_until_ready(cell)

    ref_out, (ref_h, ref_c) = _ref_forward(params, x, lengths, num_layers=num_layers)

    assert out.shape == (B, T, 2 * hidden_dim)
    assert hidden.shape == (2 * num_layers, B, hidden_dim)
    assert cell.shape == (2 * num_layers, B, hidden_dim)
    # bf16 matmul path with f32 accumulation -> slightly loosened tolerances.
    np.testing.assert_allclose(np.asarray(out), np.asarray(ref_out), rtol=4e-2, atol=4e-2)
    np.testing.assert_allclose(np.asarray(hidden), np.asarray(ref_h), rtol=4e-2, atol=4e-2)
    np.testing.assert_allclose(np.asarray(cell), np.asarray(ref_c), rtol=4e-2, atol=4e-2)

    print("KERNEL_OK")
</pallas_src>

<mosaic_0001>
module attributes {stable_mosaic.version = 11 : i64} {
  func.func @_bidir_lstm_layer_kernel(%arg0: i32, %arg1: memref<8x8x5xbf16, #tpu.memory_space<vmem>>, %arg2: memref<8x1xi32, #tpu.memory_space<vmem>>, %arg3: memref<5x256xbf16, #tpu.memory_space<vmem>>, %arg4: memref<32x128xbf16, #tpu.memory_space<vmem>>, %arg5: memref<32x128xbf16, #tpu.memory_space<vmem>>, %arg6: memref<1x256xf32, #tpu.memory_space<vmem>>, %arg7: memref<8x8x64xf32, #tpu.memory_space<vmem>>, %arg8: memref<2x8x32xf32, #tpu.memory_space<vmem>>, %arg9: memref<2x8x32xf32, #tpu.memory_space<vmem>>, %arg10: memref<8x8x256xf32, #tpu.memory_space<vmem>>) attributes {dimension_semantics = [#tpu.dimension_semantics<arbitrary>], iteration_bounds = array<i64: 1>, scalar_prefetch = 0 : i64, scratch_operands = 1 : i64, tpu.core_type = #tpu.core_type<tc>, window_params = [{pipeline_mode = #tpu.pipeline_mode<synchronous>, transform_indices = @transform_0, window_bounds = array<i64: 8, 8, 5>}, {pipeline_mode = #tpu.pipeline_mode<synchronous>, transform_indices = @transform_1, window_bounds = array<i64: 8, 1>}, {pipeline_mode = #tpu.pipeline_mode<synchronous>, transform_indices = @transform_2, window_bounds = array<i64: 5, 256>}, {pipeline_mode = #tpu.pipeline_mode<synchronous>, transform_indices = @transform_3, window_bounds = array<i64: 32, 128>}, {pipeline_mode = #tpu.pipeline_mode<synchronous>, transform_indices = @transform_4, window_bounds = array<i64: 32, 128>}, {pipeline_mode = #tpu.pipeline_mode<synchronous>, transform_indices = @transform_5, window_bounds = array<i64: 1, 256>}, {pipeline_mode = #tpu.pipeline_mode<synchronous>, transform_indices = @transform_6, window_bounds = array<i64: 8, 8, 64>}, {pipeline_mode = #tpu.pipeline_mode<synchronous>, transform_indices = @transform_7, window_bounds = array<i64: 2, 8, 32>}, {pipeline_mode = #tpu.pipeline_mode<synchronous>, transform_indices = @transform_8, window_bounds = array<i64: 2, 8, 32>}]} {
    %c0 = arith.constant 0 : index
    %c0_0 = arith.constant 0 : index
    %c0_1 = arith.constant 0 : index
    %0 = vector.load %arg1[%c0, %c0_0, %c0_1] : memref<8x8x5xbf16, #tpu.memory_space<vmem>>, vector<8x8x5xbf16>
    %1 = vector.shape_cast %0 : vector<8x8x5xbf16> to vector<64x5xbf16>
    %c0_2 = arith.constant 0 : index
    %c0_3 = arith.constant 0 : index
    %2 = vector.load %arg3[%c0_2, %c0_3] : memref<5x256xbf16, #tpu.memory_space<vmem>>, vector<5x256xbf16>
    %cst = arith.constant dense<0.000000e+00> : vector<64x256xf32>
    %3 = tpu.matmul %1, %2, %cst {dimension_numbers = #tpu.dot_dimension_numbers<[1], [0], [0], [1], [0, 0, 1, 1], [], []>} : vector<64x5xbf16>, vector<5x256xbf16>, vector<64x256xf32> -> vector<64x256xf32>
    %c0_4 = arith.constant 0 : index
    %c0_5 = arith.constant 0 : index
    %4 = vector.load %arg6[%c0_4, %c0_5] : memref<1x256xf32, #tpu.memory_space<vmem>>, vector<1x256xf32>
    %5 = vector.broadcast %4 : vector<1x256xf32> to vector<64x256xf32>
    %6 = arith.addf %3, %5 : vector<64x256xf32>
    %7 = vector.shape_cast %6 : vector<64x256xf32> to vector<8x8x256xf32>
    %c0_6 = arith.constant 0 : index
    %c0_7 = arith.constant 0 : index
    %c0_8 = arith.constant 0 : index
    %8 = vector.load %arg10[%c0_6, %c0_7, %c0_8] : memref<8x8x256xf32, #tpu.memory_space<vmem>>, vector<8x8x256xf32>
    tpu.vector_store %arg10[%c0_6, %c0_7, %c0_8], %7 {strides = array<i32>} : memref<8x8x256xf32, #tpu.memory_space<vmem>>, vector<8x8x256xf32>,
    %c0_9 = arith.constant 0 : index
    %c0_10 = arith.constant 0 : index
    %9 = vector.load %arg2[%c0_9, %c0_10] : memref<8x1xi32, #tpu.memory_space<vmem>>, vector<8x1xi32>
    %cst_11 = arith.constant 0.000000e+00 : f32
    %10 = vector.broadcast %cst_11 : f32 to vector<8x32xf32>
    %c0_i32 = arith.constant 0 : i32
    %c7_i32 = arith.constant 7 : i32
    %11 = arith.subi %c7_i32, %c0_i32 : i32
    %12 = arith.index_cast %c0_i32 : i32 to index
    %c0_12 = arith.constant 0 : index
    %c0_13 = arith.constant 0 : index
    %13 = vector.load %arg10[%12, %c0_12, %c0_13] : memref<8x8x256xf32, #tpu.memory_space<vmem>>, vector<1x8x128xf32>
    %14 = vector.shape_cast %13 : vector<1x8x128xf32> to vector<8x128xf32>
    %15 = arith.truncf %10 : vector<8x32xf32> to vector<8x32xbf16>
    %c0_14 = arith.constant 0 : index
    %c0_15 = arith.constant 0 : index
    %16 = vector.load %arg4[%c0_14, %c0_15] : memref<32x128xbf16, #tpu.memory_space<vmem>>, vector<32x128xbf16>
    %cst_16 = arith.constant dense<0.000000e+00> : vector<8x128xf32>
    %17 = tpu.matmul %15, %16, %cst_16 {dimension_numbers = #tpu.dot_dimension_numbers<[1], [0], [0], [1], [0, 0, 1, 1], [], []>} : vector<8x32xbf16>, vector<32x128xbf16>, vector<8x128xf32> -> vector<8x128xf32>
    %18 = arith.addf %14, %17 : vector<8x128xf32>
    %19 = arith.index_cast %11 : i32 to index
    %c0_17 = arith.constant 0 : index
    %c128 = arith.constant 128 : index
    %20 = vector.load %arg10[%19, %c0_17, %c128] : memref<8x8x256xf32, #tpu.memory_space<vmem>>, vector<1x8x128xf32>
    %21 = vector.shape_cast %20 : vector<1x8x128xf32> to vector<8x128xf32>
    %22 = arith.truncf %10 : vector<8x32xf32> to vector<8x32xbf16>
    %c0_18 = arith.constant 0 : index
    %c0_19 = arith.constant 0 : index
    %23 = vector.load %arg5[%c0_18, %c0_19] : memref<32x128xbf16, #tpu.memory_space<vmem>>, vector<32x128xbf16>
    %cst_20 = arith.constant dense<0.000000e+00> : vector<8x128xf32>
    %24 = tpu.matmul %22, %23, %cst_20 {dimension_numbers = #tpu.dot_dimension_numbers<[1], [0], [0], [1], [0, 0, 1, 1], [], []>} : vector<8x32xbf16>, vector<32x128xbf16>, vector<8x128xf32> -> vector<8x128xf32>
    %25 = arith.addf %21, %24 : vector<8x128xf32>
    %26 = vector.broadcast %c0_i32 : i32 to vector<8x1xi32>
    %27 = arith.cmpi slt, %26, %9 : vector<8x1xi32>
    %28 = vector.broadcast %11 : i32 to vector<8x1xi32>
    %29 = arith.cmpi slt, %28, %9 : vector<8x1xi32>
    %30 = vector.extract_strided_slice %18 {offsets = [0, 0], sizes = [8, 32], strides = [1, 1]} : vector<8x128xf32> to vector<8x32xf32>
    %31 = arith.negf %30 : vector<8x32xf32>
    %32 = math.exp %31 : vector<8x32xf32>
    %cst_21 = arith.constant 1.000000e+00 : f32
    %33 = vector.broadcast %cst_21 : f32 to vector<8x32xf32>
    %34 = arith.addf %33, %32 : vector<8x32xf32>
    %35 = arith.divf %33, %34 : vector<8x32xf32>
    %36 = vector.extract_strided_slice %18 {offsets = [0, 32], sizes = [8, 32], strides = [1, 1]} : vector<8x128xf32> to vector<8x32xf32>
    %37 = arith.negf %36 : vector<8x32xf32>
    %38 = math.exp %37 : vector<8x32xf32>
    %cst_22 = arith.constant 1.000000e+00 : f32
    %39 = vector.broadcast %cst_22 : f32 to vector<8x32xf32>
    %40 = arith.addf %39, %38 : vector<8x32xf32>
    %41 = arith.divf %39, %40 : vector<8x32xf32>
    %42 = vector.extract_strided_slice %18 {offsets = [0, 64], sizes = [8, 32], strides = [1, 1]} : vector<8x128xf32> to vector<8x32xf32>
    %43 = math.tanh %42 : vector<8x32xf32>
    %44 = vector.extract_strided_slice %18 {offsets = [0, 96], sizes = [8, 32], strides = [1, 1]} : vector<8x128xf32> to vector<8x32xf32>
    %45 = arith.negf %44 : vector<8x32xf32>
    %46 = math.exp %45 : vector<8x32xf32>
    %cst_23 = arith.constant 1.000000e+00 : f32
    %47 = vector.broadcast %cst_23 : f32 to vector<8x32xf32>
    %48 = arith.addf %47, %46 : vector<8x32xf32>
    %49 = arith.divf %47, %48 : vector<8x32xf32>
    %50 = arith.mulf %41, %10 : vector<8x32xf32>
    %51 = arith.mulf %35, %43 : vector<8x32xf32>
    %52 = arith.addf %50, %51 : vector<8x32xf32>
    %53 = math.tanh %52 : vector<8x32xf32>
    %54 = arith.mulf %49, %53 : vector<8x32xf32>
    %55 = vector.shape_cast %27 : vector<8x1xi1> to vector<8x1xi1>
    %56 = vector.broadcast %55 : vector<8x1xi1> to vector<8x32xi1>
    %57 = arith.select %56, %54, %10 : vector<8x32xi1>, vector<8x32xf32>
    %58 = vector.shape_cast %27 : vector<8x1xi1> to vector<8x1xi1>
    %59 = vector.broadcast %58 : vector<8x1xi1> to vector<8x32xi1>
    %60 = arith.select %59, %52, %10 : vector<8x32xi1>, vector<8x32xf32>
    %61 = vector.extract_strided_slice %25 {offsets = [0, 0], sizes = [8, 32], strides = [1, 1]} : vector<8x128xf32> to vector<8x32xf32>
    %62 = arith.negf %61 : vector<8x32xf32>
    %63 = math.exp %62 : vector<8x32xf32>
    %cst_24 = arith.constant 1.000000e+00 : f32
    %64 = vector.broadcast %cst_24 : f32 to vector<8x32xf32>
    %65 = arith.addf %64, %63 : vector<8x32xf32>
    %66 = arith.divf %64, %65 : vector<8x32xf32>
    %67 = vector.extract_strided_slice %25 {offsets = [0, 32], sizes = [8, 32], strides = [1, 1]} : vector<8x128xf32> to vector<8x32xf32>
    %68 = arith.negf %67 : vector<8x32xf32>
    %69 = math.exp %68 : vector<8x32xf32>
    %cst_25 = arith.constant 1.000000e+00 : f32
    %70 = vector.broadcast %cst_25 : f32 to vector<8x32xf32>
    %71 = arith.addf %70, %69 : vector<8x32xf32>
    %72 = arith.divf %70, %71 : vector<8x32xf32>
    %73 = vector.extract_strided_slice %25 {offsets = [0, 64], sizes = [8, 32], strides = [1, 1]} : vector<8x128xf32> to vector<8x32xf32>
    %74 = math.tanh %73 : vector<8x32xf32>
    %75 = vector.extract_strided_slice %25 {offsets = [0, 96], sizes = [8, 32], strides = [1, 1]} : vector<8x128xf32> to vector<8x32xf32>
    %76 = arith.negf %75 : vector<8x32xf32>
    %77 = math.exp %76 : vector<8x32xf32>
    %cst_26 = arith.constant 1.000000e+00 : f32
    %78 = vector.broadcast %cst_26 : f32 to vector<8x32xf32>
    %79 = arith.addf %78, %77 : vector<8x32xf32>
    %80 = arith.divf %78, %79 : vector<8x32xf32>
    %81 = arith.mulf %72, %10 : vector<8x32xf32>
    %82 = arith.mulf %66, %74 : vector<8x32xf32>
    %83 = arith.addf %81, %82 : vector<8x32xf32>
    %84 = math.tanh %83 : vector<8x32xf32>
    %85 = arith.mulf %80, %84 : vector<8x32xf32>
    %86 = vector.shape_cast %29 : vector<8x1xi1> to vector<8x1xi1>
    %87 = vector.broadcast %86 : vector<8x1xi1> to vector<8x32xi1>
    %88 = arith.select %87, %85, %10 : vector<8x32xi1>, vector<8x32xf32>
    %89 = vector.shape_cast %29 : vector<8x1xi1> to vector<8x1xi1>
    %90 = vector.broadcast %89 : vector<8x1xi1> to vector<8x32xi1>
    %91 = arith.select %90, %83, %10 : vector<8x32xi1>, vector<8x32xf32>
    %92 = arith.index_cast %c0_i32 : i32 to index
    %c0_27 = arith.constant 0 : index
    %c0_28 = arith.constant 0 : index
    %93 = vector.load %arg7[%92, %c0_27, %c0_28] : memref<8x8x64xf32, #tpu.memory_space<vmem>>, vector<1x8x32xf32>
    %94 = vector.shape_cast %93 : vector<1x8x32xf32> to vector<8x32xf32>
    %95 = vector.shape_cast %54 : vector<8x32xf32> to vector<1x8x32xf32>
    tpu.vector_store %arg7[%92, %c0_27, %c0_28], %95 {strides = array<i32>} : memref<8x8x64xf32, #tpu.memory_space<vmem>>, vector<1x8x32xf32>,
    %96 = arith.index_cast %11 : i32 to index
    %c0_29 = arith.constant 0 : index
    %c32 = arith.constant 32 : index
    %97 = vector.load %arg7[%96, %c0_29, %c32] : memref<8x8x64xf32, #tpu.memory_space<vmem>>, vector<1x8x32xf32>
    %98 = vector.shape_cast %97 : vector<1x8x32xf32> to vector<8x32xf32>
    %99 = vector.shape_cast %85 : vector<8x32xf32> to vector<1x8x32xf32>
    tpu.vector_store %arg7[%96, %c0_29, %c32], %99 {strides = array<i32>} : memref<8x8x64xf32, #tpu.memory_space<vmem>>, vector<1x8x32xf32>,
    %c1_i32 = arith.constant 1 : i32
    %c7_i32_30 = arith.constant 7 : i32
    %100 = arith.subi %c7_i32_30, %c1_i32 : i32
    %101 = arith.index_cast %c1_i32 : i32 to index
    %c0_31 = arith.constant 0 : index
    %c0_32 = arith.constant 0 : index
    %102 = vector.load %arg10[%101, %c0_31, %c0_32] : memref<8x8x256xf32, #tpu.memory_space<vmem>>, vector<1x8x128xf32>
    %103 = vector.shape_cast %102 : vector<1x8x128xf32> to vector<8x128xf32>
    %104 = arith.truncf %57 : vector<8x32xf32> to vector<8x32xbf16>
    %c0_33 = arith.constant 0 : index
    %c0_34 = arith.constant 0 : index
    %105 = vector.load %arg4[%c0_33, %c0_34] : memref<32x128xbf16, #tpu.memory_space<vmem>>, vector<32x128xbf16>
    %cst_35 = arith.constant dense<0.000000e+00> : vector<8x128xf32>
    %106 = tpu.matmul %104, %105, %cst_35 {dimension_numbers = #tpu.dot_dimension_numbers<[1], [0], [0], [1], [0, 0, 1, 1], [], []>} : vector<8x32xbf16>, vector<32x128xbf16>, vector<8x128xf32> -> vector<8x128xf32>
    %107 = arith.addf %103, %106 : vector<8x128xf32>
    %108 = arith.index_cast %100 : i32 to index
    %c0_36 = arith.constant 0 : index
    %c128_37 = arith.constant 128 : index
    %109 = vector.load %arg10[%108, %c0_36, %c128_37] : memref<8x8x256xf32, #tpu.memory_space<vmem>>, vector<1x8x128xf32>
    %110 = vector.shape_cast %109 : vector<1x8x128xf32> to vector<8x128xf32>
    %111 = arith.truncf %88 : vector<8x32xf32> to vector<8x32xbf16>
    %c0_38 = arith.constant 0 : index
    %c0_39 = arith.constant 0 : index
    %112 = vector.load %arg5[%c0_38, %c0_39] : memref<32x128xbf16, #tpu.memory_space<vmem>>, vector<32x128xbf16>
    %cst_40 = arith.constant dense<0.000000e+00> : vector<8x128xf32>
    %113 = tpu.matmul %111, %112, %cst_40 {dimension_numbers = #tpu.dot_dimension_numbers<[1], [0], [0], [1], [0, 0, 1, 1], [], []>} : vector<8x32xbf16>, vector<32x128xbf16>, vector<8x128xf32> -> vector<8x128xf32>
    %114 = arith.addf %110, %113 : vector<8x128xf32>
    %115 = vector.broadcast %c1_i32 : i32 to vector<8x1xi32>
    %116 = arith.cmpi slt, %115, %9 : vector<8x1xi32>
    %117 = vector.broadcast %100 : i32 to vector<8x1xi32>
    %118 = arith.cmpi slt, %117, %9 : vector<8x1xi32>
    %119 = vector.extract_strided_slice %107 {offsets = [0, 0], sizes = [8, 32], strides = [1, 1]} : vector<8x128xf32> to vector<8x32xf32>
    %120 = arith.negf %119 : vector<8x32xf32>
    %121 = math.exp %120 : vector<8x32xf32>
    %cst_41 = arith.constant 1.000000e+00 : f32
    %122 = vector.broadcast %cst_41 : f32 to vector<8x32xf32>
    %123 = arith.addf %122, %121 : vector<8x32xf32>
    %124 = arith.divf %122, %123 : vector<8x32xf32>
    %125 = vector.extract_strided_slice %107 {offsets = [0, 32], sizes = [8, 32], strides = [1, 1]} : vector<8x128xf32> to vector<8x32xf32>
    %126 = arith.negf %125 : vector<8x32xf32>
    %127 = math.exp %126 : vector<8x32xf32>
    %cst_42 = arith.constant 1.000000e+00 : f32
    %128 = vector.broadcast %cst_42 : f32 to vector<8x32xf32>
    %129 = arith.addf %128, %127 : vector<8x32xf32>
    %130 = arith.divf %128, %129 : vector<8x32xf32>
    %131 = vector.extract_strided_slice %107 {offsets = [0, 64], sizes = [8, 32], strides = [1, 1]} : vector<8x128xf32> to vector<8x32xf32>
    %132 = math.tanh %131 : vector<8x32xf32>
    %133 = vector.extract_strided_slice %107 {offsets = [0, 96], sizes = [8, 32], strides = [1, 1]} : vector<8x128xf32> to vector<8x32xf32>
    %134 = arith.negf %133 : vector<8x32xf32>
    %135 = math.exp %134 : vector<8x32xf32>
    %cst_43 = arith.constant 1.000000e+00 : f32
    %136 = vector.broadcast %cst_43 : f32 to vector<8x32xf32>
    %137 = arith.addf %136, %135 : vector<8x32xf32>
    %138 = arith.divf %136, %137 : vector<8x32xf32>
    %139 = arith.mulf %130, %60 : vector<8x32xf32>
    %140 = arith.mulf %124, %132 : vector<8x32xf32>
    %141 = arith.addf %139, %140 : vector<8x32xf32>
    %142 = math.tanh %141 : vector<8x32xf32>
    %143 = arith.mulf %138, %142 : vector<8x32xf32>
    %144 = vector.shape_cast %116 : vector<8x1xi1> to vector<8x1xi1>
    %145 = vector.broadcast %144 : vector<8x1xi1> to vector<8x32xi1>
    %146 = arith.select %145, %143, %57 : vector<8x32xi1>, vector<8x32xf32>
    %147 = vector.shape_cast %116 : vector<8x1xi1> to vector<8x1xi1>
    %148 = vector.broadcast %147 : vector<8x1xi1> to vector<8x32xi1>
    %149 = arith.select %148, %141, %60 : vector<8x32xi1>, vector<8x32xf32>
    %150 = vector.extract_strided_slice %114 {offsets = [0, 0], sizes = [8, 32], strides = [1, 1]} : vector<8x128xf32> to vector<8x32xf32>
    %151 = arith.negf %150 : vector<8x32xf32>
    %152 = math.exp %151 : vector<8x32xf32>
    %cst_44 = arith.constant 1.000000e+00 : f32
    %153 = vector.broadcast %cst_44 : f32 to vector<8x32xf32>
    %154 = arith.addf %153, %152 : vector<8x32xf32>
    %155 = arith.divf %153, %154 : vector<8x32xf32>
    %156 = vector.extract_strided_slice %114 {offsets = [0, 32], sizes = [8, 32], strides = [1, 1]} : vector<8x128xf32> to vector<8x32xf32>
    %157 = arith.negf %156 : vector<8x32xf32>
    %158 = math.exp %157 : vector<8x32xf32>
    %cst_45 = arith.constant 1.000000e+00 : f32
    %159 = vector.broadcast %cst_45 : f32 to vector<8x32xf32>
    %160 = arith.addf %159, %158 : vector<8x32xf32>
    %161 = arith.divf %159, %160 : vector<8x32xf32>
    %162 = vector.extract_strided_slice %114 {offsets = [0, 64], sizes = [8, 32], strides = [1, 1]} : vector<8x128xf32> to vector<8x32xf32>
    %163 = math.tanh %162 : vector<8x32xf32>
    %164 = vector.extract_strided_slice %114 {offsets = [0, 96], sizes = [8, 32], strides = [1, 1]} : vector<8x128xf32> to vector<8x32xf32>
    %165 = arith.negf %164 : vector<8x32xf32>
    %166 = math.exp %165 : vector<8x32xf32>
    %cst_46 = arith.constant 1.000000e+00 : f32
    %167 = vector.broadcast %cst_46 : f32 to vector<8x32xf32>
    %168 = arith.addf %167, %166 : vector<8x32xf32>
    %169 = arith.divf %167, %168 : vector<8x32xf32>
    %170 = arith.mulf %161, %91 : vector<8x32xf32>
    %171 = arith.mulf %155, %163 : vector<8x32xf32>
    %172 = arith.addf %170, %171 : vector<8x32xf32>
    %173 = math.tanh %172 : vector<8x32xf32>
    %174 = arith.mulf %169, %173 : vector<8x32xf32>
    %175 = vector.shape_cast %118 : vector<8x1xi1> to vector<8x1xi1>
    %176 = vector.broadcast %175 : vector<8x1xi1> to vector<8x32xi1>
    %177 = arith.select %176, %174, %88 : vector<8x32xi1>, vector<8x32xf32>
    %178 = vector.shape_cast %118 : vector<8x1xi1> to vector<8x1xi1>
    %179 = vector.broadcast %178 : vector<8x1xi1> to vector<8x32xi1>
    %180 = arith.select %179, %172, %91 : vector<8x32xi1>, vector<8x32xf32>
    %181 = arith.index_cast %c1_i32 : i32 to index
    %c0_47 = arith.constant 0 : index
    %c0_48 = arith.constant 0 : index
    %182 = vector.load %arg7[%181, %c0_47, %c0_48] : memref<8x8x64xf32, #tpu.memory_space<vmem>>, vector<1x8x32xf32>
    %183 = vector.shape_cast %182 : vector<1x8x32xf32> to vector<8x32xf32>
    %184 = vector.shape_cast %143 : vector<8x32xf32> to vector<1x8x32xf32>
    tpu.vector_store %arg7[%181, %c0_47, %c0_48], %184 {strides = array<i32>} : memref<8x8x64xf32, #tpu.memory_space<vmem>>, vector<1x8x32xf32>,
    %185 = arith.index_cast %100 : i32 to index
    %c0_49 = arith.constant 0 : index
    %c32_50 = arith.constant 32 : index
    %186 = vector.load %arg7[%185, %c0_49, %c32_50] : memref<8x8x64xf32, #tpu.memory_space<vmem>>, vector<1x8x32xf32>
    %187 = vector.shape_cast %186 : vector<1x8x32xf32> to vector<8x32xf32>
    %188 = vector.shape_cast %174 : vector<8x32xf32> to vector<1x8x32xf32>
    tpu.vector_store %arg7[%185, %c0_49, %c32_50], %188 {strides = array<i32>} : memref<8x8x64xf32, #tpu.memory_space<vmem>>, vector<1x8x32xf32>,
    %c2_i32 = arith.constant 2 : i32
    %c7_i32_51 = arith.constant 7 : i32
    %189 = arith.subi %c7_i32_51, %c2_i32 : i32
    %190 = arith.index_cast %c2_i32 : i32 to index
    %c0_52 = arith.constant 0 : index
    %c0_53 = arith.constant 0 : index
    %191 = vector.load %arg10[%190, %c0_52, %c0_53] : memref<8x8x256xf32, #tpu.memory_space<vmem>>, vector<1x8x128xf32>
    %192 = vector.shape_cast %191 : vector<1x8x128xf32> to vector<8x128xf32>
    %193 = arith.truncf %146 : vector<8x32xf32> to vector<8x32xbf16>
    %c0_54 = arith.constant 0 : index
    %c0_55 = arith.constant 0 : index
    %194 = vector.load %arg4[%c0_54, %c0_55] : memref<32x128xbf16, #tpu.memory_space<vmem>>, vector<32x128xbf16>
    %cst_56 = arith.constant dense<0.000000e+00> : vector<8x128xf32>
    %195 = tpu.matmul %193, %194, %cst_56 {dimension_numbers = #tpu.dot_dimension_numbers<[1], [0], [0], [1], [0, 0, 1, 1], [], []>} : vector<8x32xbf16>, vector<32x128xbf16>, vector<8x128xf32> -> vector<8x128xf32>
    %196 = arith.addf %192, %195 : vector<8x128xf32>
    %197 = arith.index_cast %189 : i32 to index
    %c0_57 = arith.constant 0 : index
    %c128_58 = arith.constant 128 : index
    %198 = vector.load %arg10[%197, %c0_57, %c128_58] : memref<8x8x256xf32, #tpu.memory_space<vmem>>, vector<1x8x128xf32>
    %199 = vector.shape_cast %198 : vector<1x8x128xf32> to vector<8x128xf32>
    %200 = arith.truncf %177 : vector<8x32xf32> to vector<8x32xbf16>
    %c0_59 = arith.constant 0 : index
    %c0_60 = arith.constant 0 : index
    %201 = vector.load %arg5[%c0_59, %c0_60] : memref<32x128xbf16, #tpu.memory_space<vmem>>, vector<32x128xbf16>
    %cst_61 = arith.constant dense<0.000000e+00> : vector<8x128xf32>
    %202 = tpu.matmul %200, %201, %cst_61 {dimension_numbers = #tpu.dot_dimension_numbers<[1], [0], [0], [1], [0, 0, 1, 1], [], []>} : vector<8x32xbf16>, vector<32x128xbf16>, vector<8x128xf32> -> vector<8x128xf32>
    %203 = arith.addf %199, %202 : vector<8x128xf32>
    %204 = vector.broadcast %c2_i32 : i32 to vector<8x1xi32>
    %205 = arith.cmpi slt, %204, %9 : vector<8x1xi32>
    %206 = vector.broadcast %189 : i32 to vector<8x1xi32>
    %207 = arith.cmpi slt, %206, %9 : vector<8x1xi32>
    %208 = vector.extract_strided_slice %196 {offsets = [0, 0], sizes = [8, 32], strides = [1, 1]} : vector<8x128xf32> to vector<8x32xf32>
    %209 = arith.negf %208 : vector<8x32xf32>
    %210 = math.exp %209 : vector<8x32xf32>
    %cst_62 = arith.constant 1.000000e+00 : f32
    %211 = vector.broadcast %cst_62 : f32 to vector<8x32xf32>
    %212 = arith.addf %211, %210 : vector<8x32xf32>
    %213 = arith.divf %211, %212 : vector<8x32xf32>
    %214 = vector.extract_strided_slice %196 {offsets = [0, 32], sizes = [8, 32], strides = [1, 1]} : vector<8x128xf32> to vector<8x32xf32>
    %215 = arith.negf %214 : vector<8x32xf32>
    %216 = math.exp %215 : vector<8x32xf32>
    %cst_63 = arith.constant 1.000000e+00 : f32
    %217 = vector.broadcast %cst_63 : f32 to vector<8x32xf32>
    %218 = arith.addf %217, %216 : vector<8x32xf32>
    %219 = arith.divf %217, %218 : vector<8x32xf32>
    %220 = vector.extract_strided_slice %196 {offsets = [0, 64], sizes = [8, 32], strides = [1, 1]} : vector<8x128xf32> to vector<8x32xf32>
    %221 = math.tanh %220 : vector<8x32xf32>
    %222 = vector.extract_strided_slice %196 {offsets = [0, 96], sizes = [8, 32], strides = [1, 1]} : vector<8x128xf32> to vector<8x32xf32>
    %223 = arith.negf %222 : vector<8x32xf32>
    %224 = math.exp %223 : vector<8x32xf32>
    %cst_64 = arith.constant 1.000000e+00 : f32
    %225 = vector.broadcast %cst_64 : f32 to vector<8x32xf32>
    %226 = arith.addf %225, %224 : vector<8x32xf32>
    %227 = arith.divf %225, %226 : vector<8x32xf32>
    %228 = arith.mulf %219, %149 : vector<8x32xf32>
    %229 = arith.mulf %213, %221 : vector<8x32xf32>
    %230 = arith.addf %228, %229 : vector<8x32xf32>
    %231 = math.tanh %230 : vector<8x32xf32>
    %232 = arith.mulf %227, %231 : vector<8x32xf32>
    %233 = vector.shape_cast %205 : vector<8x1xi1> to vector<8x1xi1>
    %234 = vector.broadcast %233 : vector<8x1xi1> to vector<8x32xi1>
    %235 = arith.select %234, %232, %146 : vector<8x32xi1>, vector<8x32xf32>
    %236 = vector.shape_cast %205 : vector<8x1xi1> to vector<8x1xi1>
    %237 = vector.broadcast %236 : vector<8x1xi1> to vector<8x32xi1>
    %238 = arith.select %237, %230, %149 : vector<8x32xi1>, vector<8x32xf32>
    %239 = vector.extract_strided_slice %203 {offsets = [0, 0], sizes = [8, 32], strides = [1, 1]} : vector<8x128xf32> to vector<8x32xf32>
    %240 = arith.negf %239 : vector<8x32xf32>
    %241 = math.exp %240 : vector<8x32xf32>
    %cst_65 = arith.constant 1.000000e+00 : f32
    %242 = vector.broadcast %cst_65 : f32 to vector<8x32xf32>
    %243 = arith.addf %242, %241 : vector<8x32xf32>
    %244 = arith.divf %242, %243 : vector<8x32xf32>
    %245 = vector.extract_strided_slice %203 {offsets = [0, 32], sizes = [8, 32], strides = [1, 1]} : vector<8x128xf32> to vector<8x32xf32>
    %246 = arith.negf %245 : vector<8x32xf32>
    %247 = math.exp %246 : vector<8x32xf32>
    %cst_66 = arith.constant 1.000000e+00 : f32
    %248 = vector.broadcast %cst_66 : f32 to vector<8x32xf32>
    %249 = arith.addf %248, %247 : vector<8x32xf32>
    %250 = arith.divf %248, %249 : vector<8x32xf32>
    %251 = vector.extract_strided_slice %203 {offsets = [0, 64], sizes = [8, 32], strides = [1, 1]} : vector<8x128xf32> to vector<8x32xf32>
    %252 = math.tanh %251 : vector<8x32xf32>
    %253 = vector.extract_strided_slice %203 {offsets = [0, 96], sizes = [8, 32], strides = [1, 1]} : vector<8x128xf32> to vector<8x32xf32>
    %254 = arith.negf %253 : vector<8x32xf32>
    %255 = math.exp %254 : vector<8x32xf32>
    %cst_67 = arith.constant 1.000000e+00 : f32
    %256 = vector.broadcast %cst_67 : f32 to vector<8x32xf32>
    %257 = arith.addf %256, %255 : vector<8x32xf32>
    %258 = arith.divf %256, %257 : vector<8x32xf32>
    %259 = arith.mulf %250, %180 : vector<8x32xf32>
    %260 = arith.mulf %244, %252 : vector<8x32xf32>
    %261 = arith.addf %259, %260 : vector<8x32xf32>
    %262 = math.tanh %261 : vector<8x32xf32>
    %263 = arith.mulf %258, %262 : vector<8x32xf32>
    %264 = vector.shape_cast %207 : vector<8x1xi1> to vector<8x1xi1>
    %265 = vector.broadcast %264 : vector<8x1xi1> to vector<8x32xi1>
    %266 = arith.select %265, %263, %177 : vector<8x32xi1>, vector<8x32xf32>
    %267 = vector.shape_cast %207 : vector<8x1xi1> to vector<8x1xi1>
    %268 = vector.broadcast %267 : vector<8x1xi1> to vector<8x32xi1>
    %269 = arith.select %268, %261, %180 : vector<8x32xi1>, vector<8x32xf32>
    %270 = arith.index_cast %c2_i32 : i32 to index
    %c0_68 = arith.constant 0 : index
    %c0_69 = arith.constant 0 : index
    %271 = vector.load %arg7[%270, %c0_68, %c0_69] : memref<8x8x64xf32, #tpu.memory_space<vmem>>, vector<1x8x32xf32>
    %272 = vector.shape_cast %271 : vector<1x8x32xf32> to vector<8x32xf32>
    %273 = vector.shape_cast %232 : vector<8x32xf32> to vector<1x8x32xf32>
    tpu.vector_store %arg7[%270, %c0_68, %c0_69], %273 {strides = array<i32>} : memref<8x8x64xf32, #tpu.memory_space<vmem>>, vector<1x8x32xf32>,
    %274 = arith.index_cast %189 : i32 to index
    %c0_70 = arith.constant 0 : index
    %c32_71 = arith.constant 32 : index
    %275 = vector.load %arg7[%274, %c0_70, %c32_71] : memref<8x8x64xf32, #tpu.memory_space<vmem>>, vector<1x8x32xf32>
    %276 = vector.shape_cast %275 : vector<1x8x32xf32> to vector<8x32xf32>
    %277 = vector.shape_cast %263 : vector<8x32xf32> to vector<1x8x32xf32>
    tpu.vector_store %arg7[%274, %c0_70, %c32_71], %277 {strides = array<i32>} : memref<8x8x64xf32, #tpu.memory_space<vmem>>, vector<1x8x32xf32>,
    %c3_i32 = arith.constant 3 : i32
    %c7_i32_72 = arith.constant 7 : i32
    %278 = arith.subi %c7_i32_72, %c3_i32 : i32
    %279 = arith.index_cast %c3_i32 : i32 to index
    %c0_73 = arith.constant 0 : index
    %c0_74 = arith.constant 0 : index
    %280 = vector.load %arg10[%279, %c0_73, %c0_74] : memref<8x8x256xf32, #tpu.memory_space<vmem>>, vector<1x8x128xf32>
    %281 = vector.shape_cast %280 : vector<1x8x128xf32> to vector<8x128xf32>
    %282 = arith.truncf %235 : vector<8x32xf32> to vector<8x32xbf16>
    %c0_75 = arith.constant 0 : index
    %c0_76 = arith.constant 0 : index
    %283 = vector.load %arg4[%c0_75, %c0_76] : memref<32x128xbf16, #tpu.memory_space<vmem>>, vector<32x128xbf16>
    %cst_77 = arith.constant dense<0.000000e+00> : vector<8x128xf32>
    %284 = tpu.matmul %282, %283, %cst_77 {dimension_numbers = #tpu.dot_dimension_numbers<[1], [0], [0], [1], [0, 0, 1, 1], [], []>} : vector<8x32xbf16>, vector<32x128xbf16>, vector<8x128xf32> -> vector<8x128xf32>
    %285 = arith.addf %281, %284 : vector<8x128xf32>
    %286 = arith.index_cast %278 : i32 to index
    %c0_78 = arith.constant 0 : index
    %c128_79 = arith.constant 128 : index
    %287 = vector.load %arg10[%286, %c0_78, %c128_79] : memref<8x8x256xf32, #tpu.memory_space<vmem>>, vector<1x8x128xf32>
    %288 = vector.shape_cast %287 : vector<1x8x128xf32> to vector<8x128xf32>
    %289 = arith.truncf %266 : vector<8x32xf32> to vector<8x32xbf16>
    %c0_80 = arith.constant 0 : index
    %c0_81 = arith.constant 0 : index
    %290 = vector.load %arg5[%c0_80, %c0_81] : memref<32x128xbf16, #tpu.memory_space<vmem>>, vector<32x128xbf16>
    %cst_82 = arith.constant dense<0.000000e+00> : vector<8x128xf32>
    %291 = tpu.matmul %289, %290, %cst_82 {dimension_numbers = #tpu.dot_dimension_numbers<[1], [0], [0], [1], [0, 0, 1, 1], [], []>} : vector<8x32xbf16>, vector<32x128xbf16>, vector<8x128xf32> -> vector<8x128xf32>
    %292 = arith.addf %288, %291 : vector<8x128xf32>
    %293 = vector.broadcast %c3_i32 : i32 to vector<8x1xi32>
    %294 = arith.cmpi slt, %293, %9 : vector<8x1xi32>
    %295 = vector.broadcast %278 : i32 to vector<8x1xi32>
    %296 = arith.cmpi slt, %295, %9 : vector<8x1xi32>
    %297 = vector.extract_strided_slice %285 {offsets = [0, 0], sizes = [8, 32], strides = [1, 1]} : vector<8x128xf32> to vector<8x32xf32>
    %298 = arith.negf %297 : vector<8x32xf32>
    %299 = math.exp %298 : vector<8x32xf32>
    %cst_83 = arith.constant 1.000000e+00 : f32
    %300 = vector.broadcast %cst_83 : f32 to vector<8x32xf32>
    %301 = arith.addf %300, %299 : vector<8x32xf32>
    %302 = arith.divf %300, %301 : vector<8x32xf32>
    %303 = vector.extract_strided_slice %285 {offsets = [0, 32], sizes = [8, 32], strides = [1, 1]} : vector<8x128xf32> to vector<8x32xf32>
    %304 = arith.negf %303 : vector<8x32xf32>
    %305 = math.exp %304 : vector<8x32xf32>
    %cst_84 = arith.constant 1.000000e+00 : f32
    %306 = vector.broadcast %cst_84 : f32 to vector<8x32xf32>
    %307 = arith.addf %306, %305 : vector<8x32xf32>
    %308 = arith.divf %306, %307 : vector<8x32xf32>
    %309 = vector.extract_strided_slice %285 {offsets = [0, 64], sizes = [8, 32], strides = [1, 1]} : vector<8x128xf32> to vector<8x32xf32>
    %310 = math.tanh %309 : vector<8x32xf32>
    %311 = vector.extract_strided_slice %285 {offsets = [0, 96], sizes = [8, 32], strides = [1, 1]} : vector<8x128xf32> to vector<8x32xf32>
    %312 = arith.negf %311 : vector<8x32xf32>
    %313 = math.exp %312 : vector<8x32xf32>
    %cst_85 = arith.constant 1.000000e+00 : f32
    %314 = vector.broadcast %cst_85 : f32 to vector<8x32xf32>
    %315 = arith.addf %314, %313 : vector<8x32xf32>
    %316 = arith.divf %314, %315 : vector<8x32xf32>
    %317 = arith.mulf %308, %238 : vector<8x32xf32>
    %318 = arith.mulf %302, %310 : vector<8x32xf32>
    %319 = arith.addf %317, %318 : vector<8x32xf32>
    %320 = math.tanh %319 : vector<8x32xf32>
    %321 = arith.mulf %316, %320 : vector<8x32xf32>
    %322 = vector.shape_cast %294 : vector<8x1xi1> to vector<8x1xi1>
    %323 = vector.broadcast %322 : vector<8x1xi1> to vector<8x32xi1>
    %324 = arith.select %323, %321, %235 : vector<8x32xi1>, vector<8x32xf32>
    %325 = vector.shape_cast %294 : vector<8x1xi1> to vector<8x1xi1>
    %326 = vector.broadcast %325 : vector<8x1xi1> to vector<8x32xi1>
    %327 = arith.select %326, %319, %238 : vector<8x32xi1>, vector<8x32xf32>
    %328 = vector.extract_strided_slice %292 {offsets = [0, 0], sizes = [8, 32], strides = [1, 1]} : vector<8x128xf32> to vector<8x32xf32>
    %329 = arith.negf %328 : vector<8x32xf32>
    %330 = math.exp %329 : vector<8x32xf32>
    %cst_86 = arith.constant 1.000000e+00 : f32
    %331 = vector.broadcast %cst_86 : f32 to vector<8x32xf32>
    %332 = arith.addf %331, %330 : vector<8x32xf32>
    %333 = arith.divf %331, %332 : vector<8x32xf32>
    %334 = vector.extract_strided_slice %292 {offsets = [0, 32], sizes = [8, 32], strides = [1, 1]} : vector<8x128xf32> to vector<8x32xf32>
    %335 = arith.negf %334 : vector<8x32xf32>
    %336 = math.exp %335 : vector<8x32xf32>
    %cst_87 = arith.constant 1.000000e+00 : f32
    %337 = vector.broadcast %cst_87 : f32 to vector<8x32xf32>
    %338 = arith.addf %337, %336 : vector<8x32xf32>
    %339 = arith.divf %337, %338 : vector<8x32xf32>
    %340 = vector.extract_strided_slice %292 {offsets = [0, 64], sizes = [8, 32], strides = [1, 1]} : vector<8x128xf32> to vector<8x32xf32>
    %341 = math.tanh %340 : vector<8x32xf32>
    %342 = vector.extract_strided_slice %292 {offsets = [0, 96], sizes = [8, 32], strides = [1, 1]} : vector<8x128xf32> to vector<8x32xf32>
    %343 = arith.negf %342 : vector<8x32xf32>
    %344 = math.exp %343 : vector<8x32xf32>
    %cst_88 = arith.constant 1.000000e+00 : f32
    %345 = vector.broadcast %cst_88 : f32 to vector<8x32xf32>
    %346 = arith.addf %345, %344 : vector<8x32xf32>
    %347 = arith.divf %345, %346 : vector<8x32xf32>
    %348 = arith.mulf %339, %269 : vector<8x32xf32>
    %349 = arith.mulf %333, %341 : vector<8x32xf32>
    %350 = arith.addf %348, %349 : vector<8x32xf32>
    %351 = math.tanh %350 : vector<8x32xf32>
    %352 = arith.mulf %347, %351 : vector<8x32xf32>
    %353 = vector.shape_cast %296 : vector<8x1xi1> to vector<8x1xi1>
    %354 = vector.broadcast %353 : vector<8x1xi1> to vector<8x32xi1>
    %355 = arith.select %354, %352, %266 : vector<8x32xi1>, vector<8x32xf32>
    %356 = vector.shape_cast %296 : vector<8x1xi1> to vector<8x1xi1>
    %357 = vector.broadcast %356 : vector<8x1xi1> to vector<8x32xi1>
    %358 = arith.select %357, %350, %269 : vector<8x32xi1>, vector<8x32xf32>
    %359 = arith.index_cast %c3_i32 : i32 to index
    %c0_89 = arith.constant 0 : index
    %c0_90 = arith.constant 0 : index
    %360 = vector.load %arg7[%359, %c0_89, %c0_90] : memref<8x8x64xf32, #tpu.memory_space<vmem>>, vector<1x8x32xf32>
    %361 = vector.shape_cast %360 : vector<1x8x32xf32> to vector<8x32xf32>
    %362 = vector.shape_cast %321 : vector<8x32xf32> to vector<1x8x32xf32>
    tpu.vector_store %arg7[%359, %c0_89, %c0_90], %362 {strides = array<i32>} : memref<8x8x64xf32, #tpu.memory_space<vmem>>, vector<1x8x32xf32>,
    %363 = arith.index_cast %278 : i32 to index
    %c0_91 = arith.constant 0 : index
    %c32_92 = arith.constant 32 : index
    %364 = vector.load %arg7[%363, %c0_91, %c32_92] : memref<8x8x64xf32, #tpu.memory_space<vmem>>, vector<1x8x32xf32>
    %365 = vector.shape_cast %364 : vector<1x8x32xf32> to vector<8x32xf32>
    %366 = vector.shape_cast %352 : vector<8x32xf32> to vector<1x8x32xf32>
    tpu.vector_store %arg7[%363, %c0_91, %c32_92], %366 {strides = array<i32>} : memref<8x8x64xf32, #tpu.memory_space<vmem>>, vector<1x8x32xf32>,
    %c4_i32 = arith.constant 4 : i32
    %c7_i32_93 = arith.constant 7 : i32
    %367 = arith.subi %c7_i32_93, %c4_i32 : i32
    %368 = arith.index_cast %c4_i32 : i32 to index
    %c0_94 = arith.constant 0 : index
    %c0_95 = arith.constant 0 : index
    %369 = vector.load %arg10[%368, %c0_94, %c0_95] : memref<8x8x256xf32, #tpu.memory_space<vmem>>, vector<1x8x128xf32>
    %370 = vector.shape_cast %369 : vector<1x8x128xf32> to vector<8x128xf32>
    %371 = arith.truncf %324 : vector<8x32xf32> to vector<8x32xbf16>
    %c0_96 = arith.constant 0 : index
    %c0_97 = arith.constant 0 : index
    %372 = vector.load %arg4[%c0_96, %c0_97] : memref<32x128xbf16, #tpu.memory_space<vmem>>, vector<32x128xbf16>
    %cst_98 = arith.constant dense<0.000000e+00> : vector<8x128xf32>
    %373 = tpu.matmul %371, %372, %cst_98 {dimension_numbers = #tpu.dot_dimension_numbers<[1], [0], [0], [1], [0, 0, 1, 1], [], []>} : vector<8x32xbf16>, vector<32x128xbf16>, vector<8x128xf32> -> vector<8x128xf32>
    %374 = arith.addf %370, %373 : vector<8x128xf32>
    %375 = arith.index_cast %367 : i32 to index
    %c0_99 = arith.constant 0 : index
    %c128_100 = arith.constant 128 : index
    %376 = vector.load %arg10[%375, %c0_99, %c128_100] : memref<8x8x256xf32, #tpu.memory_space<vmem>>, vector<1x8x128xf32>
    %377 = vector.shape_cast %376 : vector<1x8x128xf32> to vector<8x128xf32>
    %378 = arith.truncf %355 : vector<8x32xf32> to vector<8x32xbf16>
    %c0_101 = arith.constant 0 : index
    %c0_102 = arith.constant 0 : index
    %379 = vector.load %arg5[%c0_101, %c0_102] : memref<32x128xbf16, #tpu.memory_space<vmem>>, vector<32x128xbf16>
    %cst_103 = arith.constant dense<0.000000e+00> : vector<8x128xf32>
    %380 = tpu.matmul %378, %379, %cst_103 {dimension_numbers = #tpu.dot_dimension_numbers<[1], [0], [0], [1], [0, 0, 1, 1], [], []>} : vector<8x32xbf16>, vector<32x128xbf16>, vector<8x128xf32> -> vector<8x128xf32>
    %381 = arith.addf %377, %380 : vector<8x128xf32>
    %382 = vector.broadcast %c4_i32 : i32 to vector<8x1xi32>
    %383 = arith.cmpi slt, %382, %9 : vector<8x1xi32>
    %384 = vector.broadcast %367 : i32 to vector<8x1xi32>
    %385 = arith.cmpi slt, %384, %9 : vector<8x1xi32>
    %386 = vector.extract_strided_slice %374 {offsets = [0, 0], sizes = [8, 32], strides = [1, 1]} : vector<8x128xf32> to vector<8x32xf32>
    %387 = arith.negf %386 : vector<8x32xf32>
    %388 = math.exp %387 : vector<8x32xf32>
    %cst_104 = arith.constant 1.000000e+00 : f32
    %389 = vector.broadcast %cst_104 : f32 to vector<8x32xf32>
    %390 = arith.addf %389, %388 : vector<8x32xf32>
    %391 = arith.divf %389, %390 : vector<8x32xf32>
    %392 = vector.extract_strided_slice %374 {offsets = [0, 32], sizes = [8, 32], strides = [1, 1]} : vector<8x128xf32> to vector<8x32xf32>
    %393 = arith.negf %392 : vector<8x32xf32>
    %394 = math.exp %393 : vector<8x32xf32>
    %cst_105 = arith.constant 1.000000e+00 : f32
    %395 = vector.broadcast %cst_105 : f32 to vector<8x32xf32>
    %396 = arith.addf %395, %394 : vector<8x32xf32>
    %397 = arith.divf %395, %396 : vector<8x32xf32>
    %398 = vector.extract_strided_slice %374 {offsets = [0, 64], sizes = [8, 32], strides = [1, 1]} : vector<8x128xf32> to vector<8x32xf32>
    %399 = math.tanh %398 : vector<8x32xf32>
    %400 = vector.extract_strided_slice %374 {offsets = [0, 96], sizes = [8, 32], strides = [1, 1]} : vector<8x128xf32> to vector<8x32xf32>
    %401 = arith.negf %400 : vector<8x32xf32>
    %402 = math.exp %401 : vector<8x32xf32>
    %cst_106 = arith.constant 1.000000e+00 : f32
    %403 = vector.broadcast %cst_106 : f32 to vector<8x32xf32>
    %404 = arith.addf %403, %402 : vector<8x32xf32>
    %405 = arith.divf %403, %404 : vector<8x32xf32>
    %406 = arith.mulf %397, %327 : vector<8x32xf32>
    %407 = arith.mulf %391, %399 : vector<8x32xf32>
    %408 = arith.addf %406, %407 : vector<8x32xf32>
    %409 = math.tanh %408 : vector<8x32xf32>
    %410 = arith.mulf %405, %409 : vector<8x32xf32>
    %411 = vector.shape_cast %383 : vector<8x1xi1> to vector<8x1xi1>
    %412 = vector.broadcast %411 : vector<8x1xi1> to vector<8x32xi1>
    %413 = arith.select %412, %410, %324 : vector<8x32xi1>, vector<8x32xf32>
    %414 = vector.shape_cast %383 : vector<8x1xi1> to vector<8x1xi1>
    %415 = vector.broadcast %414 : vector<8x1xi1> to vector<8x32xi1>
    %416 = arith.select %415, %408, %327 : vector<8x32xi1>, vector<8x32xf32>
    %417 = vector.extract_strided_slice %381 {offsets = [0, 0], sizes = [8, 32], strides = [1, 1]} : vector<8x128xf32> to vector<8x32xf32>
    %418 = arith.negf %417 : vector<8x32xf32>
    %419 = math.exp %418 : vector<8x32xf32>
    %cst_107 = arith.constant 1.000000e+00 : f32
    %420 = vector.broadcast %cst_107 : f32 to vector<8x32xf32>
    %421 = arith.addf %420, %419 : vector<8x32xf32>
    %422 = arith.divf %420, %421 : vector<8x32xf32>
    %423 = vector.extract_strided_slice %381 {offsets = [0, 32], sizes = [8, 32], strides = [1, 1]} : vector<8x128xf32> to vector<8x32xf32>
    %424 = arith.negf %423 : vector<8x32xf32>
    %425 = math.exp %424 : vector<8x32xf32>
    %cst_108 = arith.constant 1.000000e+00 : f32
    %426 = vector.broadcast %cst_108 : f32 to vector<8x32xf32>
    %427 = arith.addf %426, %425 : vector<8x32xf32>
    %428 = arith.divf %426, %427 : vector<8x32xf32>
    %429 = vector.extract_strided_slice %381 {offsets = [0, 64], sizes = [8, 32], strides = [1, 1]} : vector<8x128xf32> to vector<8x32xf32>
    %430 = math.tanh %429 : vector<8x32xf32>
    %431 = vector.extract_strided_slice %381 {offsets = [0, 96], sizes = [8, 32], strides = [1, 1]} : vector<8x128xf32> to vector<8x32xf32>
    %432 = arith.negf %431 : vector<8x32xf32>
    %433 = math.exp %432 : vector<8x32xf32>
    %cst_109 = arith.constant 1.000000e+00 : f32
    %434 = vector.broadcast %cst_109 : f32 to vector<8x32xf32>
    %435 = arith.addf %434, %433 : vector<8x32xf32>
    %436 = arith.divf %434, %435 : vector<8x32xf32>
    %437 = arith.mulf %428, %358 : vector<8x32xf32>
    %438 = arith.mulf %422, %430 : vector<8x32xf32>
    %439 = arith.addf %437, %438 : vector<8x32xf32>
    %440 = math.tanh %439 : vector<8x32xf32>
    %441 = arith.mulf %436, %440 : vector<8x32xf32>
    %442 = vector.shape_cast %385 : vector<8x1xi1> to vector<8x1xi1>
    %443 = vector.broadcast %442 : vector<8x1xi1> to vector<8x32xi1>
    %444 = arith.select %443, %441, %355 : vector<8x32xi1>, vector<8x32xf32>
    %445 = vector.shape_cast %385 : vector<8x1xi1> to vector<8x1xi1>
    %446 = vector.broadcast %445 : vector<8x1xi1> to vector<8x32xi1>
    %447 = arith.select %446, %439, %358 : vector<8x32xi1>, vector<8x32xf32>
    %448 = arith.index_cast %c4_i32 : i32 to index
    %c0_110 = arith.constant 0 : index
    %c0_111 = arith.constant 0 : index
    %449 = vector.load %arg7[%448, %c0_110, %c0_111] : memref<8x8x64xf32, #tpu.memory_space<vmem>>, vector<1x8x32xf32>
    %450 = vector.shape_cast %449 : vector<1x8x32xf32> to vector<8x32xf32>
    %451 = vector.shape_cast %410 : vector<8x32xf32> to vector<1x8x32xf32>
    tpu.vector_store %arg7[%448, %c0_110, %c0_111], %451 {strides = array<i32>} : memref<8x8x64xf32, #tpu.memory_space<vmem>>, vector<1x8x32xf32>,
    %452 = arith.index_cast %367 : i32 to index
    %c0_112 = arith.constant 0 : index
    %c32_113 = arith.constant 32 : index
    %453 = vector.load %arg7[%452, %c0_112, %c32_113] : memref<8x8x64xf32, #tpu.memory_space<vmem>>, vector<1x8x32xf32>
    %454 = vector.shape_cast %453 : vector<1x8x32xf32> to vector<8x32xf32>
    %455 = vector.shape_cast %441 : vector<8x32xf32> to vector<1x8x32xf32>
    tpu.vector_store %arg7[%452, %c0_112, %c32_113], %455 {strides = array<i32>} : memref<8x8x64xf32, #tpu.memory_space<vmem>>, vector<1x8x32xf32>,
    %c5_i32 = arith.constant 5 : i32
    %c7_i32_114 = arith.constant 7 : i32
    %456 = arith.subi %c7_i32_114, %c5_i32 : i32
    %457 = arith.index_cast %c5_i32 : i32 to index
    %c0_115 = arith.constant 0 : index
    %c0_116 = arith.constant 0 : index
    %458 = vector.load %arg10[%457, %c0_115, %c0_116] : memref<8x8x256xf32, #tpu.memory_space<vmem>>, vector<1x8x128xf32>
    %459 = vector.shape_cast %458 : vector<1x8x128xf32> to vector<8x128xf32>
    %460 = arith.truncf %413 : vector<8x32xf32> to vector<8x32xbf16>
    %c0_117 = arith.constant 0 : index
    %c0_118 = arith.constant 0 : index
    %461 = vector.load %arg4[%c0_117, %c0_118] : memref<32x128xbf16, #tpu.memory_space<vmem>>, vector<32x128xbf16>
    %cst_119 = arith.constant dense<0.000000e+00> : vector<8x128xf32>
    %462 = tpu.matmul %460, %461, %cst_119 {dimension_numbers = #tpu.dot_dimension_numbers<[1], [0], [0], [1], [0, 0, 1, 1], [], []>} : vector<8x32xbf16>, vector<32x128xbf16>, vector<8x128xf32> -> vector<8x128xf32>
    %463 = arith.addf %459, %462 : vector<8x128xf32>
    %464 = arith.index_cast %456 : i32 to index
    %c0_120 = arith.constant 0 : index
    %c128_121 = arith.constant 128 : index
    %465 = vector.load %arg10[%464, %c0_120, %c128_121] : memref<8x8x256xf32, #tpu.memory_space<vmem>>, vector<1x8x128xf32>
    %466 = vector.shape_cast %465 : vector<1x8x128xf32> to vector<8x128xf32>
    %467 = arith.truncf %444 : vector<8x32xf32> to vector<8x32xbf16>
    %c0_122 = arith.constant 0 : index
    %c0_123 = arith.constant 0 : index
    %468 = vector.load %arg5[%c0_122, %c0_123] : memref<32x128xbf16, #tpu.memory_space<vmem>>, vector<32x128xbf16>
    %cst_124 = arith.constant dense<0.000000e+00> : vector<8x128xf32>
    %469 = tpu.matmul %467, %468, %cst_124 {dimension_numbers = #tpu.dot_dimension_numbers<[1], [0], [0], [1], [0, 0, 1, 1], [], []>} : vector<8x32xbf16>, vector<32x128xbf16>, vector<8x128xf32> -> vector<8x128xf32>
    %470 = arith.addf %466, %469 : vector<8x128xf32>
    %471 = vector.broadcast %c5_i32 : i32 to vector<8x1xi32>
    %472 = arith.cmpi slt, %471, %9 : vector<8x1xi32>
    %473 = vector.broadcast %456 : i32 to vector<8x1xi32>
    %474 = arith.cmpi slt, %473, %9 : vector<8x1xi32>
    %475 = vector.extract_strided_slice %463 {offsets = [0, 0], sizes = [8, 32], strides = [1, 1]} : vector<8x128xf32> to vector<8x32xf32>
    %476 = arith.negf %475 : vector<8x32xf32>
    %477 = math.exp %476 : vector<8x32xf32>
    %cst_125 = arith.constant 1.000000e+00 : f32
    %478 = vector.broadcast %cst_125 : f32 to vector<8x32xf32>
    %479 = arith.addf %478, %477 : vector<8x32xf32>
    %480 = arith.divf %478, %479 : vector<8x32xf32>
    %481 = vector.extract_strided_slice %463 {offsets = [0, 32], sizes = [8, 32], strides = [1, 1]} : vector<8x128xf32> to vector<8x32xf32>
    %482 = arith.negf %481 : vector<8x32xf32>
    %483 = math.exp %482 : vector<8x32xf32>
    %cst_126 = arith.constant 1.000000e+00 : f32
    %484 = vector.broadcast %cst_126 : f32 to vector<8x32xf32>
    %485 = arith.addf %484, %483 : vector<8x32xf32>
    %486 = arith.divf %484, %485 : vector<8x32xf32>
    %487 = vector.extract_strided_slice %463 {offsets = [0, 64], sizes = [8, 32], strides = [1, 1]} : vector<8x128xf32> to vector<8x32xf32>
    %488 = math.tanh %487 : vector<8x32xf32>
    %489 = vector.extract_strided_slice %463 {offsets = [0, 96], sizes = [8, 32], strides = [1, 1]} : vector<8x128xf32> to vector<8x32xf32>
    %490 = arith.negf %489 : vector<8x32xf32>
    %491 = math.exp %490 : vector<8x32xf32>
    %cst_127 = arith.constant 1.000000e+00 : f32
    %492 = vector.broadcast %cst_127 : f32 to vector<8x32xf32>
    %493 = arith.addf %492, %491 : vector<8x32xf32>
    %494 = arith.divf %492, %493 : vector<8x32xf32>
    %495 = arith.mulf %486, %416 : vector<8x32xf32>
    %496 = arith.mulf %480, %488 : vector<8x32xf32>
    %497 = arith.addf %495, %496 : vector<8x32xf32>
    %498 = math.tanh %497 : vector<8x32xf32>
    %499 = arith.mulf %494, %498 : vector<8x32xf32>
    %500 = vector.shape_cast %472 : vector<8x1xi1> to vector<8x1xi1>
    %501 = vector.broadcast %500 : vector<8x1xi1> to vector<8x32xi1>
    %502 = arith.select %501, %499, %413 : vector<8x32xi1>, vector<8x32xf32>
    %503 = vector.shape_cast %472 : vector<8x1xi1> to vector<8x1xi1>
    %504 = vector.broadcast %503 : vector<8x1xi1> to vector<8x32xi1>
    %505 = arith.select %504, %497, %416 : vector<8x32xi1>, vector<8x32xf32>
    %506 = vector.extract_strided_slice %470 {offsets = [0, 0], sizes = [8, 32], strides = [1, 1]} : vector<8x128xf32> to vector<8x32xf32>
    %507 = arith.negf %506 : vector<8x32xf32>
    %508 = math.exp %507 : vector<8x32xf32>
    %cst_128 = arith.constant 1.000000e+00 : f32
    %509 = vector.broadcast %cst_128 : f32 to vector<8x32xf32>
    %510 = arith.addf %509, %508 : vector<8x32xf32>
    %511 = arith.divf %509, %510 : vector<8x32xf32>
    %512 = vector.extract_strided_slice %470 {offsets = [0, 32], sizes = [8, 32], strides = [1, 1]} : vector<8x128xf32> to vector<8x32xf32>
    %513 = arith.negf %512 : vector<8x32xf32>
    %514 = math.exp %513 : vector<8x32xf32>
    %cst_129 = arith.constant 1.000000e+00 : f32
    %515 = vector.broadcast %cst_129 : f32 to vector<8x32xf32>
    %516 = arith.addf %515, %514 : vector<8x32xf32>
    %517 = arith.divf %515, %516 : vector<8x32xf32>
    %518 = vector.extract_strided_slice %470 {offsets = [0, 64], sizes = [8, 32], strides = [1, 1]} : vector<8x128xf32> to vector<8x32xf32>
    %519 = math.tanh %518 : vector<8x32xf32>
    %520 = vector.extract_strided_slice %470 {offsets = [0, 96], sizes = [8, 32], strides = [1, 1]} : vector<8x128xf32> to vector<8x32xf32>
    %521 = arith.negf %520 : vector<8x32xf32>
    %522 = math.exp %521 : vector<8x32xf32>
    %cst_130 = arith.constant 1.000000e+00 : f32
    %523 = vector.broadcast %cst_130 : f32 to vector<8x32xf32>
    %524 = arith.addf %523, %522 : vector<8x32xf32>
    %525 = arith.divf %523, %524 : vector<8x32xf32>
    %526 = arith.mulf %517, %447 : vector<8x32xf32>
    %527 = arith.mulf %511, %519 : vector<8x32xf32>
    %528 = arith.addf %526, %527 : vector<8x32xf32>
    %529 = math.tanh %528 : vector<8x32xf32>
    %530 = arith.mulf %525, %529 : vector<8x32xf32>
    %531 = vector.shape_cast %474 : vector<8x1xi1> to vector<8x1xi1>
    %532 = vector.broadcast %531 : vector<8x1xi1> to vector<8x32xi1>
    %533 = arith.select %532, %530, %444 : vector<8x32xi1>, vector<8x32xf32>
    %534 = vector.shape_cast %474 : vector<8x1xi1> to vector<8x1xi1>
    %535 = vector.broadcast %534 : vector<8x1xi1> to vector<8x32xi1>
    %536 = arith.select %535, %528, %447 : vector<8x32xi1>, vector<8x32xf32>
    %537 = arith.index_cast %c5_i32 : i32 to index
    %c0_131 = arith.constant 0 : index
    %c0_132 = arith.constant 0 : index
    %538 = vector.load %arg7[%537, %c0_131, %c0_132] : memref<8x8x64xf32, #tpu.memory_space<vmem>>, vector<1x8x32xf32>
    %539 = vector.shape_cast %538 : vector<1x8x32xf32> to vector<8x32xf32>
    %540 = vector.shape_cast %499 : vector<8x32xf32> to vector<1x8x32xf32>
    tpu.vector_store %arg7[%537, %c0_131, %c0_132], %540 {strides = array<i32>} : memref<8x8x64xf32, #tpu.memory_space<vmem>>, vector<1x8x32xf32>,
    %541 = arith.index_cast %456 : i32 to index
    %c0_133 = arith.constant 0 : index
    %c32_134 = arith.constant 32 : index
    %542 = vector.load %arg7[%541, %c0_133, %c32_134] : memref<8x8x64xf32, #tpu.memory_space<vmem>>, vector<1x8x32xf32>
    %543 = vector.shape_cast %542 : vector<1x8x32xf32> to vector<8x32xf32>
    %544 = vector.shape_cast %530 : vector<8x32xf32> to vector<1x8x32xf32>
    tpu.vector_store %arg7[%541, %c0_133, %c32_134], %544 {strides = array<i32>} : memref<8x8x64xf32, #tpu.memory_space<vmem>>, vector<1x8x32xf32>,
    %c6_i32 = arith.constant 6 : i32
    %c7_i32_135 = arith.constant 7 : i32
    %545 = arith.subi %c7_i32_135, %c6_i32 : i32
    %546 = arith.index_cast %c6_i32 : i32 to index
    %c0_136 = arith.constant 0 : index
    %c0_137 = arith.constant 0 : index
    %547 = vector.load %arg10[%546, %c0_136, %c0_137] : memref<8x8x256xf32, #tpu.memory_space<vmem>>, vector<1x8x128xf32>
    %548 = vector.shape_cast %547 : vector<1x8x128xf32> to vector<8x128xf32>
    %549 = arith.truncf %502 : vector<8x32xf32> to vector<8x32xbf16>
    %c0_138 = arith.constant 0 : index
    %c0_139 = arith.constant 0 : index
    %550 = vector.load %arg4[%c0_138, %c0_139] : memref<32x128xbf16, #tpu.memory_space<vmem>>, vector<32x128xbf16>
    %cst_140 = arith.constant dense<0.000000e+00> : vector<8x128xf32>
    %551 = tpu.matmul %549, %550, %cst_140 {dimension_numbers = #tpu.dot_dimension_numbers<[1], [0], [0], [1], [0, 0, 1, 1], [], []>} : vector<8x32xbf16>, vector<32x128xbf16>, vector<8x128xf32> -> vector<8x128xf32>
    %552 = arith.addf %548, %551 : vector<8x128xf32>
    %553 = arith.index_cast %545 : i32 to index
    %c0_141 = arith.constant 0 : index
    %c128_142 = arith.constant 128 : index
    %554 = vector.load %arg10[%553, %c0_141, %c128_142] : memref<8x8x256xf32, #tpu.memory_space<vmem>>, vector<1x8x128xf32>
    %555 = vector.shape_cast %554 : vector<1x8x128xf32> to vector<8x128xf32>
    %556 = arith.truncf %533 : vector<8x32xf32> to vector<8x32xbf16>
    %c0_143 = arith.constant 0 : index
    %c0_144 = arith.constant 0 : index
    %557 = vector.load %arg5[%c0_143, %c0_144] : memref<32x128xbf16, #tpu.memory_space<vmem>>, vector<32x128xbf16>
    %cst_145 = arith.constant dense<0.000000e+00> : vector<8x128xf32>
    %558 = tpu.matmul %556, %557, %cst_145 {dimension_numbers = #tpu.dot_dimension_numbers<[1], [0], [0], [1], [0, 0, 1, 1], [], []>} : vector<8x32xbf16>, vector<32x128xbf16>, vector<8x128xf32> -> vector<8x128xf32>
    %559 = arith.addf %555, %558 : vector<8x128xf32>
    %560 = vector.broadcast %c6_i32 : i32 to vector<8x1xi32>
    %561 = arith.cmpi slt, %560, %9 : vector<8x1xi32>
    %562 = vector.broadcast %545 : i32 to vector<8x1xi32>
    %563 = arith.cmpi slt, %562, %9 : vector<8x1xi32>
    %564 = vector.extract_strided_slice %552 {offsets = [0, 0], sizes = [8, 32], strides = [1, 1]} : vector<8x128xf32> to vector<8x32xf32>
    %565 = arith.negf %564 : vector<8x32xf32>
    %566 = math.exp %565 : vector<8x32xf32>
    %cst_146 = arith.constant 1.000000e+00 : f32
    %567 = vector.broadcast %cst_146 : f32 to vector<8x32xf32>
    %568 = arith.addf %567, %566 : vector<8x32xf32>
    %569 = arith.divf %567, %568 : vector<8x32xf32>
    %570 = vector.extract_strided_slice %552 {offsets = [0, 32], sizes = [8, 32], strides = [1, 1]} : vector<8x128xf32> to vector<8x32xf32>
    %571 = arith.negf %570 : vector<8x32xf32>
    %572 = math.exp %571 : vector<8x32xf32>
    %cst_147 = arith.constant 1.000000e+00 : f32
    %573 = vector.broadcast %cst_147 : f32 to vector<8x32xf32>
    %574 = arith.addf %573, %572 : vector<8x32xf32>
    %575 = arith.divf %573, %574 : vector<8x32xf32>
    %576 = vector.extract_strided_slice %552 {offsets = [0, 64], sizes = [8, 32], strides = [1, 1]} : vector<8x128xf32> to vector<8x32xf32>
    %577 = math.tanh %576 : vector<8x32xf32>
    %578 = vector.extract_strided_slice %552 {offsets = [0, 96], sizes = [8, 32], strides = [1, 1]} : vector<8x128xf32> to vector<8x32xf32>
    %579 = arith.negf %578 : vector<8x32xf32>
    %580 = math.exp %579 : vector<8x32xf32>
    %cst_148 = arith.constant 1.000000e+00 : f32
    %581 = vector.broadcast %cst_148 : f32 to vector<8x32xf32>
    %582 = arith.addf %581, %580 : vector<8x32xf32>
    %583 = arith.divf %581, %582 : vector<8x32xf32>
    %584 = arith.mulf %575, %505 : vector<8x32xf32>
    %585 = arith.mulf %569, %577 : vector<8x32xf32>
    %586 = arith.addf %584, %585 : vector<8x32xf32>
    %587 = math.tanh %586 : vector<8x32xf32>
    %588 = arith.mulf %583, %587 : vector<8x32xf32>
    %589 = vector.shape_cast %561 : vector<8x1xi1> to vector<8x1xi1>
    %590 = vector.broadcast %589 : vector<8x1xi1> to vector<8x32xi1>
    %591 = arith.select %590, %588, %502 : vector<8x32xi1>, vector<8x32xf32>
    %592 = vector.shape_cast %561 : vector<8x1xi1> to vector<8x1xi1>
    %593 = vector.broadcast %592 : vector<8x1xi1> to vector<8x32xi1>
    %594 = arith.select %593, %586, %505 : vector<8x32xi1>, vector<8x32xf32>
    %595 = vector.extract_strided_slice %559 {offsets = [0, 0], sizes = [8, 32], strides = [1, 1]} : vector<8x128xf32> to vector<8x32xf32>
    %596 = arith.negf %595 : vector<8x32xf32>
    %597 = math.exp %596 : vector<8x32xf32>
    %cst_149 = arith.constant 1.000000e+00 : f32
    %598 = vector.broadcast %cst_149 : f32 to vector<8x32xf32>
    %599 = arith.addf %598, %597 : vector<8x32xf32>
    %600 = arith.divf %598, %599 : vector<8x32xf32>
    %601 = vector.extract_strided_slice %559 {offsets = [0, 32], sizes = [8, 32], strides = [1, 1]} : vector<8x128xf32> to vector<8x32xf32>
    %602 = arith.negf %601 : vector<8x32xf32>
    %603 = math.exp %602 : vector<8x32xf32>
    %cst_150 = arith.constant 1.000000e+00 : f32
    %604 = vector.broadcast %cst_150 : f32 to vector<8x32xf32>
    %605 = arith.addf %604, %603 : vector<8x32xf32>
    %606 = arith.divf %604, %605 : vector<8x32xf32>
    %607 = vector.extract_strided_slice %559 {offsets = [0, 64], sizes = [8, 32], strides = [1, 1]} : vector<8x128xf32> to vector<8x32xf32>
    %608 = math.tanh %607 : vector<8x32xf32>
    %609 = vector.extract_strided_slice %559 {offsets = [0, 96], sizes = [8, 32], strides = [1, 1]} : vector<8x128xf32> to vector<8x32xf32>
    %610 = arith.negf %609 : vector<8x32xf32>
    %611 = math.exp %610 : vector<8x32xf32>
    %cst_151 = arith.constant 1.000000e+00 : f32
    %612 = vector.broadcast %cst_151 : f32 to vector<8x32xf32>
    %613 = arith.addf %612, %611 : vector<8x32xf32>
    %614 = arith.divf %612, %613 : vector<8x32xf32>
    %615 = arith.mulf %606, %536 : vector<8x32xf32>
    %616 = arith.mulf %600, %608 : vector<8x32xf32>
    %617 = arith.addf %615, %616 : vector<8x32xf32>
    %618 = math.tanh %617 : vector<8x32xf32>
    %619 = arith.mulf %614, %618 : vector<8x32xf32>
    %620 = vector.shape_cast %563 : vector<8x1xi1> to vector<8x1xi1>
    %621 = vector.broadcast %620 : vector<8x1xi1> to vector<8x32xi1>
    %622 = arith.select %621, %619, %533 : vector<8x32xi1>, vector<8x32xf32>
    %623 = vector.shape_cast %563 : vector<8x1xi1> to vector<8x1xi1>
    %624 = vector.broadcast %623 : vector<8x1xi1> to vector<8x32xi1>
    %625 = arith.select %624, %617, %536 : vector<8x32xi1>, vector<8x32xf32>
    %626 = arith.index_cast %c6_i32 : i32 to index
    %c0_152 = arith.constant 0 : index
    %c0_153 = arith.constant 0 : index
    %627 = vector.load %arg7[%626, %c0_152, %c0_153] : memref<8x8x64xf32, #tpu.memory_space<vmem>>, vector<1x8x32xf32>
    %628 = vector.shape_cast %627 : vector<1x8x32xf32> to vector<8x32xf32>
    %629 = vector.shape_cast %588 : vector<8x32xf32> to vector<1x8x32xf32>
    tpu.vector_store %arg7[%626, %c0_152, %c0_153], %629 {strides = array<i32>} : memref<8x8x64xf32, #tpu.memory_space<vmem>>, vector<1x8x32xf32>,
    %630 = arith.index_cast %545 : i32 to index
    %c0_154 = arith.constant 0 : index
    %c32_155 = arith.constant 32 : index
    %631 = vector.load %arg7[%630, %c0_154, %c32_155] : memref<8x8x64xf32, #tpu.memory_space<vmem>>, vector<1x8x32xf32>
    %632 = vector.shape_cast %631 : vector<1x8x32xf32> to vector<8x32xf32>
    %633 = vector.shape_cast %619 : vector<8x32xf32> to vector<1x8x32xf32>
    tpu.vector_store %arg7[%630, %c0_154, %c32_155], %633 {strides = array<i32>} : memref<8x8x64xf32, #tpu.memory_space<vmem>>, vector<1x8x32xf32>,
    %c7_i32_156 = arith.constant 7 : i32
    %c7_i32_157 = arith.constant 7 : i32
    %634 = arith.subi %c7_i32_157, %c7_i32_156 : i32
    %635 = arith.index_cast %c7_i32_156 : i32 to index
    %c0_158 = arith.constant 0 : index
    %c0_159 = arith.constant 0 : index
    %636 = vector.load %arg10[%635, %c0_158, %c0_159] : memref<8x8x256xf32, #tpu.memory_space<vmem>>, vector<1x8x128xf32>
    %637 = vector.shape_cast %636 : vector<1x8x128xf32> to vector<8x128xf32>
    %638 = arith.truncf %591 : vector<8x32xf32> to vector<8x32xbf16>
    %c0_160 = arith.constant 0 : index
    %c0_161 = arith.constant 0 : index
    %639 = vector.load %arg4[%c0_160, %c0_161] : memref<32x128xbf16, #tpu.memory_space<vmem>>, vector<32x128xbf16>
    %cst_162 = arith.constant dense<0.000000e+00> : vector<8x128xf32>
    %640 = tpu.matmul %638, %639, %cst_162 {dimension_numbers = #tpu.dot_dimension_numbers<[1], [0], [0], [1], [0, 0, 1, 1], [], []>} : vector<8x32xbf16>, vector<32x128xbf16>, vector<8x128xf32> -> vector<8x128xf32>
    %641 = arith.addf %637, %640 : vector<8x128xf32>
    %642 = arith.index_cast %634 : i32 to index
    %c0_163 = arith.constant 0 : index
    %c128_164 = arith.constant 128 : index
    %643 = vector.load %arg10[%642, %c0_163, %c128_164] : memref<8x8x256xf32, #tpu.memory_space<vmem>>, vector<1x8x128xf32>
    %644 = vector.shape_cast %643 : vector<1x8x128xf32> to vector<8x128xf32>
    %645 = arith.truncf %622 : vector<8x32xf32> to vector<8x32xbf16>
    %c0_165 = arith.constant 0 : index
    %c0_166 = arith.constant 0 : index
    %646 = vector.load %arg5[%c0_165, %c0_166] : memref<32x128xbf16, #tpu.memory_space<vmem>>, vector<32x128xbf16>
    %cst_167 = arith.constant dense<0.000000e+00> : vector<8x128xf32>
    %647 = tpu.matmul %645, %646, %cst_167 {dimension_numbers = #tpu.dot_dimension_numbers<[1], [0], [0], [1], [0, 0, 1, 1], [], []>} : vector<8x32xbf16>, vector<32x128xbf16>, vector<8x128xf32> -> vector<8x128xf32>
    %648 = arith.addf %644, %647 : vector<8x128xf32>
    %649 = vector.broadcast %c7_i32_156 : i32 to vector<8x1xi32>
    %650 = arith.cmpi slt, %649, %9 : vector<8x1xi32>
    %651 = vector.broadcast %634 : i32 to vector<8x1xi32>
    %652 = arith.cmpi slt, %651, %9 : vector<8x1xi32>
    %653 = vector.extract_strided_slice %641 {offsets = [0, 0], sizes = [8, 32], strides = [1, 1]} : vector<8x128xf32> to vector<8x32xf32>
    %654 = arith.negf %653 : vector<8x32xf32>
    %655 = math.exp %654 : vector<8x32xf32>
    %cst_168 = arith.constant 1.000000e+00 : f32
    %656 = vector.broadcast %cst_168 : f32 to vector<8x32xf32>
    %657 = arith.addf %656, %655 : vector<8x32xf32>
    %658 = arith.divf %656, %657 : vector<8x32xf32>
    %659 = vector.extract_strided_slice %641 {offsets = [0, 32], sizes = [8, 32], strides = [1, 1]} : vector<8x128xf32> to vector<8x32xf32>
    %660 = arith.negf %659 : vector<8x32xf32>
    %661 = math.exp %660 : vector<8x32xf32>
    %cst_169 = arith.constant 1.000000e+00 : f32
    %662 = vector.broadcast %cst_169 : f32 to vector<8x32xf32>
    %663 = arith.addf %662, %661 : vector<8x32xf32>
    %664 = arith.divf %662, %663 : vector<8x32xf32>
    %665 = vector.extract_strided_slice %641 {offsets = [0, 64], sizes = [8, 32], strides = [1, 1]} : vector<8x128xf32> to vector<8x32xf32>
    %666 = math.tanh %665 : vector<8x32xf32>
    %667 = vector.extract_strided_slice %641 {offsets = [0, 96], sizes = [8, 32], strides = [1, 1]} : vector<8x128xf32> to vector<8x32xf32>
    %668 = arith.negf %667 : vector<8x32xf32>
    %669 = math.exp %668 : vector<8x32xf32>
    %cst_170 = arith.constant 1.000000e+00 : f32
    %670 = vector.broadcast %cst_170 : f32 to vector<8x32xf32>
    %671 = arith.addf %670, %669 : vector<8x32xf32>
    %672 = arith.divf %670, %671 : vector<8x32xf32>
    %673 = arith.mulf %664, %594 : vector<8x32xf32>
    %674 = arith.mulf %658, %666 : vector<8x32xf32>
    %675 = arith.addf %673, %674 : vector<8x32xf32>
    %676 = math.tanh %675 : vector<8x32xf32>
    %677 = arith.mulf %672, %676 : vector<8x32xf32>
    %678 = vector.shape_cast %650 : vector<8x1xi1> to vector<8x1xi1>
    %679 = vector.broadcast %678 : vector<8x1xi1> to vector<8x32xi1>
    %680 = arith.select %679, %677, %591 : vector<8x32xi1>, vector<8x32xf32>
    %681 = vector.shape_cast %650 : vector<8x1xi1> to vector<8x1xi1>
    %682 = vector.broadcast %681 : vector<8x1xi1> to vector<8x32xi1>
    %683 = arith.select %682, %675, %594 : vector<8x32xi1>, vector<8x32xf32>
    %684 = vector.extract_strided_slice %648 {offsets = [0, 0], sizes = [8, 32], strides = [1, 1]} : vector<8x128xf32> to vector<8x32xf32>
    %685 = arith.negf %684 : vector<8x32xf32>
    %686 = math.exp %685 : vector<8x32xf32>
    %cst_171 = arith.constant 1.000000e+00 : f32
    %687 = vector.broadcast %cst_171 : f32 to vector<8x32xf32>
    %688 = arith.addf %687, %686 : vector<8x32xf32>
    %689 = arith.divf %687, %688 : vector<8x32xf32>
    %690 = vector.extract_strided_slice %648 {offsets = [0, 32], sizes = [8, 32], strides = [1, 1]} : vector<8x128xf32> to vector<8x32xf32>
    %691 = arith.negf %690 : vector<8x32xf32>
    %692 = math.exp %691 : vector<8x32xf32>
    %cst_172 = arith.constant 1.000000e+00 : f32
    %693 = vector.broadcast %cst_172 : f32 to vector<8x32xf32>
    %694 = arith.addf %693, %692 : vector<8x32xf32>
    %695 = arith.divf %693, %694 : vector<8x32xf32>
    %696 = vector.extract_strided_slice %648 {offsets = [0, 64], sizes = [8, 32], strides = [1, 1]} : vector<8x128xf32> to vector<8x32xf32>
    %697 = math.tanh %696 : vector<8x32xf32>
    %698 = vector.extract_strided_slice %648 {offsets = [0, 96], sizes = [8, 32], strides = [1, 1]} : vector<8x128xf32> to vector<8x32xf32>
    %699 = arith.negf %698 : vector<8x32xf32>
    %700 = math.exp %699 : vector<8x32xf32>
    %cst_173 = arith.constant 1.000000e+00 : f32
    %701 = vector.broadcast %cst_173 : f32 to vector<8x32xf32>
    %702 = arith.addf %701, %700 : vector<8x32xf32>
    %703 = arith.divf %701, %702 : vector<8x32xf32>
    %704 = arith.mulf %695, %625 : vector<8x32xf32>
    %705 = arith.mulf %689, %697 : vector<8x32xf32>
    %706 = arith.addf %704, %705 : vector<8x32xf32>
    %707 = math.tanh %706 : vector<8x32xf32>
    %708 = arith.mulf %703, %707 : vector<8x32xf32>
    %709 = vector.shape_cast %652 : vector<8x1xi1> to vector<8x1xi1>
    %710 = vector.broadcast %709 : vector<8x1xi1> to vector<8x32xi1>
    %711 = arith.select %710, %708, %622 : vector<8x32xi1>, vector<8x32xf32>
    %712 = vector.shape_cast %652 : vector<8x1xi1> to vector<8x1xi1>
    %713 = vector.broadcast %712 : vector<8x1xi1> to vector<8x32xi1>
    %714 = arith.select %713, %706, %625 : vector<8x32xi1>, vector<8x32xf32>
    %715 = arith.index_cast %c7_i32_156 : i32 to index
    %c0_174 = arith.constant 0 : index
    %c0_175 = arith.constant 0 : index
    %716 = vector.load %arg7[%715, %c0_174, %c0_175] : memref<8x8x64xf32, #tpu.memory_space<vmem>>, vector<1x8x32xf32>
    %717 = vector.shape_cast %716 : vector<1x8x32xf32> to vector<8x32xf32>
    %718 = vector.shape_cast %677 : vector<8x32xf32> to vector<1x8x32xf32>
    tpu.vector_store %arg7[%715, %c0_174, %c0_175], %718 {strides = array<i32>} : memref<8x8x64xf32, #tpu.memory_space<vmem>>, vector<1x8x32xf32>,
    %719 = arith.index_cast %634 : i32 to index
    %c0_176 = arith.constant 0 : index
    %c32_177 = arith.constant 32 : index
    %720 = vector.load %arg7[%719, %c0_176, %c32_177] : memref<8x8x64xf32, #tpu.memory_space<vmem>>, vector<1x8x32xf32>
    %721 = vector.shape_cast %720 : vector<1x8x32xf32> to vector<8x32xf32>
    %722 = vector.shape_cast %708 : vector<8x32xf32> to vector<1x8x32xf32>
    tpu.vector_store %arg7[%719, %c0_176, %c32_177], %722 {strides = array<i32>} : memref<8x8x64xf32, #tpu.memory_space<vmem>>, vector<1x8x32xf32>,
    %c8_i32 = arith.constant 8 : i32
    %c0_178 = arith.constant 0 : index
    %c0_179 = arith.constant 0 : index
    %c0_180 = arith.constant 0 : index
    %723 = vector.load %arg8[%c0_178, %c0_179, %c0_180] : memref<2x8x32xf32, #tpu.memory_space<vmem>>, vector<1x8x32xf32>
    %724 = vector.shape_cast %723 : vector<1x8x32xf32> to vector<8x32xf32>
    %725 = vector.shape_cast %680 : vector<8x32xf32> to vector<1x8x32xf32>
    tpu.vector_store %arg8[%c0_178, %c0_179, %c0_180], %725 {strides = array<i32>} : memref<2x8x32xf32, #tpu.memory_space<vmem>>, vector<1x8x32xf32>,
    %c1 = arith.constant 1 : index
    %c0_181 = arith.constant 0 : index
    %c0_182 = arith.constant 0 : index
    %726 = vector.load %arg8[%c1, %c0_181, %c0_182] : memref<2x8x32xf32, #tpu.memory_space<vmem>>, vector<1x8x32xf32>
    %727 = vector.shape_cast %726 : vector<1x8x32xf32> to vector<8x32xf32>
    %728 = vector.shape_cast %711 : vector<8x32xf32> to vector<1x8x32xf32>
    tpu.vector_store %arg8[%c1, %c0_181, %c0_182], %728 {strides = array<i32>} : memref<2x8x32xf32, #tpu.memory_space<vmem>>, vector<1x8x32xf32>,
    %c0_183 = arith.constant 0 : index
    %c0_184 = arith.constant 0 : index
    %c0_185 = arith.constant 0 : index
    %729 = vector.load %arg9[%c0_183, %c0_184, %c0_185] : memref<2x8x32xf32, #tpu.memory_space<vmem>>, vector<1x8x32xf32>
    %730 = vector.shape_cast %729 : vector<1x8x32xf32> to vector<8x32xf32>
    %731 = vector.shape_cast %683 : vector<8x32xf32> to vector<1x8x32xf32>
    tpu.vector_store %arg9[%c0_183, %c0_184, %c0_185], %731 {strides = array<i32>} : memref<2x8x32xf32, #tpu.memory_space<vmem>>, vector<1x8x32xf32>,
    %c1_186 = arith.constant 1 : index
    %c0_187 = arith.constant 0 : index
    %c0_188 = arith.constant 0 : index
    %732 = vector.load %arg9[%c1_186, %c0_187, %c0_188] : memref<2x8x32xf32, #tpu.memory_space<vmem>>, vector<1x8x32xf32>
    %733 = vector.shape_cast %732 : vector<1x8x32xf32> to vector<8x32xf32>
    %734 = vector.shape_cast %714 : vector<8x32xf32> to vector<1x8x32xf32>
    tpu.vector_store %arg9[%c1_186, %c0_187, %c0_188], %734 {strides = array<i32>} : memref<2x8x32xf32, #tpu.memory_space<vmem>>, vector<1x8x32xf32>,
    %735 = tpu.iota {dimensions = array<i32: 0>} : vector<8x8x1xi32>
    %736 = vector.shape_cast %9 : vector<8x1xi32> to vector<1x8x1xi32>
    %737 = vector.broadcast %736 : vector<1x8x1xi32> to vector<8x8x1xi32>
    %738 = arith.cmpi slt, %735, %737 : vector<8x8x1xi32>
    %c0_189 = arith.constant 0 : index
    %c0_190 = arith.constant 0 : index
    %c0_191 = arith.constant 0 : index
    %739 = vector.load %arg7[%c0_189, %c0_190, %c0_191] : memref<8x8x64xf32, #tpu.memory_space<vmem>>, vector<8x8x64xf32>
    %cst_192 = arith.constant 0.000000e+00 : f32
    %740 = vector.shape_cast %738 : vector<8x8x1xi1> to vector<8x8x1xi1>
    %741 = vector.broadcast %740 : vector<8x8x1xi1> to vector<8x8x64xi1>
    %742 = vector.broadcast %cst_192 : f32 to vector<8x8x64xf32>
    %743 = arith.select %741, %739, %742 : vector<8x8x64xi1>, vector<8x8x64xf32>
    %c0_193 = arith.constant 0 : index
    %c0_194 = arith.constant 0 : index
    %c0_195 = arith.constant 0 : index
    %744 = vector.load %arg7[%c0_193, %c0_194, %c0_195] : memref<8x8x64xf32, #tpu.memory_space<vmem>>, vector<8x8x64xf32>
    tpu.vector_store %arg7[%c0_193, %c0_194, %c0_195], %743 {strides = array<i32>} : memref<8x8x64xf32, #tpu.memory_space<vmem>>, vector<8x8x64xf32>,
    return
  }
  func.func @transform_0(%arg0: i32) -> (i32, i32, i32) {
    %c0_i32 = arith.constant 0 : i32
    %c0_i32_0 = arith.constant 0 : i32
    %c0_i32_1 = arith.constant 0 : i32
    %c0_i32_2 = arith.constant 0 : i32
    return %c0_i32, %c0_i32_0, %c0_i32_1 : i32, i32, i32
  }
  func.func @transform_1(%arg0: i32) -> (i32, i32) {
    %c0_i32 = arith.constant 0 : i32
    %c0_i32_0 = arith.constant 0 : i32
    %c0_i32_1 = arith.constant 0 : i32
    return %c0_i32, %c0_i32_0 : i32, i32
  }
  func.func @transform_2(%arg0: i32) -> (i32, i32) {
    %c0_i32 = arith.constant 0 : i32
    %c0_i32_0 = arith.constant 0 : i32
    %c0_i32_1 = arith.constant 0 : i32
    return %c0_i32, %c0_i32_0 : i32, i32
  }
  func.func @transform_3(%arg0: i32) -> (i32, i32) {
    %c0_i32 = arith.constant 0 : i32
    %c0_i32_0 = arith.constant 0 : i32
    %c0_i32_1 = arith.constant 0 : i32
    return %c0_i32, %c0_i32_0 : i32, i32
  }
  func.func @transform_4(%arg0: i32) -> (i32, i32) {
    %c0_i32 = arith.constant 0 : i32
    %c0_i32_0 = arith.constant 0 : i32
    %c0_i32_1 = arith.constant 0 : i32
    return %c0_i32, %c0_i32_0 : i32, i32
  }
  func.func @transform_5(%arg0: i32) -> (i32, i32) {
    %c0_i32 = arith.constant 0 : i32
    %c0_i32_0 = arith.constant 0 : i32
    %c0_i32_1 = arith.constant 0 : i32
    return %c0_i32, %c0_i32_0 : i32, i32
  }
  func.func @transform_6(%arg0: i32) -> (i32, i32, i32) {
    %c0_i32 = arith.constant 0 : i32
    %c0_i32_0 = arith.constant 0 : i32
    %c0_i32_1 = arith.constant 0 : i32
    %c0_i32_2 = arith.constant 0 : i32
    return %c0_i32, %c0_i32_0, %c0_i32_1 : i32, i32, i32
  }
  func.func @transform_7(%arg0: i32) -> (i32, i32, i32) {
    %c0_i32 = arith.constant 0 : i32
    %c0_i32_0 = arith.constant 0 : i32
    %c0_i32_1 = arith.constant 0 : i32
    %c0_i32_2 = arith.constant 0 : i32
    return %c0_i32, %c0_i32_0, %c0_i32_1 : i32, i32, i32
  }
  func.func @transform_8(%arg0: i32) -> (i32, i32, i32) {
    %c0_i32 = arith.constant 0 : i32
    %c0_i32_0 = arith.constant 0 : i32
    %c0_i32_1 = arith.constant 0 : i32
    %c0_i32_2 = arith.constant 0 : i32
    return %c0_i32, %c0_i32_0, %c0_i32_1 : i32, i32, i32
  }
}

</mosaic_0001>

<llo_original>
// kernel: tpu_custom_call.1
$region0: #{tpu_custom_call.1}
  #allocation0 [shape = 'u32[]', space=smem, size = 0x4, offset = 0x4, fixed_abs, tag = 'smem constant byte address 0x4 - core index']
  #allocation1 [shape = 'u32[144,128]{1,0:T(1,128)}', space=vmem, size = 0x12000, scoped, tag = 'internal scratch']
  #allocation2 [shape = 'f32[8,8,256]{2,1,0:T(8,128)}', space=vmem, size = 0x10000, scoped, tag = 'scratch operand']
  %s0 = inlined_call_operand.vmem [shape: bf16[8,8,5], index: 0, kind: input, shape index: {}]
  %s1 = inlined_call_operand.vmem [shape: s32[8,1], index: 1, kind: input, shape index: {}]
  %s2 = inlined_call_operand.vmem [shape: bf16[5,256], index: 2, kind: input, shape index: {}]
  %s3 = inlined_call_operand.vmem [shape: bf16[32,128], index: 3, kind: input, shape index: {}]
  %s4 = inlined_call_operand.vmem [shape: bf16[32,128], index: 4, kind: input, shape index: {}]
  %s5 = inlined_call_operand.vmem [shape: f32[1,256], index: 5, kind: input, shape index: {}]
  %s6 = inlined_call_operand.hbm [shape: f32[8,8,64], index: 6, kind: output, shape index: {0}]
  %s7 = inlined_call_operand.hbm [shape: f32[2,8,32], index: 7, kind: output, shape index: {1}]
  %s8 = inlined_call_operand.hbm [shape: f32[2,8,32], index: 8, kind: output, shape index: {2}]
  %9 = xla_tuple %s6, %s7, %s8
  %s10 = sld [smem:[#allocation0]]
  $region50: #{tpu_custom_call.1} parent=0
    _
  %s12 = ssub.s32 1, %s10
  %s13 = scalar_select 0, %s12, %s10
  $region1: #{tpu_custom_call.1} parent=0
    #allocation3 [shape = 'u8[32768]{0}', space=vmem, size = 0x8000, scoped, tag = 'output window, operand 0, single buffered']
    #allocation4 [shape = 's32[1]{0}', space=sflag, size = 0x4, scoped, tag = 'scoped memory for tpu_custom_call.1']
    #allocation5 [shape = 'u8[8192]{0}', space=vmem, size = 0x2000, scoped, tag = 'output window, operand 1, single buffered']
    #allocation6 [shape = 's32[1]{0}', space=sflag, size = 0x4, scoped, tag = 'scoped memory for tpu_custom_call.1']
    #allocation7 [shape = 'u8[8192]{0}', space=vmem, size = 0x2000, scoped, tag = 'output window, operand 2, single buffered']
    %14 = vsyncpa [#allocation4], 0
    %15 = vsyncpa [#allocation6], 0
    // Predicated region
    $region2: #{tpu_custom_call.1} parent=1 // pred_check
      _
    $region3: #{tpu_custom_call.1} parent=1 // pred_check_branch
      %17 = sbr.rel (0) target = $region5
    $region4: #{tpu_custom_call.1} parent=1 // pred_region
      _
    $region5: #{tpu_custom_call.1} parent=1 // pred_fallthru
      _
    // Predicated region
    $region6: #{tpu_custom_call.1} parent=1 // pred_check
      _
    $region7: #{tpu_custom_call.1} parent=1 // pred_check_branch
      %19 = sbr.rel (0) target = $region9
    $region8: #{tpu_custom_call.1} parent=1 // pred_region
      _
    $region9: #{tpu_custom_call.1} parent=1 // pred_fallthru
      _
    // Predicated region
    $region10: #{tpu_custom_call.1} parent=1 // pred_check
      _
    $region11: #{tpu_custom_call.1} parent=1 // pred_check_branch
      %21 = sbr.rel (0) target = $region13
    $region12: #{tpu_custom_call.1} parent=1 // pred_region
      _
    $region13: #{tpu_custom_call.1} parent=1 // pred_fallthru
      _
    // Predicated region
    $region14: #{tpu_custom_call.1} parent=1 // pred_check
      _
    $region15: #{tpu_custom_call.1} parent=1 // pred_check_branch
      %23 = sbr.rel (0) target = $region17
    $region16: #{tpu_custom_call.1} parent=1 // pred_region
      _
    $region17: #{tpu_custom_call.1} parent=1 // pred_fallthru
      _
    // Predicated region
    $region18: #{tpu_custom_call.1} parent=1 // pred_check
      _
    $region19: #{tpu_custom_call.1} parent=1 // pred_check_branch
      %25 = sbr.rel (0) target = $region21
    $region20: #{tpu_custom_call.1} parent=1 // pred_region
      _
    $region21: #{tpu_custom_call.1} parent=1 // pred_fallthru
      _
    // Predicated region
    $region22: #{tpu_custom_call.1} parent=1 // pred_check
      _
    $region23: #{tpu_custom_call.1} parent=1 // pred_check_branch
      %27 = sbr.rel (0) target = $region25
    $region24: #{tpu_custom_call.1} parent=1 // pred_region
      _
    $region25: #{tpu_custom_call.1} parent=1 // pred_fallthru
      _
    %v29 = vld [vmem:[%s0] sm:$0xf]
    %v30 = vld [vmem:[%s0 + $0x4] sm:$0xf]
    %v31 = vld [vmem:[%s0 + $0x8] sm:$0xf]
    %v32 = vld [vmem:[%s0 + $0xc] sm:$0xf]
    %v33 = vld [vmem:[%s0 + $0x10] sm:$0xf]
    %v34 = vld [vmem:[%s0 + $0x14] sm:$0xf]
    %v35 = vld [vmem:[%s0 + $0x18] sm:$0xf]
    %v36 = vld [vmem:[%s0 + $0x1c] sm:$0xf]
    %v37 = vld [vmem:[%s2] sm:$0x77]
    %v38 = vld [vmem:[%s5] sm:$0x3]
    %v40 = vlaneseq
    %v41 = vshrl.u32 %v40, 7
    %v42 = vsub.s32 0, %v41
    %v43 = vrot.slane %v38, %v42
    %v44 = vlaneseq
    %v45 = vshrl.u32 %v44, 7
    %v46 = vsub.s32 1, %v45
    %v47 = vrot.slane %v38, %v46
    %v58 = vunpack.c.l.b16 %v29
    %v59 = vunpack.c.l.b16 %v30
    %v60 = vunpack.c.l.b16 %v31
    %v61 = vunpack.c.l.b16 %v32
    %v62 = vunpack.c.l.b16 %v33
    %v63 = vunpack.c.l.b16 %v34
    %v64 = vunpack.c.l.b16 %v35
    %v65 = vunpack.c.l.b16 %v36
    %v66 = vpack.c.b16 %v59, %v58
    %v67 = vpack.c.b16 %v61, %v60
    %v68 = vpack.c.b16 %v63, %v62
    %v69 = vpack.c.b16 %v65, %v64
    %v71 = vunpack.c.l.b16 %v37
    %v72 = vunpack.c.h.b16 %v37
    %v73 = vpack.c.b16 %v71, %v71
    %v74 = vpack.c.b16 %v72, %v72
    %vm75 = vcmask 39936
    %v77 = vsel %vm75, %v66, 0
    %v80 = vsel %vm75, %v67, 0
    %v83 = vsel %vm75, %v68, 0
    %v86 = vsel %vm75, %v69, 0
    %vm88 = vcmask 1041408
    %vm89 = vcmask 1042432
    %v90 = vsel %vm88, 4294967295, 65535
    %v91 = vsel %vm89, %v90, 0
    %v93 = vand.u32 %v73, %v91
    %v96 = vand.u32 %v74, %v91
    %98 = vmatprep.subr.bf16.mxu0 %v96
    %99 = vmatpush1.bf16.msra.mxu0 %v93
    %100 = vmatprep.subr.bf16.mxu0 0
    %101 = vmatpush1.bf16.msra.mxu0 0
    %102 = vmatprep.subr.bf16.mxu0 0
    %103 = vmatpush1.bf16.msra.mxu0 0
    %104 = vmatprep.subr.bf16.mxu0 0
    %105 = vmatpush1.bf16.msra.mxu0 0
    %106 = vmatprep.subr.bf16.mxu0 0
    %107 = vmatpush1.bf16.msra.mxu0 0
    %108 = vmatprep.subr.bf16.mxu0 0
    %109 = vmatpush1.bf16.msra.mxu0 0
    %110 = vmatprep.subr.bf16.mxu0 0
    %111 = vmatpush1.bf16.msra.mxu0 0
    %112 = vmatprep.subr.bf16.mxu0 0
    %113 = vmatpush1.bf16.msra.mxu0 0
    %114 = vmatprep.subr.bf16.mxu0 0
    %115 = vmatpush1.bf16.msra.mxu0 0
    %116 = vmatprep.subr.bf16.mxu0 0
    %117 = vmatpush1.bf16.msra.mxu0 0
    %118 = vmatprep.subr.bf16.mxu0 0
    %119 = vmatpush1.bf16.msra.mxu0 0
    %120 = vmatprep.subr.bf16.mxu0 0
    %121 = vmatpush1.bf16.msra.mxu0 0
    %122 = vmatprep.subr.bf16.mxu0 0
    %123 = vmatpush1.bf16.msra.mxu0 0
    %124 = vmatprep.subr.bf16.mxu0 0
    %125 = vmatpush1.bf16.msra.mxu0 0
    %126 = vmatprep.subr.bf16.mxu0 0
    %127 = vmatpush1.bf16.msra.mxu0 0
    %128 = vmatprep.subr.bf16.mxu0 0
    %129 = vmatpush1.bf16.msra.mxu0 0
    %130 = vmatprep.mubr.bf16.mxu0 0
    %131 = vmatmul.mubr.bf16.gmra.mrb[0].mxu0 %v77
    %v132 = vpop.f32.mrb[0].mxu0
    %v133 = vadd.f32 %v43, %v132
    %v134 = vpop.f32.mrb[0].mxu0
    %v135 = vadd.f32 %v47, %v134
    %v136 = vpop.f32.mrb[0].mxu0
    %v137 = vadd.f32 %v43, %v136
    %v138 = vpop.f32.mrb[0].mxu0
    %v139 = vadd.f32 %v47, %v138
    %140 = vmatprep.mubr.bf16.mxu0 0
    %141 = vmatmul.mubr.bf16.gmra.mrb[0].mxu0 %v80
    %v142 = vpop.f32.mrb[0].mxu0
    %v143 = vadd.f32 %v43, %v142
    %v144 = vpop.f32.mrb[0].mxu0
    %v145 = vadd.f32 %v47, %v144
    %v146 = vpop.f32.mrb[0].mxu0
    %v147 = vadd.f32 %v43, %v146
    %v148 = vpop.f32.mrb[0].mxu0
    %v149 = vadd.f32 %v47, %v148
    %150 = vmatprep.mubr.bf16.mxu0 0
    %151 = vmatmul.mubr.bf16.gmra.mrb[0].mxu0 %v83
    %v152 = vpop.f32.mrb[0].mxu0
    %v153 = vadd.f32 %v43, %v152
    %v154 = vpop.f32.mrb[0].mxu0
    %v155 = vadd.f32 %v47, %v154
    %v156 = vpop.f32.mrb[0].mxu0
    %v157 = vadd.f32 %v43, %v156
    %v158 = vpop.f32.mrb[0].mxu0
    %v159 = vadd.f32 %v47, %v158
    %160 = vmatprep.mubr.bf16.mxu0 0
    %161 = vmatmul.mubr.bf16.gmra.mrb[0].mxu0 %v86
    %v162 = vpop.f32.mrb[0].mxu0
    %v163 = vadd.f32 %v43, %v162
    %v164 = vpop.f32.mrb[0].mxu0
    %v165 = vadd.f32 %v47, %v164
    %v166 = vpop.f32.mrb[0].mxu0
    %v167 = vadd.f32 %v43, %v166
    %v168 = vpop.f32.mrb[0].mxu0
    %v169 = vadd.f32 %v47, %v168
    %170 = vdwg.mxu0
    %171 = vst [vmem:[#allocation2] sm:$0xff] %v133
    %172 = vst [vmem:[#allocation2 + $0x8] sm:$0xff] %v135
    %173 = vst [vmem:[#allocation2 + $0x10] sm:$0xff] %v137
    %174 = vst [vmem:[#allocation2 + $0x18] sm:$0xff] %v139
    %175 = vst [vmem:[#allocation2 + $0x20] sm:$0xff] %v143
    %176 = vst [vmem:[#allocation2 + $0x28] sm:$0xff] %v145
    %177 = vst [vmem:[#allocation2 + $0x30] sm:$0xff] %v147
    %178 = vst [vmem:[#allocation2 + $0x38] sm:$0xff] %v149
    %179 = vst [vmem:[#allocation2 + $0x40] sm:$0xff] %v153
    %180 = vst [vmem:[#allocation2 + $0x48] sm:$0xff] %v155
    %181 = vst [vmem:[#allocation2 + $0x50] sm:$0xff] %v157
    %182 = vst [vmem:[#allocation2 + $0x58] sm:$0xff] %v159
    %183 = vst [vmem:[#allocation2 + $0x60] sm:$0xff] %v163
    %184 = vst [vmem:[#allocation2 + $0x68] sm:$0xff] %v165
    %185 = vst [vmem:[#allocation2 + $0x70] sm:$0xff] %v167
    %186 = vst [vmem:[#allocation2 + $0x78] sm:$0xff] %v169
    %v187 = vld [vmem:[%s1] sm:$0xff]
    %v188 = vld [vmem:[#allocation2] sm:$0xff]
    %v189 = vld [vmem:[%s3] sm:$0xf]
    %v190 = vld [vmem:[%s3 + $0x4] sm:$0xf]
    %v191 = vld [vmem:[%s3 + $0x8] sm:$0xf]
    %v192 = vld [vmem:[%s3 + $0xc] sm:$0xf]
    %v197 = vunpack.c.l.b16 %v189
    %v198 = vunpack.c.l.b16 %v190
    %v199 = vunpack.c.l.b16 %v191
    %v200 = vunpack.c.l.b16 %v192
    %v201 = vpack.c.b16 %v198, %v197
    %v202 = vpack.c.b16 %v200, %v199
    %vm205 = vcmask 261120
    %v207 = vsel %vm205, 0, 0
    %209 = vmatprep.subr.bf16.mxu0 0
    %210 = vmatpush1.bf16.msra.mxu0 %v201
    %211 = vmatprep.subr.bf16.mxu0 0
    %212 = vmatpush1.bf16.msra.mxu0 %v202
    %213 = vmatprep.subr.bf16.mxu0 0
    %214 = vmatpush1.bf16.msra.mxu0 0
    %215 = vmatprep.subr.bf16.mxu0 0
    %216 = vmatpush1.bf16.msra.mxu0 0
    %217 = vmatprep.subr.bf16.mxu0 0
    %218 = vmatpush1.bf16.msra.mxu0 0
    %219 = vmatprep.subr.bf16.mxu0 0
    %220 = vmatpush1.bf16.msra.mxu0 0
    %221 = vmatprep.subr.bf16.mxu0 0
    %222 = vmatpush1.bf16.msra.mxu0 0
    %223 = vmatprep.subr.bf16.mxu0 0
    %224 = vmatpush1.bf16.msra.mxu0 0
    %225 = vmatprep.subr.bf16.mxu0 0
    %226 = vmatpush1.bf16.msra.mxu0 0
    %227 = vmatprep.subr.bf16.mxu0 0
    %228 = vmatpush1.bf16.msra.mxu0 0
    %229 = vmatprep.subr.bf16.mxu0 0
    %230 = vmatpush1.bf16.msra.mxu0 0
    %231 = vmatprep.subr.bf16.mxu0 0
    %232 = vmatpush1.bf16.msra.mxu0 0
    %233 = vmatprep.subr.bf16.mxu0 0
    %234 = vmatpush1.bf16.msra.mxu0 0
    %235 = vmatprep.subr.bf16.mxu0 0
    %236 = vmatpush1.bf16.msra.mxu0 0
    %237 = vmatprep.subr.bf16.mxu0 0
    %238 = vmatpush1.bf16.msra.mxu0 0
    %239 = vmatprep.subr.bf16.mxu0 0
    %240 = vmatpush1.bf16.msra.mxu0 0
    %241 = vmatprep.mubr.bf16.mxu0 0
    %242 = vmatmul.mubr.bf16.gmra.mrb[0].mxu0 %v207
    %v243 = vpop.f32.mrb[0].mxu0
    %v244 = vadd.f32 0.0, %v243
    %v245 = vpop.f32.mrb[0].mxu0
    %v246 = vpop.f32.mrb[0].mxu0
    %v247 = vpop.f32.mrb[0].mxu0
    %248 = vdwg.mxu0
    %v249 = vadd.f32 %v188, %v244
    %s250 = scalar_lea.vmem [#allocation2], 112
    %v251 = vld [vmem:[%s250 + $0x8] sm:$0xff]
    %v252 = vld [vmem:[%s4] sm:$0xf]
    %v253 = vld [vmem:[%s4 + $0x4] sm:$0xf]
    %v254 = vld [vmem:[%s4 + $0x8] sm:$0xf]
    %v255 = vld [vmem:[%s4 + $0xc] sm:$0xf]
    %v260 = vunpack.c.l.b16 %v252
    %v261 = vunpack.c.l.b16 %v253
    %v262 = vunpack.c.l.b16 %v254
    %v263 = vunpack.c.l.b16 %v255
    %v264 = vpack.c.b16 %v261, %v260
    %v265 = vpack.c.b16 %v263, %v262
    %268 = vmatprep.subr.bf16.mxu0 0
    %269 = vmatpush1.bf16.msra.mxu0 %v264
    %270 = vmatprep.subr.bf16.mxu0 0
    %271 = vmatpush1.bf16.msra.mxu0 %v265
    %272 = vmatprep.subr.bf16.mxu0 0
    %273 = vmatpush1.bf16.msra.mxu0 0
    %274 = vmatprep.subr.bf16.mxu0 0
    %275 = vmatpush1.bf16.msra.mxu0 0
    %276 = vmatprep.subr.bf16.mxu0 0
    %277 = vmatpush1.bf16.msra.mxu0 0
    %278 = vmatprep.subr.bf16.mxu0 0
    %279 = vmatpush1.bf16.msra.mxu0 0
    %280 = vmatprep.subr.bf16.mxu0 0
    %281 = vmatpush1.bf16.msra.mxu0 0
    %282 = vmatprep.subr.bf16.mxu0 0
    %283 = vmatpush1.bf16.msra.mxu0 0
    %284 = vmatprep.subr.bf16.mxu0 0
    %285 = vmatpush1.bf16.msra.mxu0 0
    %286 = vmatprep.subr.bf16.mxu0 0
    %287 = vmatpush1.bf16.msra.mxu0 0
    %288 = vmatprep.subr.bf16.mxu0 0
    %289 = vmatpush1.bf16.msra.mxu0 0
    %290 = vmatprep.subr.bf16.mxu0 0
    %291 = vmatpush1.bf16.msra.mxu0 0
    %292 = vmatprep.subr.bf16.mxu0 0
    %293 = vmatpush1.bf16.msra.mxu0 0
    %294 = vmatprep.subr.bf16.mxu0 0
    %295 = vmatpush1.bf16.msra.mxu0 0
    %296 = vmatprep.subr.bf16.mxu0 0
    %297 = vmatpush1.bf16.msra.mxu0 0
    %298 = vmatprep.subr.bf16.mxu0 0
    %299 = vmatpush1.bf16.msra.mxu0 0
    %300 = vmatprep.mubr.bf16.mxu0 0
    %301 = vmatmul.mubr.bf16.gmra.mrb[0].mxu0 %v207
    %v302 = vpop.f32.mrb[0].mxu0
    %v303 = vadd.f32 0.0, %v302
    %v304 = vpop.f32.mrb[0].mxu0
    %v305 = vpop.f32.mrb[0].mxu0
    %v306 = vpop.f32.mrb[0].mxu0
    %307 = vdwg.mxu0
    %v308 = vadd.f32 %v251, %v303
    %vm309 = vcmp.gt.s32.totalorder %v187, 0
    %vm310 = vcmp.gt.s32.totalorder %v187, 7
    %v311 = vxor.u32 %v249, 2147483648
    %v312 = vmul.f32 %v311, 1.442695
    %v313 = vpow.pop %v312
    %v314 = vadd.f32 %v313, 1.0
    %v315 = vrcp.pop %v314
    %v316 = vmul.f32 1.0, %v315
    %v317 = vtanh.pop %v249
    %v318 = vmul.f32 %v316, 0.0
    %320 = vrot.lane.b32.xlu0 %v317, 64
    %v321 = vpop.permute.xlu0 %320
    %v323 = vmul.f32 %v316, %v321
    %325 = vrot.lane.b32.xlu0 %v323, 32
    %v326 = vpop.permute.xlu0 %325
    %v328 = vadd.f32 %v318, %v326
    %v329 = vtanh.pop %v328
    %331 = vrot.lane.b32.xlu0 %v329, 64
    %v332 = vpop.permute.xlu0 %331
    %v334 = vmul.f32 %v316, %v332
    %v335 = vsel %vm309, 1, 0
    %336 = vset.pattern.permute.xlu0 0
    %337 = vperm.xlu0 %336, %v335
    %v338 = vpop.permute.xlu0 %337
    %vm339 = vcmp.eq.s32.totalorder %v338, 1
    %v340 = vsel %vm339, %v334, 0.0
    %v341 = vsel %vm339, %v328, 0.0
    %v342 = vxor.u32 %v308, 2147483648
    %v343 = vmul.f32 %v342, 1.442695
    %v344 = vpow.pop %v343
    %v345 = vadd.f32 %v344, 1.0
    %v346 = vrcp.pop %v345
    %v347 = vmul.f32 1.0, %v346
    %v348 = vtanh.pop %v308
    %v349 = vmul.f32 %v347, 0.0
    %351 = vrot.lane.b32.xlu0 %v348, 64
    %v352 = vpop.permute.xlu0 %351
    %v354 = vmul.f32 %v347, %v352
    %356 = vrot.lane.b32.xlu0 %v354, 32
    %v357 = vpop.permute.xlu0 %356
    %v359 = vadd.f32 %v349, %v357
    %v360 = vtanh.pop %v359
    %362 = vrot.lane.b32.xlu0 %v360, 64
    %v363 = vpop.permute.xlu0 %362
    %v365 = vmul.f32 %v347, %v363
    %v366 = vsel %vm310, 1, 0
    %367 = vset.pattern.permute.xlu0 0
    %368 = vperm.xlu0 %367, %v366
    %v369 = vpop.permute.xlu0 %368
    %vm370 = vcmp.eq.s32.totalorder %v369, 1
    %v371 = vsel %vm370, %v365, 0.0
    %v372 = vsel %vm370, %v359, 0.0
    %374 = vrot.lane.b32.xlu0 %v334, 32
    %v375 = vpop.permute.xlu0 %374
    %377 = vst.msk [vmem:[#allocation3] sm:$0xff] %vm205, %v375
    %379 = vrot.lane.b32.xlu0 %v365, 64
    %v380 = vpop.permute.xlu0 %379
    %s382 = scalar_lea.vmem [#allocation3], 56
    %vm383 = vcmask 523520
    %384 = vst.msk [vmem:[%s382] sm:$0xff] %vm383, %v380
    %s385 = scalar_lea.vmem [#allocation2], 16
    %v386 = vld [vmem:[%s385] sm:$0xff]
    %v387 = vpack.c.bf16 %v340, %v340
    %v388 = vld [vmem:[%s3] sm:$0xf]
    %v389 = vld [vmem:[%s3 + $0x4] sm:$0xf]
    %v390 = vld [vmem:[%s3 + $0x8] sm:$0xf]
    %v391 = vld [vmem:[%s3 + $0xc] sm:$0xf]
    %393 = vrot.lane.b32.xlu0 %v387, 32
    %v394 = vpop.permute.xlu0 %393
    %v399 = vunpack.c.l.b16 %v388
    %v400 = vunpack.c.l.b16 %v389
    %v401 = vunpack.c.l.b16 %v390
    %v402 = vunpack.c.l.b16 %v391
    %v403 = vpack.c.b16 %v400, %v399
    %v404 = vpack.c.b16 %v402, %v401
    %v408 = vsel %vm205, %v394, 0
    %410 = vmatprep.subr.bf16.mxu0 0
    %411 = vmatpush1.bf16.msra.mxu0 %v403
    %412 = vmatprep.subr.bf16.mxu0 0
    %413 = vmatpush1.bf16.msra.mxu0 %v404
    %414 = vmatprep.subr.bf16.mxu0 0
    %415 = vmatpush1.bf16.msra.mxu0 0
    %416 = vmatprep.subr.bf16.mxu0 0
    %417 = vmatpush1.bf16.msra.mxu0 0
    %418 = vmatprep.subr.bf16.mxu0 0
    %419 = vmatpush1.bf16.msra.mxu0 0
    %420 = vmatprep.subr.bf16.mxu0 0
    %421 = vmatpush1.bf16.msra.mxu0 0
    %422 = vmatprep.subr.bf16.mxu0 0
    %423 = vmatpush1.bf16.msra.mxu0 0
    %424 = vmatprep.subr.bf16.mxu0 0
    %425 = vmatpush1.bf16.msra.mxu0 0
    %426 = vmatprep.subr.bf16.mxu0 0
    %427 = vmatpush1.bf16.msra.mxu0 0
    %428 = vmatprep.subr.bf16.mxu0 0
    %429 = vmatpush1.bf16.msra.mxu0 0
    %430 = vmatprep.subr.bf16.mxu0 0
    %431 = vmatpush1.bf16.msra.mxu0 0
    %432 = vmatprep.subr.bf16.mxu0 0
    %433 = vmatpush1.bf16.msra.mxu0 0
    %434 = vmatprep.subr.bf16.mxu0 0
    %435 = vmatpush1.bf16.msra.mxu0 0
    %436 = vmatprep.subr.bf16.mxu0 0
    %437 = vmatpush1.bf16.msra.mxu0 0
    %438 = vmatprep.subr.bf16.mxu0 0
    %439 = vmatpush1.bf16.msra.mxu0 0
    %440 = vmatprep.subr.bf16.mxu0 0
    %441 = vmatpush1.bf16.msra.mxu0 0
    %442 = vmatprep.mubr.bf16.mxu0 0
    %443 = vmatmul.mubr.bf16.gmra.mrb[0].mxu0 %v408
    %v444 = vpop.f32.mrb[0].mxu0
    %v445 = vadd.f32 0.0, %v444
    %v446 = vpop.f32.mrb[0].mxu0
    %v447 = vpop.f32.mrb[0].mxu0
    %v448 = vpop.f32.mrb[0].mxu0
    %449 = vdwg.mxu0
    %v450 = vadd.f32 %v386, %v445
    %s451 = scalar_lea.vmem [#allocation2], 96
    %v452 = vld [vmem:[%s451 + $0x8] sm:$0xff]
    %v453 = vpack.c.bf16 %v371, %v371
    %v454 = vld [vmem:[%s4] sm:$0xf]
    %v455 = vld [vmem:[%s4 + $0x4] sm:$0xf]
    %v456 = vld [vmem:[%s4 + $0x8] sm:$0xf]
    %v457 = vld [vmem:[%s4 + $0xc] sm:$0xf]
    %459 = vrot.lane.b32.xlu0 %v453, 32
    %v460 = vpop.permute.xlu0 %459
    %v465 = vunpack.c.l.b16 %v454
    %v466 = vunpack.c.l.b16 %v455
    %v467 = vunpack.c.l.b16 %v456
    %v468 = vunpack.c.l.b16 %v457
    %v469 = vpack.c.b16 %v466, %v465
    %v470 = vpack.c.b16 %v468, %v467
    %v474 = vsel %vm205, %v460, 0
    %476 = vmatprep.subr.bf16.mxu0 0
    %477 = vmatpush1.bf16.msra.mxu0 %v469
    %478 = vmatprep.subr.bf16.mxu0 0
    %479 = vmatpush1.bf16.msra.mxu0 %v470
    %480 = vmatprep.subr.bf16.mxu0 0
    %481 = vmatpush1.bf16.msra.mxu0 0
    %482 = vmatprep.subr.bf16.mxu0 0
    %483 = vmatpush1.bf16.msra.mxu0 0
    %484 = vmatprep.subr.bf16.mxu0 0
    %485 = vmatpush1.bf16.msra.mxu0 0
    %486 = vmatprep.subr.bf16.mxu0 0
    %487 = vmatpush1.bf16.msra.mxu0 0
    %488 = vmatprep.subr.bf16.mxu0 0
    %489 = vmatpush1.bf16.msra.mxu0 0
    %490 = vmatprep.subr.bf16.mxu0 0
    %491 = vmatpush1.bf16.msra.mxu0 0
    %492 = vmatprep.subr.bf16.mxu0 0
    %493 = vmatpush1.bf16.msra.mxu0 0
    %494 = vmatprep.subr.bf16.mxu0 0
    %495 = vmatpush1.bf16.msra.mxu0 0
    %496 = vmatprep.subr.bf16.mxu0 0
    %497 = vmatpush1.bf16.msra.mxu0 0
    %498 = vmatprep.subr.bf16.mxu0 0
    %499 = vmatpush1.bf16.msra.mxu0 0
    %500 = vmatprep.subr.bf16.mxu0 0
    %501 = vmatpush1.bf16.msra.mxu0 0
    %502 = vmatprep.subr.bf16.mxu0 0
    %503 = vmatpush1.bf16.msra.mxu0 0
    %504 = vmatprep.subr.bf16.mxu0 0
    %505 = vmatpush1.bf16.msra.mxu0 0
    %506 = vmatprep.subr.bf16.mxu0 0
    %507 = vmatpush1.bf16.msra.mxu0 0
    %508 = vmatprep.mubr.bf16.mxu0 0
    %509 = vmatmul.mubr.bf16.gmra.mrb[0].mxu0 %v474
    %v510 = vpop.f32.mrb[0].mxu0
    %v511 = vadd.f32 0.0, %v510
    %v512 = vpop.f32.mrb[0].mxu0
    %v513 = vpop.f32.mrb[0].mxu0
    %v514 = vpop.f32.mrb[0].mxu0
    %515 = vdwg.mxu0
    %v516 = vadd.f32 %v452, %v511
    %vm517 = vcmp.gt.s32.totalorder %v187, 1
    %vm518 = vcmp.gt.s32.totalorder %v187, 6
    %v519 = vxor.u32 %v450, 2147483648
    %v520 = vmul.f32 %v519, 1.442695
    %v521 = vpow.pop %v520
    %v522 = vadd.f32 %v521, 1.0
    %v523 = vrcp.pop %v522
    %v524 = vmul.f32 1.0, %v523
    %v525 = vtanh.pop %v450
    %v526 = vmul.f32 %v524, %v341
    %528 = vrot.lane.b32.xlu0 %v525, 64
    %v529 = vpop.permute.xlu0 %528
    %v531 = vmul.f32 %v524, %v529
    %533 = vrot.lane.b32.xlu0 %v531, 32
    %v534 = vpop.permute.xlu0 %533
    %v536 = vadd.f32 %v526, %v534
    %v537 = vtanh.pop %v536
    %539 = vrot.lane.b32.xlu0 %v537, 64
    %v540 = vpop.permute.xlu0 %539
    %v542 = vmul.f32 %v524, %v540
    %v543 = vsel %vm517, 1, 0
    %544 = vset.pattern.permute.xlu0 0
    %545 = vperm.xlu0 %544, %v543
    %v546 = vpop.permute.xlu0 %545
    %vm547 = vcmp.eq.s32.totalorder %v546, 1
    %v548 = vsel %vm547, %v542, %v340
    %v549 = vsel %vm547, %v536, %v341
    %v550 = vxor.u32 %v516, 2147483648
    %v551 = vmul.f32 %v550, 1.442695
    %v552 = vpow.pop %v551
    %v553 = vadd.f32 %v552, 1.0
    %v554 = vrcp.pop %v553
    %v555 = vmul.f32 1.0, %v554
    %v556 = vtanh.pop %v516
    %v557 = vmul.f32 %v555, %v372
    %559 = vrot.lane.b32.xlu0 %v556, 64
    %v560 = vpop.permute.xlu0 %559
    %v562 = vmul.f32 %v555, %v560
    %564 = vrot.lane.b32.xlu0 %v562, 32
    %v565 = vpop.permute.xlu0 %564
    %v567 = vadd.f32 %v557, %v565
    %v568 = vtanh.pop %v567
    %570 = vrot.lane.b32.xlu0 %v568, 64
    %v571 = vpop.permute.xlu0 %570
    %v573 = vmul.f32 %v555, %v571
    %v574 = vsel %vm518, 1, 0
    %575 = vset.pattern.permute.xlu0 0
    %576 = vperm.xlu0 %575, %v574
    %v577 = vpop.permute.xlu0 %576
    %vm578 = vcmp.eq.s32.totalorder %v577, 1
    %v579 = vsel %vm578, %v573, %v371
    %v580 = vsel %vm578, %v567, %v372
    %582 = vrot.lane.b32.xlu0 %v542, 32
    %v583 = vpop.permute.xlu0 %582
    %s585 = scalar_lea.vmem [#allocation3], 8
    %586 = vst.msk [vmem:[%s585] sm:$0xff] %vm205, %v583
    %588 = vrot.lane.b32.xlu0 %v573, 64
    %v589 = vpop.permute.xlu0 %588
    %s591 = scalar_lea.vmem [#allocation3], 48
    %592 = vst.msk [vmem:[%s591] sm:$0xff] %vm383, %v589
    %s593 = scalar_lea.vmem [#allocation2], 32
    %v594 = vld [vmem:[%s593] sm:$0xff]
    %v595 = vpack.c.bf16 %v548, %v548
    %v596 = vld [vmem:[%s3] sm:$0xf]
    %v597 = vld [vmem:[%s3 + $0x4] sm:$0xf]
    %v598 = vld [vmem:[%s3 + $0x8] sm:$0xf]
    %v599 = vld [vmem:[%s3 + $0xc] sm:$0xf]
    %601 = vrot.lane.b32.xlu0 %v595, 32
    %v602 = vpop.permute.xlu0 %601
    %v607 = vunpack.c.l.b16 %v596
    %v608 = vunpack.c.l.b16 %v597
    %v609 = vunpack.c.l.b16 %v598
    %v610 = vunpack.c.l.b16 %v599
    %v611 = vpack.c.b16 %v608, %v607
    %v612 = vpack.c.b16 %v610, %v609
    %v616 = vsel %vm205, %v602, 0
    %618 = vmatprep.subr.bf16.mxu0 0
    %619 = vmatpush1.bf16.msra.mxu0 %v611
    %620 = vmatprep.subr.bf16.mxu0 0
    %621 = vmatpush1.bf16.msra.mxu0 %v612
    %622 = vmatprep.subr.bf16.mxu0 0
    %623 = vmatpush1.bf16.msra.mxu0 0
    %624 = vmatprep.subr.bf16.mxu0 0
    %625 = vmatpush1.bf16.msra.mxu0 0
    %626 = vmatprep.subr.bf16.mxu0 0
    %627 = vmatpush1.bf16.msra.mxu0 0
    %628 = vmatprep.subr.bf16.mxu0 0
    %629 = vmatpush1.bf16.msra.mxu0 0
    %630 = vmatprep.subr.bf16.mxu0 0
    %631 = vmatpush1.bf16.msra.mxu0 0
    %632 = vmatprep.subr.bf16.mxu0 0
    %633 = vmatpush1.bf16.msra.mxu0 0
    %634 = vmatprep.subr.bf16.mxu0 0
    %635 = vmatpush1.bf16.msra.mxu0 0
    %636 = vmatprep.subr.bf16.mxu0 0
    %637 = vmatpush1.bf16.msra.mxu0 0
    %638 = vmatprep.subr.bf16.mxu0 0
    %639 = vmatpush1.bf16.msra.mxu0 0
    %640 = vmatprep.subr.bf16.mxu0 0
    %641 = vmatpush1.bf16.msra.mxu0 0
    %642 = vmatprep.subr.bf16.mxu0 0
    %643 = vmatpush1.bf16.msra.mxu0 0
    %644 = vmatprep.subr.bf16.mxu0 0
    %645 = vmatpush1.bf16.msra.mxu0 0
    %646 = vmatprep.subr.bf16.mxu0 0
    %647 = vmatpush1.bf16.msra.mxu0 0
    %648 = vmatprep.subr.bf16.mxu0 0
    %649 = vmatpush1.bf16.msra.mxu0 0
    %650 = vmatprep.mubr.bf16.mxu0 0
    %651 = vmatmul.mubr.bf16.gmra.mrb[0].mxu0 %v616
    %v652 = vpop.f32.mrb[0].mxu0
    %v653 = vadd.f32 0.0, %v652
    %v654 = vpop.f32.mrb[0].mxu0
    %v655 = vpop.f32.mrb[0].mxu0
    %v656 = vpop.f32.mrb[0].mxu0
    %657 = vdwg.mxu0
    %v658 = vadd.f32 %v594, %v653
    %s659 = scalar_lea.vmem [#allocation2], 80
    %v660 = vld [vmem:[%s659 + $0x8] sm:$0xff]
    %v661 = vpack.c.bf16 %v579, %v579
    %v662 = vld [vmem:[%s4] sm:$0xf]
    %v663 = vld [vmem:[%s4 + $0x4] sm:$0xf]
    %v664 = vld [vmem:[%s4 + $0x8] sm:$0xf]
    %v665 = vld [vmem:[%s4 + $0xc] sm:$0xf]
    %667 = vrot.lane.b32.xlu0 %v661, 32
    %v668 = vpop.permute.xlu0 %667
    %v673 = vunpack.c.l.b16 %v662
    %v674 = vunpack.c.l.b16 %v663
    %v675 = vunpack.c.l.b16 %v664
    %v676 = vunpack.c.l.b16 %v665
    %v677 = vpack.c.b16 %v674, %v673
    %v678 = vpack.c.b16 %v676, %v675
    %v682 = vsel %vm205, %v668, 0
    %684 = vmatprep.subr.bf16.mxu0 0
    %685 = vmatpush1.bf16.msra.mxu0 %v677
    %686 = vmatprep.subr.bf16.mxu0 0
    %687 = vmatpush1.bf16.msra.mxu0 %v678
    %688 = vmatprep.subr.bf16.mxu0 0
    %689 = vmatpush1.bf16.msra.mxu0 0
    %690 = vmatprep.subr.bf16.mxu0 0
    %691 = vmatpush1.bf16.msra.mxu0 0
    %692 = vmatprep.subr.bf16.mxu0 0
    %693 = vmatpush1.bf16.msra.mxu0 0
    %694 = vmatprep.subr.bf16.mxu0 0
    %695 = vmatpush1.bf16.msra.mxu0 0
    %696 = vmatprep.subr.bf16.mxu0 0
    %697 = vmatpush1.bf16.msra.mxu0 0
    %698 = vmatprep.subr.bf16.mxu0 0
    %699 = vmatpush1.bf16.msra.mxu0 0
    %700 = vmatprep.subr.bf16.mxu0 0
    %701 = vmatpush1.bf16.msra.mxu0 0
    %702 = vmatprep.subr.bf16.mxu0 0
    %703 = vmatpush1.bf16.msra.mxu0 0
    %704 = vmatprep.subr.bf16.mxu0 0
    %705 = vmatpush1.bf16.msra.mxu0 0
    %706 = vmatprep.subr.bf16.mxu0 0
    %707 = vmatpush1.bf16.msra.mxu0 0
    %708 = vmatprep.subr.bf16.mxu0 0
    %709 = vmatpush1.bf16.msra.mxu0 0
    %710 = vmatprep.subr.bf16.mxu0 0
    %711 = vmatpush1.bf16.msra.mxu0 0
    %712 = vmatprep.subr.bf16.mxu0 0
    %713 = vmatpush1.bf16.msra.mxu0 0
    %714 = vmatprep.subr.bf16.mxu0 0
    %715 = vmatpush1.bf16.msra.mxu0 0
    %716 = vmatprep.mubr.bf16.mxu0 0
    %717 = vmatmul.mubr.bf16.gmra.mrb[0].mxu0 %v682
    %v718 = vpop.f32.mrb[0].mxu0
    %v719 = vadd.f32 0.0, %v718
    %v720 = vpop.f32.mrb[0].mxu0
    %v721 = vpop.f32.mrb[0].mxu0
    %v722 = vpop.f32.mrb[0].mxu0
    %723 = vdwg.mxu0
    %v724 = vadd.f32 %v660, %v719
    %vm725 = vcmp.gt.s32.totalorder %v187, 2
    %vm726 = vcmp.gt.s32.totalorder %v187, 5
    %v727 = vxor.u32 %v658, 2147483648
    %v728 = vmul.f32 %v727, 1.442695
    %v729 = vpow.pop %v728
    %v730 = vadd.f32 %v729, 1.0
    %v731 = vrcp.pop %v730
    %v732 = vmul.f32 1.0, %v731
    %v733 = vtanh.pop %v658
    %v734 = vmul.f32 %v732, %v549
    %736 = vrot.lane.b32.xlu0 %v733, 64
    %v737 = vpop.permute.xlu0 %736
    %v739 = vmul.f32 %v732, %v737
    %741 = vrot.lane.b32.xlu0 %v739, 32
    %v742 = vpop.permute.xlu0 %741
    %v744 = vadd.f32 %v734, %v742
    %v745 = vtanh.pop %v744
    %747 = vrot.lane.b32.xlu0 %v745, 64
    %v748 = vpop.permute.xlu0 %747
    %v750 = vmul.f32 %v732, %v748
    %v751 = vsel %vm725, 1, 0
    %752 = vset.pattern.permute.xlu0 0
    %753 = vperm.xlu0 %752, %v751
    %v754 = vpop.permute.xlu0 %753
    %vm755 = vcmp.eq.s32.totalorder %v754, 1
    %v756 = vsel %vm755, %v750, %v548
    %v757 = vsel %vm755, %v744, %v549
    %v758 = vxor.u32 %v724, 2147483648
    %v759 = vmul.f32 %v758, 1.442695
    %v760 = vpow.pop %v759
    %v761 = vadd.f32 %v760, 1.0
    %v762 = vrcp.pop %v761
    %v763 = vmul.f32 1.0, %v762
    %v764 = vtanh.pop %v724
    %v765 = vmul.f32 %v763, %v580
    %767 = vrot.lane.b32.xlu0 %v764, 64
    %v768 = vpop.permute.xlu0 %767
    %v770 = vmul.f32 %v763, %v768
    %772 = vrot.lane.b32.xlu0 %v770, 32
    %v773 = vpop.permute.xlu0 %772
    %v775 = vadd.f32 %v765, %v773
    %v776 = vtanh.pop %v775
    %778 = vrot.lane.b32.xlu0 %v776, 64
    %v779 = vpop.permute.xlu0 %778
    %v781 = vmul.f32 %v763, %v779
    %v782 = vsel %vm726, 1, 0
    %783 = vset.pattern.permute.xlu0 0
    %784 = vperm.xlu0 %783, %v782
    %v785 = vpop.permute.xlu0 %784
    %vm786 = vcmp.eq.s32.totalorder %v785, 1
    %v787 = vsel %vm786, %v781, %v579
    %v788 = vsel %vm786, %v775, %v580
    %790 = vrot.lane.b32.xlu0 %v750, 32
    %v791 = vpop.permute.xlu0 %790
    %s793 = scalar_lea.vmem [#allocation3], 16
    %794 = vst.msk [vmem:[%s793] sm:$0xff] %vm205, %v791
    %796 = vrot.lane.b32.xlu0 %v781, 64
    %v797 = vpop.permute.xlu0 %796
    %s799 = scalar_lea.vmem [#allocation3], 40
    %800 = vst.msk [vmem:[%s799] sm:$0xff] %vm383, %v797
    %s801 = scalar_lea.vmem [#allocation2], 48
    %v802 = vld [vmem:[%s801] sm:$0xff]
    %v803 = vpack.c.bf16 %v756, %v756
    %v804 = vld [vmem:[%s3] sm:$0xf]
    %v805 = vld [vmem:[%s3 + $0x4] sm:$0xf]
    %v806 = vld [vmem:[%s3 + $0x8] sm:$0xf]
    %v807 = vld [vmem:[%s3 + $0xc] sm:$0xf]
    %809 = vrot.lane.b32.xlu0 %v803, 32
    %v810 = vpop.permute.xlu0 %809
    %v815 = vunpack.c.l.b16 %v804
    %v816 = vunpack.c.l.b16 %v805
    %v817 = vunpack.c.l.b16 %v806
    %v818 = vunpack.c.l.b16 %v807
    %v819 = vpack.c.b16 %v816, %v815
    %v820 = vpack.c.b16 %v818, %v817
    %v824 = vsel %vm205, %v810, 0
    %826 = vmatprep.subr.bf16.mxu0 0
    %827 = vmatpush1.bf16.msra.mxu0 %v819
    %828 = vmatprep.subr.bf16.mxu0 0
    %829 = vmatpush1.bf16.msra.mxu0 %v820
    %830 = vmatprep.subr.bf16.mxu0 0
    %831 = vmatpush1.bf16.msra.mxu0 0
    %832 = vmatprep.subr.bf16.mxu0 0
    %833 = vmatpush1.bf16.msra.mxu0 0
    %834 = vmatprep.subr.bf16.mxu0 0
    %835 = vmatpush1.bf16.msra.mxu0 0
    %836 = vmatprep.subr.bf16.mxu0 0
    %837 = vmatpush1.bf16.msra.mxu0 0
    %838 = vmatprep.subr.bf16.mxu0 0
    %839 = vmatpush1.bf16.msra.mxu0 0
    %840 = vmatprep.subr.bf16.mxu0 0
    %841 = vmatpush1.bf16.msra.mxu0 0
    %842 = vmatprep.subr.bf16.mxu0 0
    %843 = vmatpush1.bf16.msra.mxu0 0
    %844 = vmatprep.subr.bf16.mxu0 0
    %845 = vmatpush1.bf16.msra.mxu0 0
    %846 = vmatprep.subr.bf16.mxu0 0
    %847 = vmatpush1.bf16.msra.mxu0 0
    %848 = vmatprep.subr.bf16.mxu0 0
    %849 = vmatpush1.bf16.msra.mxu0 0
    %850 = vmatprep.subr.bf16.mxu0 0
    %851 = vmatpush1.bf16.msra.mxu0 0
    %852 = vmatprep.subr.bf16.mxu0 0
    %853 = vmatpush1.bf16.msra.mxu0 0
    %854 = vmatprep.subr.bf16.mxu0 0
    %855 = vmatpush1.bf16.msra.mxu0 0
    %856 = vmatprep.subr.bf16.mxu0 0
    %857 = vmatpush1.bf16.msra.mxu0 0
    %858 = vmatprep.mubr.bf16.mxu0 0
    %859 = vmatmul.mubr.bf16.gmra.mrb[0].mxu0 %v824
    %v860 = vpop.f32.mrb[0].mxu0
    %v861 = vadd.f32 0.0, %v860
    %v862 = vpop.f32.mrb[0].mxu0
    %v863 = vpop.f32.mrb[0].mxu0
    %v864 = vpop.f32.mrb[0].mxu0
    %865 = vdwg.mxu0
    %v866 = vadd.f32 %v802, %v861
    %s867 = scalar_lea.vmem [#allocation2], 64
    %v868 = vld [vmem:[%s867 + $0x8] sm:$0xff]
    %v869 = vpack.c.bf16 %v787, %v787
    %v870 = vld [vmem:[%s4] sm:$0xf]
    %v871 = vld [vmem:[%s4 + $0x4] sm:$0xf]
    %v872 = vld [vmem:[%s4 + $0x8] sm:$0xf]
    %v873 = vld [vmem:[%s4 + $0xc] sm:$0xf]
    %875 = vrot.lane.b32.xlu0 %v869, 32
    %v876 = vpop.permute.xlu0 %875
    %v881 = vunpack.c.l.b16 %v870
    %v882 = vunpack.c.l.b16 %v871
    %v883 = vunpack.c.l.b16 %v872
    %v884 = vunpack.c.l.b16 %v873
    %v885 = vpack.c.b16 %v882, %v881
    %v886 = vpack.c.b16 %v884, %v883
    %v890 = vsel %vm205, %v876, 0
    %892 = vmatprep.subr.bf16.mxu0 0
    %893 = vmatpush1.bf16.msra.mxu0 %v885
    %894 = vmatprep.subr.bf16.mxu0 0
    %895 = vmatpush1.bf16.msra.mxu0 %v886
    %896 = vmatprep.subr.bf16.mxu0 0
    %897 = vmatpush1.bf16.msra.mxu0 0
    %898 = vmatprep.subr.bf16.mxu0 0
    %899 = vmatpush1.bf16.msra.mxu0 0
    %900 = vmatprep.subr.bf16.mxu0 0
    %901 = vmatpush1.bf16.msra.mxu0 0
    %902 = vmatprep.subr.bf16.mxu0 0
    %903 = vmatpush1.bf16.msra.mxu0 0
    %904 = vmatprep.subr.bf16.mxu0 0
    %905 = vmatpush1.bf16.msra.mxu0 0
    %906 = vmatprep.subr.bf16.mxu0 0
    %907 = vmatpush1.bf16.msra.mxu0 0
    %908 = vmatprep.subr.bf16.mxu0 0
    %909 = vmatpush1.bf16.msra.mxu0 0
    %910 = vmatprep.subr.bf16.mxu0 0
    %911 = vmatpush1.bf16.msra.mxu0 0
    %912 = vmatprep.subr.bf16.mxu0 0
    %913 = vmatpush1.bf16.msra.mxu0 0
    %914 = vmatprep.subr.bf16.mxu0 0
    %915 = vmatpush1.bf16.msra.mxu0 0
    %916 = vmatprep.subr.bf16.mxu0 0
    %917 = vmatpush1.bf16.msra.mxu0 0
    %918 = vmatprep.subr.bf16.mxu0 0
    %919 = vmatpush1.bf16.msra.mxu0 0
    %920 = vmatprep.subr.bf16.mxu0 0
    %921 = vmatpush1.bf16.msra.mxu0 0
    %922 = vmatprep.subr.bf16.mxu0 0
    %923 = vmatpush1.bf16.msra.mxu0 0
    %924 = vmatprep.mubr.bf16.mxu0 0
    %925 = vmatmul.mubr.bf16.gmra.mrb[0].mxu0 %v890
    %v926 = vpop.f32.mrb[0].mxu0
    %v927 = vadd.f32 0.0, %v926
    %v928 = vpop.f32.mrb[0].mxu0
    %v929 = vpop.f32.mrb[0].mxu0
    %v930 = vpop.f32.mrb[0].mxu0
    %931 = vdwg.mxu0
    %v932 = vadd.f32 %v868, %v927
    %vm933 = vcmp.gt.s32.totalorder %v187, 3
    %vm934 = vcmp.gt.s32.totalorder %v187, 4
    %v935 = vxor.u32 %v866, 2147483648
    %v936 = vmul.f32 %v935, 1.442695
    %v937 = vpow.pop %v936
    %v938 = vadd.f32 %v937, 1.0
    %v939 = vrcp.pop %v938
    %v940 = vmul.f32 1.0, %v939
    %v941 = vtanh.pop %v866
    %v942 = vmul.f32 %v940, %v757
    %944 = vrot.lane.b32.xlu0 %v941, 64
    %v945 = vpop.permute.xlu0 %944
    %v947 = vmul.f32 %v940, %v945
    %949 = vrot.lane.b32.xlu0 %v947, 32
    %v950 = vpop.permute.xlu0 %949
    %v952 = vadd.f32 %v942, %v950
    %v953 = vtanh.pop %v952
    %955 = vrot.lane.b32.xlu0 %v953, 64
    %v956 = vpop.permute.xlu0 %955
    %v958 = vmul.f32 %v940, %v956
    %v959 = vsel %vm933, 1, 0
    %960 = vset.pattern.permute.xlu0 0
    %961 = vperm.xlu0 %960, %v959
    %v962 = vpop.permute.xlu0 %961
    %vm963 = vcmp.eq.s32.totalorder %v962, 1
    %v964 = vsel %vm963, %v958, %v756
    %v965 = vsel %vm963, %v952, %v757
    %v966 = vxor.u32 %v932, 2147483648
    %v967 = vmul.f32 %v966, 1.442695
    %v968 = vpow.pop %v967
    %v969 = vadd.f32 %v968, 1.0
    %v970 = vrcp.pop %v969
    %v971 = vmul.f32 1.0, %v970
    %v972 = vtanh.pop %v932
    %v973 = vmul.f32 %v971, %v788
    %975 = vrot.lane.b32.xlu0 %v972, 64
    %v976 = vpop.permute.xlu0 %975
    %v978 = vmul.f32 %v971, %v976
    %980 = vrot.lane.b32.xlu0 %v978, 32
    %v981 = vpop.permute.xlu0 %980
    %v983 = vadd.f32 %v973, %v981
    %v984 = vtanh.pop %v983
    %986 = vrot.lane.b32.xlu0 %v984, 64
    %v987 = vpop.permute.xlu0 %986
    %v989 = vmul.f32 %v971, %v987
    %v990 = vsel %vm934, 1, 0
    %991 = vset.pattern.permute.xlu0 0
    %992 = vperm.xlu0 %991, %v990
    %v993 = vpop.permute.xlu0 %992
    %vm994 = vcmp.eq.s32.totalorder %v993, 1
    %v995 = vsel %vm994, %v989, %v787
    %v996 = vsel %vm994, %v983, %v788
    %998 = vrot.lane.b32.xlu0 %v958, 32
    %v999 = vpop.permute.xlu0 %998
    %s1001 = scalar_lea.vmem [#allocation3], 24
    %1002 = vst.msk [vmem:[%s1001] sm:$0xff] %vm205, %v999
    %1004 = vrot.lane.b32.xlu0 %v989, 64
    %v1005 = vpop.permute.xlu0 %1004
    %s1007 = scalar_lea.vmem [#allocation3], 32
    %1008 = vst.msk [vmem:[%s1007] sm:$0xff] %vm383, %v1005
    %v1009 = vld [vmem:[%s867] sm:$0xff]
    %v1010 = vpack.c.bf16 %v964, %v964
    %v1011 = vld [vmem:[%s3] sm:$0xf]
    %v1012 = vld [vmem:[%s3 + $0x4] sm:$0xf]
    %v1013 = vld [vmem:[%s3 + $0x8] sm:$0xf]
    %v1014 = vld [vmem:[%s3 + $0xc] sm:$0xf]
    %1016 = vrot.lane.b32.xlu0 %v1010, 32
    %v1017 = vpop.permute.xlu0 %1016
    %v1022 = vunpack.c.l.b16 %v1011
    %v1023 = vunpack.c.l.b16 %v1012
    %v1024 = vunpack.c.l.b16 %v1013
    %v1025 = vunpack.c.l.b16 %v1014
    %v1026 = vpack.c.b16 %v1023, %v1022
    %v1027 = vpack.c.b16 %v1025, %v1024
    %v1031 = vsel %vm205, %v1017, 0
    %1033 = vmatprep.subr.bf16.mxu0 0
    %1034 = vmatpush1.bf16.msra.mxu0 %v1026
    %1035 = vmatprep.subr.bf16.mxu0 0
    %1036 = vmatpush1.bf16.msra.mxu0 %v1027
    %1037 = vmatprep.subr.bf16.mxu0 0
    %1038 = vmatpush1.bf16.msra.mxu0 0
    %1039 = vmatprep.subr.bf16.mxu0 0
    %1040 = vmatpush1.bf16.msra.mxu0 0
    %1041 = vmatprep.subr.bf16.mxu0 0
    %1042 = vmatpush1.bf16.msra.mxu0 0
    %1043 = vmatprep.subr.bf16.mxu0 0
    %1044 = vmatpush1.bf16.msra.mxu0 0
    %1045 = vmatprep.subr.bf16.mxu0 0
    %1046 = vmatpush1.bf16.msra.mxu0 0
    %1047 = vmatprep.subr.bf16.mxu0 0
    %1048 = vmatpush1.bf16.msra.mxu0 0
    %1049 = vmatprep.subr.bf16.mxu0 0
    %1050 = vmatpush1.bf16.msra.mxu0 0
    %1051 = vmatprep.subr.bf16.mxu0 0
    %1052 = vmatpush1.bf16.msra.mxu0 0
    %1053 = vmatprep.subr.bf16.mxu0 0
    %1054 = vmatpush1.bf16.msra.mxu0 0
    %1055 = vmatprep.subr.bf16.mxu0 0
    %1056 = vmatpush1.bf16.msra.mxu0 0
    %1057 = vmatprep.subr.bf16.mxu0 0
    %1058 = vmatpush1.bf16.msra.mxu0 0
    %1059 = vmatprep.subr.bf16.mxu0 0
    %1060 = vmatpush1.bf16.msra.mxu0 0
    %1061 = vmatprep.subr.bf16.mxu0 0
    %1062 = vmatpush1.bf16.msra.mxu0 0
    %1063 = vmatprep.subr.bf16.mxu0 0
    %1064 = vmatpush1.bf16.msra.mxu0 0
    %1065 = vmatprep.mubr.bf16.mxu0 0
    %1066 = vmatmul.mubr.bf16.gmra.mrb[0].mxu0 %v1031
    %v1067 = vpop.f32.mrb[0].mxu0
    %v1068 = vadd.f32 0.0, %v1067
    %v1069 = vpop.f32.mrb[0].mxu0
    %v1070 = vpop.f32.mrb[0].mxu0
    %v1071 = vpop.f32.mrb[0].mxu0
    %1072 = vdwg.mxu0
    %v1073 = vadd.f32 %v1009, %v1068
    %v1074 = vld [vmem:[%s801 + $0x8] sm:$0xff]
    %v1075 = vpack.c.bf16 %v995, %v995
    %v1076 = vld [vmem:[%s4] sm:$0xf]
    %v1077 = vld [vmem:[%s4 + $0x4] sm:$0xf]
    %v1078 = vld [vmem:[%s4 + $0x8] sm:$0xf]
    %v1079 = vld [vmem:[%s4 + $0xc] sm:$0xf]
    %1081 = vrot.lane.b32.xlu0 %v1075, 32
    %v1082 = vpop.permute.xlu0 %1081
    %v1087 = vunpack.c.l.b16 %v1076
    %v1088 = vunpack.c.l.b16 %v1077
    %v1089 = vunpack.c.l.b16 %v1078
    %v1090 = vunpack.c.l.b16 %v1079
    %v1091 = vpack.c.b16 %v1088, %v1087
    %v1092 = vpack.c.b16 %v1090, %v1089
    %v1096 = vsel %vm205, %v1082, 0
    %1098 = vmatprep.subr.bf16.mxu0 0
    %1099 = vmatpush1.bf16.msra.mxu0 %v1091
    %1100 = vmatprep.subr.bf16.mxu0 0
    %1101 = vmatpush1.bf16.msra.mxu0 %v1092
    %1102 = vmatprep.subr.bf16.mxu0 0
    %1103 = vmatpush1.bf16.msra.mxu0 0
    %1104 = vmatprep.subr.bf16.mxu0 0
    %1105 = vmatpush1.bf16.msra.mxu0 0
    %1106 = vmatprep.subr.bf16.mxu0 0
    %1107 = vmatpush1.bf16.msra.mxu0 0
    %1108 = vmatprep.subr.bf16.mxu0 0
    %1109 = vmatpush1.bf16.msra.mxu0 0
    %1110 = vmatprep.subr.bf16.mxu0 0
    %1111 = vmatpush1.bf16.msra.mxu0 0
    %1112 = vmatprep.subr.bf16.mxu0 0
    %1113 = vmatpush1.bf16.msra.mxu0 0
    %1114 = vmatprep.subr.bf16.mxu0 0
    %1115 = vmatpush1.bf16.msra.mxu0 0
    %1116 = vmatprep.subr.bf16.mxu0 0
    %1117 = vmatpush1.bf16.msra.mxu0 0
    %1118 = vmatprep.subr.bf16.mxu0 0
    %1119 = vmatpush1.bf16.msra.mxu0 0
    %1120 = vmatprep.subr.bf16.mxu0 0
    %1121 = vmatpush1.bf16.msra.mxu0 0
    %1122 = vmatprep.subr.bf16.mxu0 0
    %1123 = vmatpush1.bf16.msra.mxu0 0
    %1124 = vmatprep.subr.bf16.mxu0 0
    %1125 = vmatpush1.bf16.msra.mxu0 0
    %1126 = vmatprep.subr.bf16.mxu0 0
    %1127 = vmatpush1.bf16.msra.mxu0 0
    %1128 = vmatprep.subr.bf16.mxu0 0
    %1129 = vmatpush1.bf16.msra.mxu0 0
    %1130 = vmatprep.mubr.bf16.mxu0 0
    %1131 = vmatmul.mubr.bf16.gmra.mrb[0].mxu0 %v1096
    %v1132 = vpop.f32.mrb[0].mxu0
    %v1133 = vadd.f32 0.0, %v1132
    %v1134 = vpop.f32.mrb[0].mxu0
    %v1135 = vpop.f32.mrb[0].mxu0
    %v1136 = vpop.f32.mrb[0].mxu0
    %1137 = vdwg.mxu0
    %v1138 = vadd.f32 %v1074, %v1133
    %v1139 = vxor.u32 %v1073, 2147483648
    %v1140 = vmul.f32 %v1139, 1.442695
    %v1141 = vpow.pop %v1140
    %v1142 = vadd.f32 %v1141, 1.0
    %v1143 = vrcp.pop %v1142
    %v1144 = vmul.f32 1.0, %v1143
    %v1145 = vtanh.pop %v1073
    %v1146 = vmul.f32 %v1144, %v965
    %1148 = vrot.lane.b32.xlu0 %v1145, 64
    %v1149 = vpop.permute.xlu0 %1148
    %v1151 = vmul.f32 %v1144, %v1149
    %1153 = vrot.lane.b32.xlu0 %v1151, 32
    %v1154 = vpop.permute.xlu0 %1153
    %v1156 = vadd.f32 %v1146, %v1154
    %v1157 = vtanh.pop %v1156
    %1159 = vrot.lane.b32.xlu0 %v1157, 64
    %v1160 = vpop.permute.xlu0 %1159
    %v1162 = vmul.f32 %v1144, %v1160
    %v1163 = vsel %vm994, %v1162, %v964
    %v1164 = vsel %vm994, %v1156, %v965
    %v1165 = vxor.u32 %v1138, 2147483648
    %v1166 = vmul.f32 %v1165, 1.442695
    %v1167 = vpow.pop %v1166
    %v1168 = vadd.f32 %v1167, 1.0
    %v1169 = vrcp.pop %v1168
    %v1170 = vmul.f32 1.0, %v1169
    %v1171 = vtanh.pop %v1138
    %v1172 = vmul.f32 %v1170, %v996
    %1174 = vrot.lane.b32.xlu0 %v1171, 64
    %v1175 = vpop.permute.xlu0 %1174
    %v1177 = vmul.f32 %v1170, %v1175
    %1179 = vrot.lane.b32.xlu0 %v1177, 32
    %v1180 = vpop.permute.xlu0 %1179
    %v1182 = vadd.f32 %v1172, %v1180
    %v1183 = vtanh.pop %v1182
    %1185 = vrot.lane.b32.xlu0 %v1183, 64
    %v1186 = vpop.permute.xlu0 %1185
    %v1188 = vmul.f32 %v1170, %v1186
    %v1189 = vsel %vm963, %v1188, %v995
    %v1190 = vsel %vm963, %v1182, %v996
    %1192 = vrot.lane.b32.xlu0 %v1162, 32
    %v1193 = vpop.permute.xlu0 %1192
    %1195 = vst.msk [vmem:[%s1007] sm:$0xff] %vm205, %v1193
    %1197 = vrot.lane.b32.xlu0 %v1188, 64
    %v1198 = vpop.permute.xlu0 %1197
    %1200 = vst.msk [vmem:[%s1001] sm:$0xff] %vm383, %v1198
    %v1201 = vld [vmem:[%s659] sm:$0xff]
    %v1202 = vpack.c.bf16 %v1163, %v1163
    %v1203 = vld [vmem:[%s3] sm:$0xf]
    %v1204 = vld [vmem:[%s3 + $0x4] sm:$0xf]
    %v1205 = vld [vmem:[%s3 + $0x8] sm:$0xf]
    %v1206 = vld [vmem:[%s3 + $0xc] sm:$0xf]
    %1208 = vrot.lane.b32.xlu0 %v1202, 32
    %v1209 = vpop.permute.xlu0 %1208
    %v1214 = vunpack.c.l.b16 %v1203
    %v1215 = vunpack.c.l.b16 %v1204
    %v1216 = vunpack.c.l.b16 %v1205
    %v1217 = vunpack.c.l.b16 %v1206
    %v1218 = vpack.c.b16 %v1215, %v1214
    %v1219 = vpack.c.b16 %v1217, %v1216
    %v1223 = vsel %vm205, %v1209, 0
    %1225 = vmatprep.subr.bf16.mxu0 0
    %1226 = vmatpush1.bf16.msra.mxu0 %v1218
    %1227 = vmatprep.subr.bf16.mxu0 0
    %1228 = vmatpush1.bf16.msra.mxu0 %v1219
    %1229 = vmatprep.subr.bf16.mxu0 0
    %1230 = vmatpush1.bf16.msra.mxu0 0
    %1231 = vmatprep.subr.bf16.mxu0 0
    %1232 = vmatpush1.bf16.msra.mxu0 0
    %1233 = vmatprep.subr.bf16.mxu0 0
    %1234 = vmatpush1.bf16.msra.mxu0 0
    %1235 = vmatprep.subr.bf16.mxu0 0
    %1236 = vmatpush1.bf16.msra.mxu0 0
    %1237 = vmatprep.subr.bf16.mxu0 0
    %1238 = vmatpush1.bf16.msra.mxu0 0
    %1239 = vmatprep.subr.bf16.mxu0 0
    %1240 = vmatpush1.bf16.msra.mxu0 0
    %1241 = vmatprep.subr.bf16.mxu0 0
    %1242 = vmatpush1.bf16.msra.mxu0 0
    %1243 = vmatprep.subr.bf16.mxu0 0
    %1244 = vmatpush1.bf16.msra.mxu0 0
    %1245 = vmatprep.subr.bf16.mxu0 0
    %1246 = vmatpush1.bf16.msra.mxu0 0
    %1247 = vmatprep.subr.bf16.mxu0 0
    %1248 = vmatpush1.bf16.msra.mxu0 0
    %1249 = vmatprep.subr.bf16.mxu0 0
    %1250 = vmatpush1.bf16.msra.mxu0 0
    %1251 = vmatprep.subr.bf16.mxu0 0
    %1252 = vmatpush1.bf16.msra.mxu0 0
    %1253 = vmatprep.subr.bf16.mxu0 0
    %1254 = vmatpush1.bf16.msra.mxu0 0
    %1255 = vmatprep.subr.bf16.mxu0 0
    %1256 = vmatpush1.bf16.msra.mxu0 0
    %1257 = vmatprep.mubr.bf16.mxu0 0
    %1258 = vmatmul.mubr.bf16.gmra.mrb[0].mxu0 %v1223
    %v1259 = vpop.f32.mrb[0].mxu0
    %v1260 = vadd.f32 0.0, %v1259
    %v1261 = vpop.f32.mrb[0].mxu0
    %v1262 = vpop.f32.mrb[0].mxu0
    %v1263 = vpop.f32.mrb[0].mxu0
    %1264 = vdwg.mxu0
    %v1265 = vadd.f32 %v1201, %v1260
    %v1266 = vld [vmem:[%s593 + $0x8] sm:$0xff]
    %v1267 = vpack.c.bf16 %v1189, %v1189
    %v1268 = vld [vmem:[%s4] sm:$0xf]
    %v1269 = vld [vmem:[%s4 + $0x4] sm:$0xf]
    %v1270 = vld [vmem:[%s4 + $0x8] sm:$0xf]
    %v1271 = vld [vmem:[%s4 + $0xc] sm:$0xf]
    %1273 = vrot.lane.b32.xlu0 %v1267, 32
    %v1274 = vpop.permute.xlu0 %1273
    %v1279 = vunpack.c.l.b16 %v1268
    %v1280 = vunpack.c.l.b16 %v1269
    %v1281 = vunpack.c.l.b16 %v1270
    %v1282 = vunpack.c.l.b16 %v1271
    %v1283 = vpack.c.b16 %v1280, %v1279
    %v1284 = vpack.c.b16 %v1282, %v1281
    %v1288 = vsel %vm205, %v1274, 0
    %1290 = vmatprep.subr.bf16.mxu0 0
    %1291 = vmatpush1.bf16.msra.mxu0 %v1283
    %1292 = vmatprep.subr.bf16.mxu0 0
    %1293 = vmatpush1.bf16.msra.mxu0 %v1284
    %1294 = vmatprep.subr.bf16.mxu0 0
    %1295 = vmatpush1.bf16.msra.mxu0 0
    %1296 = vmatprep.subr.bf16.mxu0 0
    %1297 = vmatpush1.bf16.msra.mxu0 0
    %1298 = vmatprep.subr.bf16.mxu0 0
    %1299 = vmatpush1.bf16.msra.mxu0 0
    %1300 = vmatprep.subr.bf16.mxu0 0
    %1301 = vmatpush1.bf16.msra.mxu0 0
    %1302 = vmatprep.subr.bf16.mxu0 0
    %1303 = vmatpush1.bf16.msra.mxu0 0
    %1304 = vmatprep.subr.bf16.mxu0 0
    %1305 = vmatpush1.bf16.msra.mxu0 0
    %1306 = vmatprep.subr.bf16.mxu0 0
    %1307 = vmatpush1.bf16.msra.mxu0 0
    %1308 = vmatprep.subr.bf16.mxu0 0
    %1309 = vmatpush1.bf16.msra.mxu0 0
    %1310 = vmatprep.subr.bf16.mxu0 0
    %1311 = vmatpush1.bf16.msra.mxu0 0
    %1312 = vmatprep.subr.bf16.mxu0 0
    %1313 = vmatpush1.bf16.msra.mxu0 0
    %1314 = vmatprep.subr.bf16.mxu0 0
    %1315 = vmatpush1.bf16.msra.mxu0 0
    %1316 = vmatprep.subr.bf16.mxu0 0
    %1317 = vmatpush1.bf16.msra.mxu0 0
    %1318 = vmatprep.subr.bf16.mxu0 0
    %1319 = vmatpush1.bf16.msra.mxu0 0
    %1320 = vmatprep.subr.bf16.mxu0 0
    %1321 = vmatpush1.bf16.msra.mxu0 0
    %1322 = vmatprep.mubr.bf16.mxu0 0
    %1323 = vmatmul.mubr.bf16.gmra.mrb[0].mxu0 %v1288
    %v1324 = vpop.f32.mrb[0].mxu0
    %v1325 = vadd.f32 0.0, %v1324
    %v1326 = vpop.f32.mrb[0].mxu0
    %v1327 = vpop.f32.mrb[0].mxu0
    %v1328 = vpop.f32.mrb[0].mxu0
    %1329 = vdwg.mxu0
    %v1330 = vadd.f32 %v1266, %v1325
    %v1331 = vxor.u32 %v1265, 2147483648
    %v1332 = vmul.f32 %v1331, 1.442695
    %v1333 = vpow.pop %v1332
    %v1334 = vadd.f32 %v1333, 1.0
    %v1335 = vrcp.pop %v1334
    %v1336 = vmul.f32 1.0, %v1335
    %v1337 = vtanh.pop %v1265
    %v1338 = vmul.f32 %v1336, %v1164
    %1340 = vrot.lane.b32.xlu0 %v1337, 64
    %v1341 = vpop.permute.xlu0 %1340
    %v1343 = vmul.f32 %v1336, %v1341
    %1345 = vrot.lane.b32.xlu0 %v1343, 32
    %v1346 = vpop.permute.xlu0 %1345
    %v1348 = vadd.f32 %v1338, %v1346
    %v1349 = vtanh.pop %v1348
    %1351 = vrot.lane.b32.xlu0 %v1349, 64
    %v1352 = vpop.permute.xlu0 %1351
    %v1354 = vmul.f32 %v1336, %v1352
    %v1355 = vsel %vm786, %v1354, %v1163
    %v1356 = vsel %vm786, %v1348, %v1164
    %v1357 = vxor.u32 %v1330, 2147483648
    %v1358 = vmul.f32 %v1357, 1.442695
    %v1359 = vpow.pop %v1358
    %v1360 = vadd.f32 %v1359, 1.0
    %v1361 = vrcp.pop %v1360
    %v1362 = vmul.f32 1.0, %v1361
    %v1363 = vtanh.pop %v1330
    %v1364 = vmul.f32 %v1362, %v1190
    %1366 = vrot.lane.b32.xlu0 %v1363, 64
    %v1367 = vpop.permute.xlu0 %1366
    %v1369 = vmul.f32 %v1362, %v1367
    %1371 = vrot.lane.b32.xlu0 %v1369, 32
    %v1372 = vpop.permute.xlu0 %1371
    %v1374 = vadd.f32 %v1364, %v1372
    %v1375 = vtanh.pop %v1374
    %1377 = vrot.lane.b32.xlu0 %v1375, 64
    %v1378 = vpop.permute.xlu0 %1377
    %v1380 = vmul.f32 %v1362, %v1378
    %v1381 = vsel %vm755, %v1380, %v1189
    %v1382 = vsel %vm755, %v1374, %v1190
    %1384 = vrot.lane.b32.xlu0 %v1354, 32
    %v1385 = vpop.permute.xlu0 %1384
    %1387 = vst.msk [vmem:[%s799] sm:$0xff] %vm205, %v1385
    %1389 = vrot.lane.b32.xlu0 %v1380, 64
    %v1390 = vpop.permute.xlu0 %1389
    %1392 = vst.msk [vmem:[%s793] sm:$0xff] %vm383, %v1390
    %v1393 = vld [vmem:[%s451] sm:$0xff]
    %v1394 = vpack.c.bf16 %v1355, %v1355
    %v1395 = vld [vmem:[%s3] sm:$0xf]
    %v1396 = vld [vmem:[%s3 + $0x4] sm:$0xf]
    %v1397 = vld [vmem:[%s3 + $0x8] sm:$0xf]
    %v1398 = vld [vmem:[%s3 + $0xc] sm:$0xf]
    %1400 = vrot.lane.b32.xlu0 %v1394, 32
    %v1401 = vpop.permute.xlu0 %1400
    %v1406 = vunpack.c.l.b16 %v1395
    %v1407 = vunpack.c.l.b16 %v1396
    %v1408 = vunpack.c.l.b16 %v1397
    %v1409 = vunpack.c.l.b16 %v1398
    %v1410 = vpack.c.b16 %v1407, %v1406
    %v1411 = vpack.c.b16 %v1409, %v1408
    %v1415 = vsel %vm205, %v1401, 0
    %1417 = vmatprep.subr.bf16.mxu0 0
    %1418 = vmatpush1.bf16.msra.mxu0 %v1410
    %1419 = vmatprep.subr.bf16.mxu0 0
    %1420 = vmatpush1.bf16.msra.mxu0 %v1411
    %1421 = vmatprep.subr.bf16.mxu0 0
    %1422 = vmatpush1.bf16.msra.mxu0 0
    %1423 = vmatprep.subr.bf16.mxu0 0
    %1424 = vmatpush1.bf16.msra.mxu0 0
    %1425 = vmatprep.subr.bf16.mxu0 0
    %1426 = vmatpush1.bf16.msra.mxu0 0
    %1427 = vmatprep.subr.bf16.mxu0 0
    %1428 = vmatpush1.bf16.msra.mxu0 0
    %1429 = vmatprep.subr.bf16.mxu0 0
    %1430 = vmatpush1.bf16.msra.mxu0 0
    %1431 = vmatprep.subr.bf16.mxu0 0
    %1432 = vmatpush1.bf16.msra.mxu0 0
    %1433 = vmatprep.subr.bf16.mxu0 0
    %1434 = vmatpush1.bf16.msra.mxu0 0
    %1435 = vmatprep.subr.bf16.mxu0 0
    %1436 = vmatpush1.bf16.msra.mxu0 0
    %1437 = vmatprep.subr.bf16.mxu0 0
    %1438 = vmatpush1.bf16.msra.mxu0 0
    %1439 = vmatprep.subr.bf16.mxu0 0
    %1440 = vmatpush1.bf16.msra.mxu0 0
    %1441 = vmatprep.subr.bf16.mxu0 0
    %1442 = vmatpush1.bf16.msra.mxu0 0
    %1443 = vmatprep.subr.bf16.mxu0 0
    %1444 = vmatpush1.bf16.msra.mxu0 0
    %1445 = vmatprep.subr.bf16.mxu0 0
    %1446 = vmatpush1.bf16.msra.mxu0 0
    %1447 = vmatprep.subr.bf16.mxu0 0
    %1448 = vmatpush1.bf16.msra.mxu0 0
    %1449 = vmatprep.mubr.bf16.mxu0 0
    %1450 = vmatmul.mubr.bf16.gmra.mrb[0].mxu0 %v1415
    %v1451 = vpop.f32.mrb[0].mxu0
    %v1452 = vadd.f32 0.0, %v1451
    %v1453 = vpop.f32.mrb[0].mxu0
    %v1454 = vpop.f32.mrb[0].mxu0
    %v1455 = vpop.f32.mrb[0].mxu0
    %1456 = vdwg.mxu0
    %v1457 = vadd.f32 %v1393, %v1452
    %v1458 = vld [vmem:[%s385 + $0x8] sm:$0xff]
    %v1459 = vpack.c.bf16 %v1381, %v1381
    %v1460 = vld [vmem:[%s4] sm:$0xf]
    %v1461 = vld [vmem:[%s4 + $0x4] sm:$0xf]
    %v1462 = vld [vmem:[%s4 + $0x8] sm:$0xf]
    %v1463 = vld [vmem:[%s4 + $0xc] sm:$0xf]
    %1465 = vrot.lane.b32.xlu0 %v1459, 32
    %v1466 = vpop.permute.xlu0 %1465
    %v1471 = vunpack.c.l.b16 %v1460
    %v1472 = vunpack.c.l.b16 %v1461
    %v1473 = vunpack.c.l.b16 %v1462
    %v1474 = vunpack.c.l.b16 %v1463
    %v1475 = vpack.c.b16 %v1472, %v1471
    %v1476 = vpack.c.b16 %v1474, %v1473
    %v1480 = vsel %vm205, %v1466, 0
    %1482 = vmatprep.subr.bf16.mxu0 0
    %1483 = vmatpush1.bf16.msra.mxu0 %v1475
    %1484 = vmatprep.subr.bf16.mxu0 0
    %1485 = vmatpush1.bf16.msra.mxu0 %v1476
    %1486 = vmatprep.subr.bf16.mxu0 0
    %1487 = vmatpush1.bf16.msra.mxu0 0
    %1488 = vmatprep.subr.bf16.mxu0 0
    %1489 = vmatpush1.bf16.msra.mxu0 0
    %1490 = vmatprep.subr.bf16.mxu0 0
    %1491 = vmatpush1.bf16.msra.mxu0 0
    %1492 = vmatprep.subr.bf16.mxu0 0
    %1493 = vmatpush1.bf16.msra.mxu0 0
    %1494 = vmatprep.subr.bf16.mxu0 0
    %1495 = vmatpush1.bf16.msra.mxu0 0
    %1496 = vmatprep.subr.bf16.mxu0 0
    %1497 = vmatpush1.bf16.msra.mxu0 0
    %1498 = vmatprep.subr.bf16.mxu0 0
    %1499 = vmatpush1.bf16.msra.mxu0 0
    %1500 = vmatprep.subr.bf16.mxu0 0
    %1501 = vmatpush1.bf16.msra.mxu0 0
    %1502 = vmatprep.subr.bf16.mxu0 0
    %1503 = vmatpush1.bf16.msra.mxu0 0
    %1504 = vmatprep.subr.bf16.mxu0 0
    %1505 = vmatpush1.bf16.msra.mxu0 0
    %1506 = vmatprep.subr.bf16.mxu0 0
    %1507 = vmatpush1.bf16.msra.mxu0 0
    %1508 = vmatprep.subr.bf16.mxu0 0
    %1509 = vmatpush1.bf16.msra.mxu0 0
    %1510 = vmatprep.subr.bf16.mxu0 0
    %1511 = vmatpush1.bf16.msra.mxu0 0
    %1512 = vmatprep.subr.bf16.mxu0 0
    %1513 = vmatpush1.bf16.msra.mxu0 0
    %1514 = vmatprep.mubr.bf16.mxu0 0
    %1515 = vmatmul.mubr.bf16.gmra.mrb[0].mxu0 %v1480
    %v1516 = vpop.f32.mrb[0].mxu0
    %v1517 = vadd.f32 0.0, %v1516
    %v1518 = vpop.f32.mrb[0].mxu0
    %v1519 = vpop.f32.mrb[0].mxu0
    %v1520 = vpop.f32.mrb[0].mxu0
    %1521 = vdwg.mxu0
    %v1522 = vadd.f32 %v1458, %v1517
    %v1523 = vxor.u32 %v1457, 2147483648
    %v1524 = vmul.f32 %v1523, 1.442695
    %v1525 = vpow.pop %v1524
    %v1526 = vadd.f32 %v1525, 1.0
    %v1527 = vrcp.pop %v1526
    %v1528 = vmul.f32 1.0, %v1527
    %v1529 = vtanh.pop %v1457
    %v1530 = vmul.f32 %v1528, %v1356
    %1532 = vrot.lane.b32.xlu0 %v1529, 64
    %v1533 = vpop.permute.xlu0 %1532
    %v1535 = vmul.f32 %v1528, %v1533
    %1537 = vrot.lane.b32.xlu0 %v1535, 32
    %v1538 = vpop.permute.xlu0 %1537
    %v1540 = vadd.f32 %v1530, %v1538
    %v1541 = vtanh.pop %v1540
    %1543 = vrot.lane.b32.xlu0 %v1541, 64
    %v1544 = vpop.permute.xlu0 %1543
    %v1546 = vmul.f32 %v1528, %v1544
    %v1547 = vsel %vm578, %v1546, %v1355
    %v1548 = vsel %vm578, %v1540, %v1356
    %v1549 = vxor.u32 %v1522, 2147483648
    %v1550 = vmul.f32 %v1549, 1.442695
    %v1551 = vpow.pop %v1550
    %v1552 = vadd.f32 %v1551, 1.0
    %v1553 = vrcp.pop %v1552
    %v1554 = vmul.f32 1.0, %v1553
    %v1555 = vtanh.pop %v1522
    %v1556 = vmul.f32 %v1554, %v1382
    %1558 = vrot.lane.b32.xlu0 %v1555, 64
    %v1559 = vpop.permute.xlu0 %1558
    %v1561 = vmul.f32 %v1554, %v1559
    %1563 = vrot.lane.b32.xlu0 %v1561, 32
    %v1564 = vpop.permute.xlu0 %1563
    %v1566 = vadd.f32 %v1556, %v1564
    %v1567 = vtanh.pop %v1566
    %1569 = vrot.lane.b32.xlu0 %v1567, 64
    %v1570 = vpop.permute.xlu0 %1569
    %v1572 = vmul.f32 %v1554, %v1570
    %v1573 = vsel %vm547, %v1572, %v1381
    %v1574 = vsel %vm547, %v1566, %v1382
    %1576 = vrot.lane.b32.xlu0 %v1546, 32
    %v1577 = vpop.permute.xlu0 %1576
    %1579 = vst.msk [vmem:[%s591] sm:$0xff] %vm205, %v1577
    %1581 = vrot.lane.b32.xlu0 %v1572, 64
    %v1582 = vpop.permute.xlu0 %1581
    %1584 = vst.msk [vmem:[%s585] sm:$0xff] %vm383, %v1582
    %v1585 = vld [vmem:[%s250] sm:$0xff]
    %v1586 = vpack.c.bf16 %v1547, %v1547
    %v1587 = vld [vmem:[%s3] sm:$0xf]
    %v1588 = vld [vmem:[%s3 + $0x4] sm:$0xf]
    %v1589 = vld [vmem:[%s3 + $0x8] sm:$0xf]
    %v1590 = vld [vmem:[%s3 + $0xc] sm:$0xf]
    %1592 = vrot.lane.b32.xlu0 %v1586, 32
    %v1593 = vpop.permute.xlu0 %1592
    %v1598 = vunpack.c.l.b16 %v1587
    %v1599 = vunpack.c.l.b16 %v1588
    %v1600 = vunpack.c.l.b16 %v1589
    %v1601 = vunpack.c.l.b16 %v1590
    %v1602 = vpack.c.b16 %v1599, %v1598
    %v1603 = vpack.c.b16 %v1601, %v1600
    %v1607 = vsel %vm205, %v1593, 0
    %1609 = vmatprep.subr.bf16.mxu0 0
    %1610 = vmatpush1.bf16.msra.mxu0 %v1602
    %1611 = vmatprep.subr.bf16.mxu0 0
    %1612 = vmatpush1.bf16.msra.mxu0 %v1603
    %1613 = vmatprep.subr.bf16.mxu0 0
    %1614 = vmatpush1.bf16.msra.mxu0 0
    %1615 = vmatprep.subr.bf16.mxu0 0
    %1616 = vmatpush1.bf16.msra.mxu0 0
    %1617 = vmatprep.subr.bf16.mxu0 0
    %1618 = vmatpush1.bf16.msra.mxu0 0
    %1619 = vmatprep.subr.bf16.mxu0 0
    %1620 = vmatpush1.bf16.msra.mxu0 0
    %1621 = vmatprep.subr.bf16.mxu0 0
    %1622 = vmatpush1.bf16.msra.mxu0 0
    %1623 = vmatprep.subr.bf16.mxu0 0
    %1624 = vmatpush1.bf16.msra.mxu0 0
    %1625 = vmatprep.subr.bf16.mxu0 0
    %1626 = vmatpush1.bf16.msra.mxu0 0
    %1627 = vmatprep.subr.bf16.mxu0 0
    %1628 = vmatpush1.bf16.msra.mxu0 0
    %1629 = vmatprep.subr.bf16.mxu0 0
    %1630 = vmatpush1.bf16.msra.mxu0 0
    %1631 = vmatprep.subr.bf16.mxu0 0
    %1632 = vmatpush1.bf16.msra.mxu0 0
    %1633 = vmatprep.subr.bf16.mxu0 0
    %1634 = vmatpush1.bf16.msra.mxu0 0
    %1635 = vmatprep.subr.bf16.mxu0 0
    %1636 = vmatpush1.bf16.msra.mxu0 0
    %1637 = vmatprep.subr.bf16.mxu0 0
    %1638 = vmatpush1.bf16.msra.mxu0 0
    %1639 = vmatprep.subr.bf16.mxu0 0
    %1640 = vmatpush1.bf16.msra.mxu0 0
    %1641 = vmatprep.mubr.bf16.mxu0 0
    %1642 = vmatmul.mubr.bf16.gmra.mrb[0].mxu0 %v1607
    %v1643 = vpop.f32.mrb[0].mxu0
    %v1644 = vadd.f32 0.0, %v1643
    %v1645 = vpop.f32.mrb[0].mxu0
    %v1646 = vpop.f32.mrb[0].mxu0
    %v1647 = vpop.f32.mrb[0].mxu0
    %1648 = vdwg.mxu0
    %v1649 = vadd.f32 %v1585, %v1644
    %v1650 = vld [vmem:[#allocation2 + $0x8] sm:$0xff]
    %v1651 = vpack.c.bf16 %v1573, %v1573
    %v1652 = vld [vmem:[%s4] sm:$0xf]
    %v1653 = vld [vmem:[%s4 + $0x4] sm:$0xf]
    %v1654 = vld [vmem:[%s4 + $0x8] sm:$0xf]
    %v1655 = vld [vmem:[%s4 + $0xc] sm:$0xf]
    %1657 = vrot.lane.b32.xlu0 %v1651, 32
    %v1658 = vpop.permute.xlu0 %1657
    %v1663 = vunpack.c.l.b16 %v1652
    %v1664 = vunpack.c.l.b16 %v1653
    %v1665 = vunpack.c.l.b16 %v1654
    %v1666 = vunpack.c.l.b16 %v1655
    %v1667 = vpack.c.b16 %v1664, %v1663
    %v1668 = vpack.c.b16 %v1666, %v1665
    %v1672 = vsel %vm205, %v1658, 0
    %1674 = vmatprep.subr.bf16.mxu0 0
    %1675 = vmatpush1.bf16.msra.mxu0 %v1667
    %1676 = vmatprep.subr.bf16.mxu0 0
    %1677 = vmatpush1.bf16.msra.mxu0 %v1668
    %1678 = vmatprep.subr.bf16.mxu0 0
    %1679 = vmatpush1.bf16.msra.mxu0 0
    %1680 = vmatprep.subr.bf16.mxu0 0
    %1681 = vmatpush1.bf16.msra.mxu0 0
    %1682 = vmatprep.subr.bf16.mxu0 0
    %1683 = vmatpush1.bf16.msra.mxu0 0
    %1684 = vmatprep.subr.bf16.mxu0 0
    %1685 = vmatpush1.bf16.msra.mxu0 0
    %1686 = vmatprep.subr.bf16.mxu0 0
    %1687 = vmatpush1.bf16.msra.mxu0 0
    %1688 = vmatprep.subr.bf16.mxu0 0
    %1689 = vmatpush1.bf16.msra.mxu0 0
    %1690 = vmatprep.subr.bf16.mxu0 0
    %1691 = vmatpush1.bf16.msra.mxu0 0
    %1692 = vmatprep.subr.bf16.mxu0 0
    %1693 = vmatpush1.bf16.msra.mxu0 0
    %1694 = vmatprep.subr.bf16.mxu0 0
    %1695 = vmatpush1.bf16.msra.mxu0 0
    %1696 = vmatprep.subr.bf16.mxu0 0
    %1697 = vmatpush1.bf16.msra.mxu0 0
    %1698 = vmatprep.subr.bf16.mxu0 0
    %1699 = vmatpush1.bf16.msra.mxu0 0
    %1700 = vmatprep.subr.bf16.mxu0 0
    %1701 = vmatpush1.bf16.msra.mxu0 0
    %1702 = vmatprep.subr.bf16.mxu0 0
    %1703 = vmatpush1.bf16.msra.mxu0 0
    %1704 = vmatprep.subr.bf16.mxu0 0
    %1705 = vmatpush1.bf16.msra.mxu0 0
    %1706 = vmatprep.mubr.bf16.mxu0 0
    %1707 = vmatmul.mubr.bf16.gmra.mrb[0].mxu0 %v1672
    %v1708 = vpop.f32.mrb[0].mxu0
    %v1709 = vadd.f32 0.0, %v1708
    %v1710 = vpop.f32.mrb[0].mxu0
    %v1711 = vpop.f32.mrb[0].mxu0
    %v1712 = vpop.f32.mrb[0].mxu0
    %1713 = vdwg.mxu0
    %v1714 = vadd.f32 %v1650, %v1709
    %v1715 = vxor.u32 %v1649, 2147483648
    %v1716 = vmul.f32 %v1715, 1.442695
    %v1717 = vpow.pop %v1716
    %v1718 = vadd.f32 %v1717, 1.0
    %v1719 = vrcp.pop %v1718
    %v1720 = vmul.f32 1.0, %v1719
    %v1721 = vtanh.pop %v1649
    %v1722 = vmul.f32 %v1720, %v1548
    %1724 = vrot.lane.b32.xlu0 %v1721, 64
    %v1725 = vpop.permute.xlu0 %1724
    %v1727 = vmul.f32 %v1720, %v1725
    %1729 = vrot.lane.b32.xlu0 %v1727, 32
    %v1730 = vpop.permute.xlu0 %1729
    %v1732 = vadd.f32 %v1722, %v1730
    %v1733 = vtanh.pop %v1732
    %1735 = vrot.lane.b32.xlu0 %v1733, 64
    %v1736 = vpop.permute.xlu0 %1735
    %v1738 = vmul.f32 %v1720, %v1736
    %v1739 = vsel %vm370, %v1738, %v1547
    %v1740 = vsel %vm370, %v1732, %v1548
    %v1741 = vxor.u32 %v1714, 2147483648
    %v1742 = vmul.f32 %v1741, 1.442695
    %v1743 = vpow.pop %v1742
    %v1744 = vadd.f32 %v1743, 1.0
    %v1745 = vrcp.pop %v1744
    %v1746 = vmul.f32 1.0, %v1745
    %v1747 = vtanh.pop %v1714
    %v1748 = vmul.f32 %v1746, %v1574
    %1750 = vrot.lane.b32.xlu0 %v1747, 64
    %v1751 = vpop.permute.xlu0 %1750
    %v1753 = vmul.f32 %v1746, %v1751
    %1755 = vrot.lane.b32.xlu0 %v1753, 32
    %v1756 = vpop.permute.xlu0 %1755
    %v1758 = vadd.f32 %v1748, %v1756
    %v1759 = vtanh.pop %v1758
    %1761 = vrot.lane.b32.xlu0 %v1759, 64
    %v1762 = vpop.permute.xlu0 %1761
    %v1764 = vmul.f32 %v1746, %v1762
    %v1765 = vsel %vm339, %v1764, %v1573
    %v1766 = vsel %vm339, %v1758, %v1574
    %1768 = vrot.lane.b32.xlu0 %v1738, 32
    %v1769 = vpop.permute.xlu0 %1768
    %1771 = vst.msk [vmem:[%s382] sm:$0xff] %vm205, %v1769
    %1773 = vrot.lane.b32.xlu0 %v1764, 64
    %v1774 = vpop.permute.xlu0 %1773
    %1776 = vst.msk [vmem:[#allocation3] sm:$0xff] %vm383, %v1774
    %1778 = vrot.lane.b32.xlu0 %v1739, 32
    %v1779 = vpop.permute.xlu0 %1778
    %1781 = vst.msk [vmem:[#allocation5] sm:$0xff] %vm205, %v1779
    %1783 = vrot.lane.b32.xlu0 %v1765, 32
    %v1784 = vpop.permute.xlu0 %1783
    %s1786 = scalar_lea.vmem [#allocation5], 8
    %1787 = vst.msk [vmem:[%s1786] sm:$0xff] %vm205, %v1784
    %1789 = vrot.lane.b32.xlu0 %v1740, 96
    %v1790 = vpop.permute.xlu0 %1789
    %1792 = vst.msk [vmem:[#allocation7] sm:$0xff] %vm205, %v1790
    %1794 = vrot.lane.b32.xlu0 %v1766, 96
    %v1795 = vpop.permute.xlu0 %1794
    %s1797 = scalar_lea.vmem [#allocation7], 8
    %1798 = vst.msk [vmem:[%s1797] sm:$0xff] %vm205, %v1795
    %v1799 = vld [vmem:[#allocation3] sm:$0xff]
    %v1800 = vld [vmem:[#allocation3 + $0x8] sm:$0xff]
    %v1801 = vld [vmem:[#allocation3 + $0x10] sm:$0xff]
    %v1802 = vld [vmem:[#allocation3 + $0x18] sm:$0xff]
    %v1803 = vld [vmem:[#allocation3 + $0x20] sm:$0xff]
    %v1804 = vld [vmem:[#allocation3 + $0x28] sm:$0xff]
    %v1805 = vld [vmem:[#allocation3 + $0x30] sm:$0xff]
    %v1806 = vld [vmem:[#allocation3 + $0x38] sm:$0xff]
    %v1807 = vsel %vm339, %v1799, 0.0
    %v1808 = vsel %vm547, %v1800, 0.0
    %v1809 = vsel %vm755, %v1801, 0.0
    %v1810 = vsel %vm963, %v1802, 0.0
    %v1811 = vsel %vm994, %v1803, 0.0
    %v1812 = vsel %vm786, %v1804, 0.0
    %v1813 = vsel %vm578, %v1805, 0.0
    %v1814 = vsel %vm370, %v1806, 0.0
    %vm1815 = vcmask 523264
    %1816 = vst.msk [vmem:[#allocation3] sm:$0xff] %vm1815, %v1807
    %1817 = vst.msk [vmem:[#allocation3 + $0x8] sm:$0xff] %vm1815, %v1808
    %1818 = vst.msk [vmem:[#allocation3 + $0x10] sm:$0xff] %vm1815, %v1809
    %1819 = vst.msk [vmem:[#allocation3 + $0x18] sm:$0xff] %vm1815, %v1810
    %1820 = vst.msk [vmem:[#allocation3 + $0x20] sm:$0xff] %vm1815, %v1811
    %1821 = vst.msk [vmem:[#allocation3 + $0x28] sm:$0xff] %vm1815, %v1812
    %1822 = vst.msk [vmem:[#allocation3 + $0x30] sm:$0xff] %vm1815, %v1813
    %1823 = vst.msk [vmem:[#allocation3 + $0x38] sm:$0xff] %vm1815, %v1814
    // Predicated region
    $region26: #{tpu_custom_call.1} parent=1 // pred_check
      _
    $region27: #{tpu_custom_call.1} parent=1 // pred_check_branch
      %1825 = sbr.rel (0) target = $region29
    $region28: #{tpu_custom_call.1} parent=1 // pred_region
      %s1827 = ssub.s32 1024, 1024
      %1828 = vsyncadd [#allocation4], %s1827
      %s1829 = sshll.u32 [#allocation3], 4
      %s1830 = int_to_ptr.vmem [resolvable:$true] %s1829
      %1835 = dma.vmem_to_hbm [thread:$0]  %s1830, 1024, %s6, [#allocation4], 128, 128, 8
    $region29: #{tpu_custom_call.1} parent=1 // pred_fallthru
      _
    // Predicated region
    $region30: #{tpu_custom_call.1} parent=1 // pred_check
      _
    $region31: #{tpu_custom_call.1} parent=1 // pred_check_branch
      %1837 = sbr.rel (0) target = $region33
    $region32: #{tpu_custom_call.1} parent=1 // pred_region
      %s1839 = ssub.s32 256, 256
      %1840 = vsyncadd [#allocation6], %s1839
      %s1841 = sshll.u32 [#allocation5], 4
      %s1842 = int_to_ptr.vmem [resolvable:$true] %s1841
      %1847 = dma.vmem_to_hbm [thread:$0]  %s1842, 256, %s7, [#allocation6], 128, 128, 8
    $region33: #{tpu_custom_call.1} parent=1 // pred_fallthru
      _
    // Predicated region
    $region34: #{tpu_custom_call.1} parent=1 // pred_check
      _
    $region35: #{tpu_custom_call.1} parent=1 // pred_check_branch
      %1849 = sbr.rel (0) target = $region37
    $region36: #{tpu_custom_call.1} parent=1 // pred_region
      %s1851 = ssub.s32 256, 256
      %1852 = vsyncadd [#allocation6], %s1851
      %s1853 = sshll.u32 [#allocation7], 4
      %s1854 = int_to_ptr.vmem [resolvable:$true] %s1853
      %1859 = dma.vmem_to_hbm [thread:$0]  %s1854, 256, %s8, [#allocation6], 128, 128, 8
    $region37: #{tpu_custom_call.1} parent=1 // pred_fallthru
      _
    // Predicated region
    $region38: #{tpu_custom_call.1} parent=1 // pred_check
      _
    $region39: #{tpu_custom_call.1} parent=1 // pred_check_branch
      %1861 = sbr.rel (0) target = $region41
    $region40: #{tpu_custom_call.1} parent=1 // pred_region
      %1862 = dma.done [#allocation4], 1024
    $region41: #{tpu_custom_call.1} parent=1 // pred_fallthru
      _
    // Predicated region
    $region42: #{tpu_custom_call.1} parent=1 // pred_check
      _
    $region43: #{tpu_custom_call.1} parent=1 // pred_check_branch
      %1864 = sbr.rel (0) target = $region45
    $region44: #{tpu_custom_call.1} parent=1 // pred_region
      %1865 = dma.done [#allocation6], 256
    $region45: #{tpu_custom_call.1} parent=1 // pred_fallthru
      _
    // Predicated region
    $region46: #{tpu_custom_call.1} parent=1 // pred_check
      _
    $region47: #{tpu_custom_call.1} parent=1 // pred_check_branch
      %1867 = sbr.rel (0) target = $region49
    $region48: #{tpu_custom_call.1} parent=1 // pred_region
      %1868 = dma.done [#allocation6], 256
    $region49: #{tpu_custom_call.1} parent=1 // pred_fallthru
      _
    %1869 = vsyncpa [#allocation4], 1
    %1870 = vsyncpa [#allocation6], 1

</llo_original>
